<compile_context>
chip_gen: v7x
topology: tpu7x:2x2x1
jax: 0.10.0
libtpu: 0.0.40
codegen_flags: <defaults>
</compile_context>

<pallas_src>
import functools

import jax
import jax.numpy as jnp
from jax.experimental import pallas as pl
from jax.experimental.pallas import tpu as pltpu

H1 = 500     # encoder hidden 1 (fixed by the module)
H2 = 1000    # encoder hidden 2 (fixed by the module)
H1P = 512    # padded (lane/MXU aligned)
H2P = 1024   # padded (lane/MXU aligned)
LANE = 128


def _round_up(x, m):
    return (x + m - 1) // m * m


def _generator_kernel(seed_ref, x_ref, w1_ref, b1_ref, w2_ref, b2_ref,
                      w3_ref, b3_ref, out_ref, *, p_drop, training):
    x = x_ref[...]                                    # bf16 [tb, Np]

    if training and p_drop > 0.0:
        # Inverted dropout via the hardware PRNG; seed hashed with the tile id.
        pltpu.prng_seed(seed_ref[0] ^ (pl.program_id(0) * 0x27D4EB2F))
        bits = pltpu.prng_random_bits(x.shape)
        if bits.dtype != jnp.uint32:                  # trace-time only
            bits = pltpu.bitcast(bits, jnp.uint32)
        thresh = jnp.uint32(min(int(p_drop * 4294967296.0), 4294967295))
        inv_keep = float(1.0 / (1.0 - p_drop))
        # Scale folded into the select; sits in VPU slack under the MXU.
        x = jnp.where(bits >= thresh, x * inv_keep, 0.0).astype(x_ref.dtype)

    # encoder: Linear -> ReLU -> Linear -> ReLU  (bf16 MXU inputs, f32 accumulate)
    h1 = jnp.dot(x, w1_ref[...], preferred_element_type=jnp.float32) + b1_ref[...]
    h1 = jnp.maximum(h1, 0.0).astype(jnp.bfloat16)
    h2 = jnp.dot(h1, w2_ref[...], preferred_element_type=jnp.float32) + b2_ref[...]
    h2 = jnp.maximum(h2, 0.0).astype(jnp.bfloat16)

    # decoder: Linear -> Tanh (f32)
    out = jnp.dot(h2, w3_ref[...], preferred_element_type=jnp.float32) + b3_ref[...]
    out_ref[...] = jnp.tanh(out).astype(out_ref.dtype)


def _tpu_defaults():
    """Generation-aware (preferred batch tile, physical VMEM capacity)."""
    try:
        vmem_cap = int(pltpu.get_tpu_info().vmem_capacity_bytes)
    except Exception:
        vmem_cap = 64 << 20
    try:
        kind = jax.devices()[0].device_kind.lower()
    except Exception:
        kind = ""
    # 128-wide MXU on v5e and older; 256-wide on v6e / v7x.
    tb_pref = 128 if any(t in kind for t in ("v2", "v3", "v4", "v5")) else 256
    return tb_pref, vmem_cap


def _vmem_budget_bytes(n_item_p, tb, vmem_cap):
    """Real footprint (+headroom); never below the footprint, capped at physical."""
    weights = (n_item_p * H1P + H1P * H2P + H2P * n_item_p) * 2 \
              + (H1P + H2P + n_item_p) * 4                       # bf16 W, f32 b
    io = 2 * (tb * n_item_p * 2) + 2 * (tb * n_item_p * 4)        # x/out, 2 bufs
    acts = tb * (H1P + H2P + n_item_p) * 4                        # f32 intermediates
    footprint = weights + io + 2 * acts
    budget = footprint + (8 << 20)
    return int(min(max(budget, 16 << 20), vmem_cap))


def generator_forward(params, x, *, seed=0, training=False, p_drop=0.1, tb=None):
    """Fused generator forward.  x: [B, n_item] f32; params stored as [in, out]."""
    assert 0.0 <= p_drop < 1.0, "p_drop must be in [0, 1)"
    B, n_item = x.shape

    tb_pref, vmem_cap = _tpu_defaults()
    if tb is None:
        tb = tb_pref
    tb = min(tb, _round_up(B, 8))          # don't pad tiny batches up to 128/256
    Bp = _round_up(B, tb)
    Np = _round_up(n_item, LANE)           # lane-dense x/out, MXU-aligned N/K

    xp = x
    if (Bp, Np) != (B, n_item):
        xp = jnp.pad(x, ((0, Bp - B), (0, Np - n_item)))
    xp = xp.astype(jnp.bfloat16)

    def padw(a, shape):
        return jnp.pad(a, [(0, s - d) for d, s in zip(a.shape, shape)])

    w1 = padw(params["w1"], (Np, H1P)).astype(jnp.bfloat16)
    b1 = padw(params["b1"], (H1P,)).reshape(1, H1P).astype(jnp.float32)
    w2 = padw(params["w2"], (H1P, H2P)).astype(jnp.bfloat16)
    b2 = padw(params["b2"], (H2P,)).reshape(1, H2P).astype(jnp.float32)
    w3 = padw(params["w3"], (H2P, Np)).astype(jnp.bfloat16)
    b3 = padw(params["b3"], (Np,)).reshape(1, Np).astype(jnp.float32)
    seed_arr = jnp.array([seed], dtype=jnp.int32)

    kernel = functools.partial(_generator_kernel, p_drop=p_drop, training=training)

    grid = (Bp // tb,)
    full = lambda i: (0, 0)                # weights/biases: same block every step

    def w_spec(shape):
        # Constant-index blocks never change -> single buffer (no wasted VMEM).
        return pl.BlockSpec(shape, full, pipeline_mode=pl.Buffered(1))

    flops = 2 * Bp * (Np * H1P + H1P * H2P + H2P * Np)
    bytes_accessed = (Bp * Np * 2 + Bp * Np * 4
                      + (Np * H1P + H1P * H2P + H2P * Np) * 2
                      + (H1P + H2P + Np) * 4)
    cost = pl.CostEstimate(flops=flops, transcendentals=Bp * Np,
                           bytes_accessed=bytes_accessed)

    out = pl.pallas_call(
        kernel,
        out_shape=jax.ShapeDtypeStruct((Bp, Np), jnp.float32),
        grid_spec=pltpu.PrefetchScalarGridSpec(
            num_scalar_prefetch=0,
            grid=grid,
            in_specs=[
                pl.BlockSpec(memory_space=pltpu.MemorySpace.SMEM),   # seed
                pl.BlockSpec((tb, Np), lambda i: (i, 0)),            # x tile (bf16)
                w_spec((Np, H1P)),                                   # w1
                w_spec((1, H1P)),                                    # b1
                w_spec((H1P, H2P)),                                  # w2
                w_spec((1, H2P)),                                    # b2
                w_spec((H2P, Np)),                                   # w3
                w_spec((1, Np)),                                     # b3
            ],
            out_specs=pl.BlockSpec((tb, Np), lambda i: (i, 0)),
        ),
        compiler_params=pltpu.CompilerParams(
            dimension_semantics=("parallel",),
            vmem_limit_bytes=_vmem_budget_bytes(Np, tb, vmem_cap),
        ),
        cost_estimate=cost,
    )(seed_arr, xp, w1, b1, w2, b2, w3, b3)

    return out[:B, :n_item]


def init_params(key, n_item):
    """Deterministic synthetic weights (PyTorch Linear shapes, stored as [in, out])."""
    k1, k2, k3, k4, k5, k6 = jax.random.split(key, 6)
    scale = 0.05
    return {
        "w1": scale * jax.random.normal(k1, (n_item, H1), jnp.float32),
        "b1": scale * jax.random.normal(k2, (H1,), jnp.float32),
        "w2": scale * jax.random.normal(k3, (H1, H2), jnp.float32),
        "b2": scale * jax.random.normal(k4, (H2,), jnp.float32),
        "w3": scale * jax.random.normal(k5, (H2, n_item), jnp.float32),
        "b3": scale * jax.random.normal(k6, (n_item,), jnp.float32),
    }


def reference_forward(params, x):
    """Pure-JAX f32 reference (eval mode: dropout = identity)."""
    h1 = jnp.maximum(x @ params["w1"] + params["b1"], 0.0)
    h2 = jnp.maximum(h1 @ params["w2"] + params["b2"], 0.0)
    return jnp.tanh(h2 @ params["w3"] + params["b3"])


if __name__ == "__main__":
    key = jax.random.PRNGKey(0)
    n_item = 300   # deliberately not lane-aligned -> exercises pad-and-slice
    batch = 8

    kp, kx = jax.random.split(key)
    params = init_params(kp, n_item)
    rating_vec = jax.random.uniform(kx, (batch, n_item), jnp.float32)

    # Eval-mode forward (matches model.eval(); dropout is identity).
    out = generator_forward(params, rating_vec, training=False)
    out = jax.block_until_ready(out)

    ref = reference_forward(params, rating_vec)
    assert out.shape == (batch, n_item)
    # bf16 matmul inputs (f32 accumulate) -> loosened tolerance vs f32 reference.
    assert jnp.allclose(out, ref, atol=3e-2, rtol=3e-2), (
        "mismatch vs reference, max abs err = %f" % float(jnp.max(jnp.abs(out - ref))))

    print("KERNEL_OK")
</pallas_src>

<mosaic_0001>
module attributes {stable_mosaic.version = 11 : i64} {
  func.func @_generator_kernel(%arg0: i32, %arg1: memref<1xi32, #tpu.memory_space<smem>>, %arg2: memref<8x384xbf16, #tpu.memory_space<vmem>>, %arg3: memref<384x512xbf16, #tpu.memory_space<vmem>>, %arg4: memref<1x512xf32, #tpu.memory_space<vmem>>, %arg5: memref<512x1024xbf16, #tpu.memory_space<vmem>>, %arg6: memref<1x1024xf32, #tpu.memory_space<vmem>>, %arg7: memref<1024x384xbf16, #tpu.memory_space<vmem>>, %arg8: memref<1x384xf32, #tpu.memory_space<vmem>>, %arg9: memref<8x384xf32, #tpu.memory_space<vmem>>) attributes {dimension_semantics = [#tpu.dimension_semantics<parallel>], iteration_bounds = array<i64: 1>, scalar_prefetch = 0 : i64, scratch_operands = 0 : i64, tpu.core_type = #tpu.core_type<tc>, window_params = [{transform_indices = @transform_0, window_bounds = array<i64: 1>}, {transform_indices = @transform_1, window_bounds = array<i64: 8, 384>}, {pipeline_mode = #tpu.pipeline_mode<synchronous>, transform_indices = @transform_2, window_bounds = array<i64: 384, 512>}, {pipeline_mode = #tpu.pipeline_mode<synchronous>, transform_indices = @transform_3, window_bounds = array<i64: 1, 512>}, {pipeline_mode = #tpu.pipeline_mode<synchronous>, transform_indices = @transform_4, window_bounds = array<i64: 512, 1024>}, {pipeline_mode = #tpu.pipeline_mode<synchronous>, transform_indices = @transform_5, window_bounds = array<i64: 1, 1024>}, {pipeline_mode = #tpu.pipeline_mode<synchronous>, transform_indices = @transform_6, window_bounds = array<i64: 1024, 384>}, {pipeline_mode = #tpu.pipeline_mode<synchronous>, transform_indices = @transform_7, window_bounds = array<i64: 1, 384>}, {transform_indices = @transform_8, window_bounds = array<i64: 8, 384>}]} {
    %c0 = arith.constant 0 : index
    %c0_0 = arith.constant 0 : index
    %0 = vector.load %arg2[%c0, %c0_0] : memref<8x384xbf16, #tpu.memory_space<vmem>>, vector<8x384xbf16>
    %c0_1 = arith.constant 0 : index
    %c0_2 = arith.constant 0 : index
    %1 = vector.load %arg3[%c0_1, %c0_2] : memref<384x512xbf16, #tpu.memory_space<vmem>>, vector<384x512xbf16>
    %cst = arith.constant dense<0.000000e+00> : vector<8x512xf32>
    %2 = tpu.matmul %0, %1, %cst {dimension_numbers = #tpu.dot_dimension_numbers<[1], [0], [0], [1], [0, 0, 1, 1], [], []>} : vector<8x384xbf16>, vector<384x512xbf16>, vector<8x512xf32> -> vector<8x512xf32>
    %c0_3 = arith.constant 0 : index
    %c0_4 = arith.constant 0 : index
    %3 = vector.load %arg4[%c0_3, %c0_4] : memref<1x512xf32, #tpu.memory_space<vmem>>, vector<1x512xf32>
    %4 = vector.broadcast %3 : vector<1x512xf32> to vector<8x512xf32>
    %5 = arith.addf %2, %4 : vector<8x512xf32>
    %cst_5 = arith.constant 0.000000e+00 : f32
    %6 = vector.broadcast %cst_5 : f32 to vector<8x512xf32>
    %7 = arith.maximumf %5, %6 : vector<8x512xf32>
    %8 = arith.truncf %7 : vector<8x512xf32> to vector<8x512xbf16>
    %c0_6 = arith.constant 0 : index
    %c0_7 = arith.constant 0 : index
    %9 = vector.load %arg5[%c0_6, %c0_7] : memref<512x1024xbf16, #tpu.memory_space<vmem>>, vector<512x1024xbf16>
    %cst_8 = arith.constant dense<0.000000e+00> : vector<8x1024xf32>
    %10 = tpu.matmul %8, %9, %cst_8 {dimension_numbers = #tpu.dot_dimension_numbers<[1], [0], [0], [1], [0, 0, 1, 1], [], []>} : vector<8x512xbf16>, vector<512x1024xbf16>, vector<8x1024xf32> -> vector<8x1024xf32>
    %c0_9 = arith.constant 0 : index
    %c0_10 = arith.constant 0 : index
    %11 = vector.load %arg6[%c0_9, %c0_10] : memref<1x1024xf32, #tpu.memory_space<vmem>>, vector<1x1024xf32>
    %12 = vector.broadcast %11 : vector<1x1024xf32> to vector<8x1024xf32>
    %13 = arith.addf %10, %12 : vector<8x1024xf32>
    %cst_11 = arith.constant 0.000000e+00 : f32
    %14 = vector.broadcast %cst_11 : f32 to vector<8x1024xf32>
    %15 = arith.maximumf %13, %14 : vector<8x1024xf32>
    %16 = arith.truncf %15 : vector<8x1024xf32> to vector<8x1024xbf16>
    %c0_12 = arith.constant 0 : index
    %c0_13 = arith.constant 0 : index
    %17 = vector.load %arg7[%c0_12, %c0_13] : memref<1024x384xbf16, #tpu.memory_space<vmem>>, vector<1024x384xbf16>
    %cst_14 = arith.constant dense<0.000000e+00> : vector<8x384xf32>
    %18 = tpu.matmul %16, %17, %cst_14 {dimension_numbers = #tpu.dot_dimension_numbers<[1], [0], [0], [1], [0, 0, 1, 1], [], []>} : vector<8x1024xbf16>, vector<1024x384xbf16>, vector<8x384xf32> -> vector<8x384xf32>
    %c0_15 = arith.constant 0 : index
    %c0_16 = arith.constant 0 : index
    %19 = vector.load %arg8[%c0_15, %c0_16] : memref<1x384xf32, #tpu.memory_space<vmem>>, vector<1x384xf32>
    %20 = vector.broadcast %19 : vector<1x384xf32> to vector<8x384xf32>
    %21 = arith.addf %18, %20 : vector<8x384xf32>
    %22 = math.tanh %21 : vector<8x384xf32>
    %c0_17 = arith.constant 0 : index
    %c0_18 = arith.constant 0 : index
    %23 = vector.load %arg9[%c0_17, %c0_18] : memref<8x384xf32, #tpu.memory_space<vmem>>, vector<8x384xf32>
    tpu.vector_store %arg9[%c0_17, %c0_18], %22 {strides = array<i32>} : memref<8x384xf32, #tpu.memory_space<vmem>>, vector<8x384xf32>,
    return
  }
  func.func @transform_0(%arg0: i32) -> i32 {
    %c0_i32 = arith.constant 0 : i32
    %c0_i32_0 = arith.constant 0 : i32
    return %c0_i32 : i32
  }
  func.func @transform_1(%arg0: i32) -> (i32, i32) {
    %c0_i32 = arith.constant 0 : i32
    %c0_i32_0 = arith.constant 0 : i32
    return %arg0, %c0_i32 : i32, i32
  }
  func.func @transform_2(%arg0: i32) -> (i32, i32) {
    %c0_i32 = arith.constant 0 : i32
    %c0_i32_0 = arith.constant 0 : i32
    %c0_i32_1 = arith.constant 0 : i32
    return %c0_i32, %c0_i32_0 : i32, i32
  }
  func.func @transform_3(%arg0: i32) -> (i32, i32) {
    %c0_i32 = arith.constant 0 : i32
    %c0_i32_0 = arith.constant 0 : i32
    %c0_i32_1 = arith.constant 0 : i32
    return %c0_i32, %c0_i32_0 : i32, i32
  }
  func.func @transform_4(%arg0: i32) -> (i32, i32) {
    %c0_i32 = arith.constant 0 : i32
    %c0_i32_0 = arith.constant 0 : i32
    %c0_i32_1 = arith.constant 0 : i32
    return %c0_i32, %c0_i32_0 : i32, i32
  }
  func.func @transform_5(%arg0: i32) -> (i32, i32) {
    %c0_i32 = arith.constant 0 : i32
    %c0_i32_0 = arith.constant 0 : i32
    %c0_i32_1 = arith.constant 0 : i32
    return %c0_i32, %c0_i32_0 : i32, i32
  }
  func.func @transform_6(%arg0: i32) -> (i32, i32) {
    %c0_i32 = arith.constant 0 : i32
    %c0_i32_0 = arith.constant 0 : i32
    %c0_i32_1 = arith.constant 0 : i32
    return %c0_i32, %c0_i32_0 : i32, i32
  }
  func.func @transform_7(%arg0: i32) -> (i32, i32) {
    %c0_i32 = arith.constant 0 : i32
    %c0_i32_0 = arith.constant 0 : i32
    %c0_i32_1 = arith.constant 0 : i32
    return %c0_i32, %c0_i32_0 : i32, i32
  }
  func.func @transform_8(%arg0: i32) -> (i32, i32) {
    %c0_i32 = arith.constant 0 : i32
    %c0_i32_0 = arith.constant 0 : i32
    return %arg0, %c0_i32 : i32, i32
  }
}

</mosaic_0001>

<llo_original>
// kernel: tpu_custom_call.1
$region0: #{tpu_custom_call.1}
  #allocation0 [shape = 'u32[]', space=smem, size = 0x4, offset = 0x4, fixed_abs, tag = 'smem constant byte address 0x4 - core index']
  #allocation1 [shape = 'u32[144,128]{1,0:T(1,128)}', space=vmem, size = 0x12000, scoped, tag = 'internal scratch']
  #allocation2 [shape = 's32[1]{0:T(128)S(6)}', space=smem, size = 0x200, scoped, tag = 'scoped memory for tpu_custom_call.1']
  %s0 = inlined_call_operand.<no memory space> [shape: s32[1], index: 0, kind: input, shape index: {}]
  %s1 = inlined_call_operand.hbm [shape: bf16[8,384], index: 1, kind: input, shape index: {}]
  %s2 = inlined_call_operand.hbm [shape: bf16[384,512], index: 2, kind: input, shape index: {}]
  %s3 = inlined_call_operand.vmem [shape: f32[1,512], index: 3, kind: input, shape index: {}]
  %s4 = inlined_call_operand.hbm [shape: bf16[512,1024], index: 4, kind: input, shape index: {}]
  %s5 = inlined_call_operand.vmem [shape: f32[1,1024], index: 5, kind: input, shape index: {}]
  %s6 = inlined_call_operand.hbm [shape: bf16[1024,384], index: 6, kind: input, shape index: {}]
  %s7 = inlined_call_operand.vmem [shape: f32[1,384], index: 7, kind: input, shape index: {}]
  %s8 = inlined_call_operand.hbm [shape: f32[8,384], index: 8, kind: output, shape index: {}]
  %s9 = sld [smem:[#allocation0]]
  $region58: #{tpu_custom_call.1} parent=0
    _
  %s11 = ssub.s32 1, %s9
  %s12 = scalar_select 0, %s11, %s9
  %13 = sst [smem:[#allocation2]] %s0
  $region1: #{tpu_custom_call.1} parent=0
    #allocation3 [shape = 'u8[6144]{0}', space=vmem, size = 0x1800, scoped, tag = 'input window, operand 1, single buffered']
    #allocation4 [shape = 's32[1]{0}', space=sflag, size = 0x4, scoped, tag = 'scoped memory for tpu_custom_call.1']
    #allocation5 [shape = 's32[1]{0}', space=sflag, size = 0x4, scoped, tag = 'scoped memory for tpu_custom_call.1']
    #allocation6 [shape = 'u8[393216]{0}', space=vmem, size = 0x60000, scoped, tag = 'input window, operand 2, single buffered']
    #allocation7 [shape = 's32[1]{0}', space=sflag, size = 0x4, scoped, tag = 'scoped memory for tpu_custom_call.1']
    #allocation8 [shape = 'u8[1048576]{0}', space=vmem, size = 0x100000, scoped, tag = 'input window, operand 4, single buffered']
    #allocation9 [shape = 'u8[786432]{0}', space=vmem, size = 0xc0000, scoped, tag = 'input window, operand 6, single buffered']
    #allocation10 [shape = 's32[1]{0}', space=sflag, size = 0x4, scoped, tag = 'scoped memory for tpu_custom_call.1']
    #allocation11 [shape = 'u8[12288]{0}', space=vmem, size = 0x3000, scoped, tag = 'output window, operand 0, single buffered']
    %14 = vsyncpa [#allocation4], 0
    %15 = vsyncpa [#allocation7], 0
    %16 = vsyncpa [#allocation10], 0
    %17 = vsyncpa [#allocation5], 0
    // Predicated region
    $region2: #{tpu_custom_call.1} parent=1 // pred_check
      _
    $region3: #{tpu_custom_call.1} parent=1 // pred_check_branch
      %19 = sbr.rel (0) target = $region5
    $region4: #{tpu_custom_call.1} parent=1 // pred_region
      _
    $region5: #{tpu_custom_call.1} parent=1 // pred_fallthru
      _
    // Predicated region
    $region6: #{tpu_custom_call.1} parent=1 // pred_check
      _
    $region7: #{tpu_custom_call.1} parent=1 // pred_check_branch
      %21 = sbr.rel (0) target = $region9
    $region8: #{tpu_custom_call.1} parent=1 // pred_region
      %s23 = ssub.s32 192, 192
      %24 = vsyncadd [#allocation4], %s23
      %s26 = sshll.u32 [#allocation3], 4
      %s27 = int_to_ptr.vmem [resolvable:$true] %s26
      %29 = dma.hbm_to_vmem [thread:$0]  %s1, 192, %s27, [#allocation4]
    $region9: #{tpu_custom_call.1} parent=1 // pred_fallthru
      _
    // Predicated region
    $region10: #{tpu_custom_call.1} parent=1 // pred_check
      _
    $region11: #{tpu_custom_call.1} parent=1 // pred_check_branch
      %31 = sbr.rel (0) target = $region13
    $region12: #{tpu_custom_call.1} parent=1 // pred_region
      %s33 = ssub.s32 12288, 12288
      %34 = vsyncadd [#allocation7], %s33
      %s35 = sshll.u32 [#allocation6], 4
      %s36 = int_to_ptr.vmem [resolvable:$true] %s35
      %41 = dma.hbm_to_vmem [thread:$0]  %s2, 12288, %s36, [#allocation7], 256, 256, 16
    $region13: #{tpu_custom_call.1} parent=1 // pred_fallthru
      _
    // Predicated region
    $region14: #{tpu_custom_call.1} parent=1 // pred_check
      _
    $region15: #{tpu_custom_call.1} parent=1 // pred_check_branch
      %43 = sbr.rel (0) target = $region17
    $region16: #{tpu_custom_call.1} parent=1 // pred_region
      _
    $region17: #{tpu_custom_call.1} parent=1 // pred_fallthru
      _
    // Predicated region
    $region18: #{tpu_custom_call.1} parent=1 // pred_check
      _
    $region19: #{tpu_custom_call.1} parent=1 // pred_check_branch
      %45 = sbr.rel (0) target = $region21
    $region20: #{tpu_custom_call.1} parent=1 // pred_region
      %s47 = ssub.s32 32768, 32768
      %48 = vsyncadd [#allocation7], %s47
      %s49 = sshll.u32 [#allocation8], 4
      %s50 = int_to_ptr.vmem [resolvable:$true] %s49
      %55 = dma.hbm_to_vmem [thread:$0]  %s4, 32768, %s50, [#allocation7], 512, 512, 32
    $region21: #{tpu_custom_call.1} parent=1 // pred_fallthru
      _
    // Predicated region
    $region22: #{tpu_custom_call.1} parent=1 // pred_check
      _
    $region23: #{tpu_custom_call.1} parent=1 // pred_check_branch
      %57 = sbr.rel (0) target = $region25
    $region24: #{tpu_custom_call.1} parent=1 // pred_region
      _
    $region25: #{tpu_custom_call.1} parent=1 // pred_fallthru
      _
    // Predicated region
    $region26: #{tpu_custom_call.1} parent=1 // pred_check
      _
    $region27: #{tpu_custom_call.1} parent=1 // pred_check_branch
      %59 = sbr.rel (0) target = $region29
    $region28: #{tpu_custom_call.1} parent=1 // pred_region
      %s61 = ssub.s32 24576, 24576
      %62 = vsyncadd [#allocation10], %s61
      %s63 = sshll.u32 [#allocation9], 4
      %s64 = int_to_ptr.vmem [resolvable:$true] %s63
      %69 = dma.hbm_to_vmem [thread:$0]  %s6, 24576, %s64, [#allocation10], 192, 192, 12
    $region29: #{tpu_custom_call.1} parent=1 // pred_fallthru
      _
    // Predicated region
    $region30: #{tpu_custom_call.1} parent=1 // pred_check
      _
    $region31: #{tpu_custom_call.1} parent=1 // pred_check_branch
      %71 = sbr.rel (0) target = $region33
    $region32: #{tpu_custom_call.1} parent=1 // pred_region
      _
    $region33: #{tpu_custom_call.1} parent=1 // pred_fallthru
      _
    // Predicated region
    $region34: #{tpu_custom_call.1} parent=1 // pred_check
      _
    $region35: #{tpu_custom_call.1} parent=1 // pred_check_branch
      %73 = sbr.rel (0) target = $region37
    $region36: #{tpu_custom_call.1} parent=1 // pred_region
      %74 = dma.done [#allocation4], 192
    $region37: #{tpu_custom_call.1} parent=1 // pred_fallthru
      _
    // Predicated region
    $region38: #{tpu_custom_call.1} parent=1 // pred_check
      _
    $region39: #{tpu_custom_call.1} parent=1 // pred_check_branch
      %76 = sbr.rel (0) target = $region41
    $region40: #{tpu_custom_call.1} parent=1 // pred_region
      %77 = dma.done [#allocation7], 12288
    $region41: #{tpu_custom_call.1} parent=1 // pred_fallthru
      _
    // Predicated region
    $region42: #{tpu_custom_call.1} parent=1 // pred_check
      _
    $region43: #{tpu_custom_call.1} parent=1 // pred_check_branch
      %79 = sbr.rel (0) target = $region45
    $region44: #{tpu_custom_call.1} parent=1 // pred_region
      %80 = dma.done [#allocation7], 32768
    $region45: #{tpu_custom_call.1} parent=1 // pred_fallthru
      _
    // Predicated region
    $region46: #{tpu_custom_call.1} parent=1 // pred_check
      _
    $region47: #{tpu_custom_call.1} parent=1 // pred_check_branch
      %82 = sbr.rel (0) target = $region49
    $region48: #{tpu_custom_call.1} parent=1 // pred_region
      %83 = dma.done [#allocation10], 24576
    $region49: #{tpu_custom_call.1} parent=1 // pred_fallthru
      _
    %v85 = vld [vmem:[#allocation3] sm:$0xff]
    %v86 = vld [vmem:[#allocation3 + $0x8] sm:$0xf]
    %v87 = vld [vmem:[#allocation6] sm:$0xff]
    %v88 = vld [vmem:[#allocation6 + $0x8] sm:$0xff]
    %v89 = vld [vmem:[#allocation6 + $0x10] sm:$0xff]
    %v90 = vld [vmem:[#allocation6 + $0x18] sm:$0xff]
    %v91 = vld [vmem:[#allocation6 + $0x20] sm:$0xff]
    %v92 = vld [vmem:[#allocation6 + $0x28] sm:$0xff]
    %v93 = vld [vmem:[#allocation6 + $0x30] sm:$0xff]
    %v94 = vld [vmem:[#allocation6 + $0x38] sm:$0xff]
    %v95 = vld [vmem:[#allocation6 + $0x40] sm:$0xff]
    %v96 = vld [vmem:[#allocation6 + $0x48] sm:$0xff]
    %v97 = vld [vmem:[#allocation6 + $0x50] sm:$0xff]
    %v98 = vld [vmem:[#allocation6 + $0x58] sm:$0xff]
    %v99 = vld [vmem:[#allocation6 + $0x60] sm:$0xff]
    %v100 = vld [vmem:[#allocation6 + $0x68] sm:$0xff]
    %v101 = vld [vmem:[#allocation6 + $0x70] sm:$0xff]
    %v102 = vld [vmem:[#allocation6 + $0x78] sm:$0xff]
    %v103 = vld [vmem:[#allocation6 + $0x80] sm:$0xff]
    %v104 = vld [vmem:[#allocation6 + $0x88] sm:$0xff]
    %v105 = vld [vmem:[#allocation6 + $0x90] sm:$0xff]
    %v106 = vld [vmem:[#allocation6 + $0x98] sm:$0xff]
    %v107 = vld [vmem:[#allocation6 + $0xa0] sm:$0xff]
    %v108 = vld [vmem:[#allocation6 + $0xa8] sm:$0xff]
    %v109 = vld [vmem:[#allocation6 + $0xb0] sm:$0xff]
    %v110 = vld [vmem:[#allocation6 + $0xb8] sm:$0xff]
    %v111 = vld [vmem:[#allocation6 + $0xc0] sm:$0xff]
    %v112 = vld [vmem:[#allocation6 + $0xc8] sm:$0xff]
    %v113 = vld [vmem:[#allocation6 + $0xd0] sm:$0xff]
    %v114 = vld [vmem:[#allocation6 + $0xd8] sm:$0xff]
    %v115 = vld [vmem:[#allocation6 + $0xe0] sm:$0xff]
    %v116 = vld [vmem:[#allocation6 + $0xe8] sm:$0xff]
    %v117 = vld [vmem:[#allocation6 + $0xf0] sm:$0xff]
    %v118 = vld [vmem:[#allocation6 + $0xf8] sm:$0xff]
    %v119 = vld [vmem:[#allocation6 + $0x100] sm:$0xff]
    %v120 = vld [vmem:[#allocation6 + $0x108] sm:$0xff]
    %v121 = vld [vmem:[#allocation6 + $0x110] sm:$0xff]
    %v122 = vld [vmem:[#allocation6 + $0x118] sm:$0xff]
    %v123 = vld [vmem:[#allocation6 + $0x120] sm:$0xff]
    %v124 = vld [vmem:[#allocation6 + $0x128] sm:$0xff]
    %v125 = vld [vmem:[#allocation6 + $0x130] sm:$0xff]
    %v126 = vld [vmem:[#allocation6 + $0x138] sm:$0xff]
    %v127 = vld [vmem:[#allocation6 + $0x140] sm:$0xff]
    %v128 = vld [vmem:[#allocation6 + $0x148] sm:$0xff]
    %v129 = vld [vmem:[#allocation6 + $0x150] sm:$0xff]
    %v130 = vld [vmem:[#allocation6 + $0x158] sm:$0xff]
    %v131 = vld [vmem:[#allocation6 + $0x160] sm:$0xff]
    %v132 = vld [vmem:[#allocation6 + $0x168] sm:$0xff]
    %v133 = vld [vmem:[#allocation6 + $0x170] sm:$0xff]
    %v134 = vld [vmem:[#allocation6 + $0x178] sm:$0xff]
    %v135 = vld [vmem:[#allocation6 + $0x180] sm:$0xff]
    %v136 = vld [vmem:[#allocation6 + $0x188] sm:$0xff]
    %v137 = vld [vmem:[#allocation6 + $0x190] sm:$0xff]
    %v138 = vld [vmem:[#allocation6 + $0x198] sm:$0xff]
    %v139 = vld [vmem:[#allocation6 + $0x1a0] sm:$0xff]
    %v140 = vld [vmem:[#allocation6 + $0x1a8] sm:$0xff]
    %v141 = vld [vmem:[#allocation6 + $0x1b0] sm:$0xff]
    %v142 = vld [vmem:[#allocation6 + $0x1b8] sm:$0xff]
    %v143 = vld [vmem:[#allocation6 + $0x1c0] sm:$0xff]
    %v144 = vld [vmem:[#allocation6 + $0x1c8] sm:$0xff]
    %v145 = vld [vmem:[#allocation6 + $0x1d0] sm:$0xff]
    %v146 = vld [vmem:[#allocation6 + $0x1d8] sm:$0xff]
    %v147 = vld [vmem:[#allocation6 + $0x1e0] sm:$0xff]
    %v148 = vld [vmem:[#allocation6 + $0x1e8] sm:$0xff]
    %v149 = vld [vmem:[#allocation6 + $0x1f0] sm:$0xff]
    %v150 = vld [vmem:[#allocation6 + $0x1f8] sm:$0xff]
    %v151 = vld [vmem:[#allocation6 + $0x200] sm:$0xff]
    %v152 = vld [vmem:[#allocation6 + $0x208] sm:$0xff]
    %v153 = vld [vmem:[#allocation6 + $0x210] sm:$0xff]
    %v154 = vld [vmem:[#allocation6 + $0x218] sm:$0xff]
    %v155 = vld [vmem:[#allocation6 + $0x220] sm:$0xff]
    %v156 = vld [vmem:[#allocation6 + $0x228] sm:$0xff]
    %v157 = vld [vmem:[#allocation6 + $0x230] sm:$0xff]
    %v158 = vld [vmem:[#allocation6 + $0x238] sm:$0xff]
    %v159 = vld [vmem:[#allocation6 + $0x240] sm:$0xff]
    %v160 = vld [vmem:[#allocation6 + $0x248] sm:$0xff]
    %v161 = vld [vmem:[#allocation6 + $0x250] sm:$0xff]
    %v162 = vld [vmem:[#allocation6 + $0x258] sm:$0xff]
    %v163 = vld [vmem:[#allocation6 + $0x260] sm:$0xff]
    %v164 = vld [vmem:[#allocation6 + $0x268] sm:$0xff]
    %v165 = vld [vmem:[#allocation6 + $0x270] sm:$0xff]
    %v166 = vld [vmem:[#allocation6 + $0x278] sm:$0xff]
    %v167 = vld [vmem:[#allocation6 + $0x280] sm:$0xff]
    %v168 = vld [vmem:[#allocation6 + $0x288] sm:$0xff]
    %v169 = vld [vmem:[#allocation6 + $0x290] sm:$0xff]
    %v170 = vld [vmem:[#allocation6 + $0x298] sm:$0xff]
    %v171 = vld [vmem:[#allocation6 + $0x2a0] sm:$0xff]
    %v172 = vld [vmem:[#allocation6 + $0x2a8] sm:$0xff]
    %v173 = vld [vmem:[#allocation6 + $0x2b0] sm:$0xff]
    %v174 = vld [vmem:[#allocation6 + $0x2b8] sm:$0xff]
    %v175 = vld [vmem:[#allocation6 + $0x2c0] sm:$0xff]
    %v176 = vld [vmem:[#allocation6 + $0x2c8] sm:$0xff]
    %v177 = vld [vmem:[#allocation6 + $0x2d0] sm:$0xff]
    %v178 = vld [vmem:[#allocation6 + $0x2d8] sm:$0xff]
    %v179 = vld [vmem:[#allocation6 + $0x2e0] sm:$0xff]
    %v180 = vld [vmem:[#allocation6 + $0x2e8] sm:$0xff]
    %v181 = vld [vmem:[#allocation6 + $0x2f0] sm:$0xff]
    %v182 = vld [vmem:[#allocation6 + $0x2f8] sm:$0xff]
    %v183 = vld [vmem:[%s3] sm:$0xf]
    %v185 = vlaneseq
    %v186 = vshrl.u32 %v185, 7
    %v187 = vsub.s32 0, %v186
    %v188 = vrot.slane %v183, %v187
    %v189 = vlaneseq
    %v190 = vshrl.u32 %v189, 7
    %v191 = vsub.s32 1, %v190
    %v192 = vrot.slane %v183, %v191
    %v193 = vlaneseq
    %v194 = vshrl.u32 %v193, 7
    %v195 = vsub.s32 2, %v194
    %v196 = vrot.slane %v183, %v195
    %v197 = vlaneseq
    %v198 = vshrl.u32 %v197, 7
    %v199 = vsub.s32 3, %v198
    %v200 = vrot.slane %v183, %v199
    %v207 = vunpack.c.l.b16 %v85
    %v208 = vunpack.c.h.b16 %v85
    %v209 = vunpack.c.l.b16 %v86
    %v210 = vpack.c.b16 %v207, %v207
    %v211 = vpack.c.b16 %v208, %v208
    %v212 = vpack.c.b16 %v209, %v209
    %v312 = vunpack.c.l.b16 %v87
    %v313 = vunpack.c.h.b16 %v87
    %v314 = vunpack.c.l.b16 %v88
    %v315 = vunpack.c.h.b16 %v88
    %v316 = vunpack.c.l.b16 %v89
    %v317 = vunpack.c.h.b16 %v89
    %v318 = vunpack.c.l.b16 %v90
    %v319 = vunpack.c.h.b16 %v90
    %v320 = vunpack.c.l.b16 %v91
    %v321 = vunpack.c.h.b16 %v91
    %v322 = vunpack.c.l.b16 %v92
    %v323 = vunpack.c.h.b16 %v92
    %v324 = vunpack.c.l.b16 %v93
    %v325 = vunpack.c.h.b16 %v93
    %v326 = vunpack.c.l.b16 %v94
    %v327 = vunpack.c.h.b16 %v94
    %v328 = vunpack.c.l.b16 %v95
    %v329 = vunpack.c.h.b16 %v95
    %v330 = vunpack.c.l.b16 %v96
    %v331 = vunpack.c.h.b16 %v96
    %v332 = vunpack.c.l.b16 %v97
    %v333 = vunpack.c.h.b16 %v97
    %v334 = vunpack.c.l.b16 %v98
    %v335 = vunpack.c.h.b16 %v98
    %v336 = vunpack.c.l.b16 %v99
    %v337 = vunpack.c.h.b16 %v99
    %v338 = vunpack.c.l.b16 %v100
    %v339 = vunpack.c.h.b16 %v100
    %v340 = vunpack.c.l.b16 %v101
    %v341 = vunpack.c.h.b16 %v101
    %v342 = vunpack.c.l.b16 %v102
    %v343 = vunpack.c.h.b16 %v102
    %v344 = vunpack.c.l.b16 %v103
    %v345 = vunpack.c.h.b16 %v103
    %v346 = vunpack.c.l.b16 %v104
    %v347 = vunpack.c.h.b16 %v104
    %v348 = vunpack.c.l.b16 %v105
    %v349 = vunpack.c.h.b16 %v105
    %v350 = vunpack.c.l.b16 %v106
    %v351 = vunpack.c.h.b16 %v106
    %v352 = vunpack.c.l.b16 %v107
    %v353 = vunpack.c.h.b16 %v107
    %v354 = vunpack.c.l.b16 %v108
    %v355 = vunpack.c.h.b16 %v108
    %v356 = vunpack.c.l.b16 %v109
    %v357 = vunpack.c.h.b16 %v109
    %v358 = vunpack.c.l.b16 %v110
    %v359 = vunpack.c.h.b16 %v110
    %v360 = vunpack.c.l.b16 %v111
    %v361 = vunpack.c.h.b16 %v111
    %v362 = vunpack.c.l.b16 %v112
    %v363 = vunpack.c.h.b16 %v112
    %v364 = vunpack.c.l.b16 %v113
    %v365 = vunpack.c.h.b16 %v113
    %v366 = vunpack.c.l.b16 %v114
    %v367 = vunpack.c.h.b16 %v114
    %v368 = vunpack.c.l.b16 %v115
    %v369 = vunpack.c.h.b16 %v115
    %v370 = vunpack.c.l.b16 %v116
    %v371 = vunpack.c.h.b16 %v116
    %v372 = vunpack.c.l.b16 %v117
    %v373 = vunpack.c.h.b16 %v117
    %v374 = vunpack.c.l.b16 %v118
    %v375 = vunpack.c.h.b16 %v118
    %v376 = vunpack.c.l.b16 %v119
    %v377 = vunpack.c.h.b16 %v119
    %v378 = vunpack.c.l.b16 %v120
    %v379 = vunpack.c.h.b16 %v120
    %v380 = vunpack.c.l.b16 %v121
    %v381 = vunpack.c.h.b16 %v121
    %v382 = vunpack.c.l.b16 %v122
    %v383 = vunpack.c.h.b16 %v122
    %v384 = vunpack.c.l.b16 %v123
    %v385 = vunpack.c.h.b16 %v123
    %v386 = vunpack.c.l.b16 %v124
    %v387 = vunpack.c.h.b16 %v124
    %v388 = vunpack.c.l.b16 %v125
    %v389 = vunpack.c.h.b16 %v125
    %v390 = vunpack.c.l.b16 %v126
    %v391 = vunpack.c.h.b16 %v126
    %v392 = vunpack.c.l.b16 %v127
    %v393 = vunpack.c.h.b16 %v127
    %v394 = vunpack.c.l.b16 %v128
    %v395 = vunpack.c.h.b16 %v128
    %v396 = vunpack.c.l.b16 %v129
    %v397 = vunpack.c.h.b16 %v129
    %v398 = vunpack.c.l.b16 %v130
    %v399 = vunpack.c.h.b16 %v130
    %v400 = vunpack.c.l.b16 %v131
    %v401 = vunpack.c.h.b16 %v131
    %v402 = vunpack.c.l.b16 %v132
    %v403 = vunpack.c.h.b16 %v132
    %v404 = vunpack.c.l.b16 %v133
    %v405 = vunpack.c.h.b16 %v133
    %v406 = vunpack.c.l.b16 %v134
    %v407 = vunpack.c.h.b16 %v134
    %v408 = vunpack.c.l.b16 %v135
    %v409 = vunpack.c.h.b16 %v135
    %v410 = vunpack.c.l.b16 %v136
    %v411 = vunpack.c.h.b16 %v136
    %v412 = vunpack.c.l.b16 %v137
    %v413 = vunpack.c.h.b16 %v137
    %v414 = vunpack.c.l.b16 %v138
    %v415 = vunpack.c.h.b16 %v138
    %v416 = vunpack.c.l.b16 %v139
    %v417 = vunpack.c.h.b16 %v139
    %v418 = vunpack.c.l.b16 %v140
    %v419 = vunpack.c.h.b16 %v140
    %v420 = vunpack.c.l.b16 %v141
    %v421 = vunpack.c.h.b16 %v141
    %v422 = vunpack.c.l.b16 %v142
    %v423 = vunpack.c.h.b16 %v142
    %v424 = vunpack.c.l.b16 %v143
    %v425 = vunpack.c.h.b16 %v143
    %v426 = vunpack.c.l.b16 %v144
    %v427 = vunpack.c.h.b16 %v144
    %v428 = vunpack.c.l.b16 %v145
    %v429 = vunpack.c.h.b16 %v145
    %v430 = vunpack.c.l.b16 %v146
    %v431 = vunpack.c.h.b16 %v146
    %v432 = vunpack.c.l.b16 %v147
    %v433 = vunpack.c.h.b16 %v147
    %v434 = vunpack.c.l.b16 %v148
    %v435 = vunpack.c.h.b16 %v148
    %v436 = vunpack.c.l.b16 %v149
    %v437 = vunpack.c.h.b16 %v149
    %v438 = vunpack.c.l.b16 %v150
    %v439 = vunpack.c.h.b16 %v150
    %v440 = vunpack.c.l.b16 %v151
    %v441 = vunpack.c.h.b16 %v151
    %v442 = vunpack.c.l.b16 %v152
    %v443 = vunpack.c.h.b16 %v152
    %v444 = vunpack.c.l.b16 %v153
    %v445 = vunpack.c.h.b16 %v153
    %v446 = vunpack.c.l.b16 %v154
    %v447 = vunpack.c.h.b16 %v154
    %v448 = vunpack.c.l.b16 %v155
    %v449 = vunpack.c.h.b16 %v155
    %v450 = vunpack.c.l.b16 %v156
    %v451 = vunpack.c.h.b16 %v156
    %v452 = vunpack.c.l.b16 %v157
    %v453 = vunpack.c.h.b16 %v157
    %v454 = vunpack.c.l.b16 %v158
    %v455 = vunpack.c.h.b16 %v158
    %v456 = vunpack.c.l.b16 %v159
    %v457 = vunpack.c.h.b16 %v159
    %v458 = vunpack.c.l.b16 %v160
    %v459 = vunpack.c.h.b16 %v160
    %v460 = vunpack.c.l.b16 %v161
    %v461 = vunpack.c.h.b16 %v161
    %v462 = vunpack.c.l.b16 %v162
    %v463 = vunpack.c.h.b16 %v162
    %v464 = vunpack.c.l.b16 %v163
    %v465 = vunpack.c.h.b16 %v163
    %v466 = vunpack.c.l.b16 %v164
    %v467 = vunpack.c.h.b16 %v164
    %v468 = vunpack.c.l.b16 %v165
    %v469 = vunpack.c.h.b16 %v165
    %v470 = vunpack.c.l.b16 %v166
    %v471 = vunpack.c.h.b16 %v166
    %v472 = vunpack.c.l.b16 %v167
    %v473 = vunpack.c.h.b16 %v167
    %v474 = vunpack.c.l.b16 %v168
    %v475 = vunpack.c.h.b16 %v168
    %v476 = vunpack.c.l.b16 %v169
    %v477 = vunpack.c.h.b16 %v169
    %v478 = vunpack.c.l.b16 %v170
    %v479 = vunpack.c.h.b16 %v170
    %v480 = vunpack.c.l.b16 %v171
    %v481 = vunpack.c.h.b16 %v171
    %v482 = vunpack.c.l.b16 %v172
    %v483 = vunpack.c.h.b16 %v172
    %v484 = vunpack.c.l.b16 %v173
    %v485 = vunpack.c.h.b16 %v173
    %v486 = vunpack.c.l.b16 %v174
    %v487 = vunpack.c.h.b16 %v174
    %v488 = vunpack.c.l.b16 %v175
    %v489 = vunpack.c.h.b16 %v175
    %v490 = vunpack.c.l.b16 %v176
    %v491 = vunpack.c.h.b16 %v176
    %v492 = vunpack.c.l.b16 %v177
    %v493 = vunpack.c.h.b16 %v177
    %v494 = vunpack.c.l.b16 %v178
    %v495 = vunpack.c.h.b16 %v178
    %v496 = vunpack.c.l.b16 %v179
    %v497 = vunpack.c.h.b16 %v179
    %v498 = vunpack.c.l.b16 %v180
    %v499 = vunpack.c.h.b16 %v180
    %v500 = vunpack.c.l.b16 %v181
    %v501 = vunpack.c.h.b16 %v181
    %v502 = vunpack.c.l.b16 %v182
    %v503 = vunpack.c.h.b16 %v182
    %v504 = vpack.c.b16 %v316, %v312
    %v505 = vpack.c.b16 %v317, %v313
    %v506 = vpack.c.b16 %v318, %v314
    %v507 = vpack.c.b16 %v319, %v315
    %v508 = vpack.c.b16 %v324, %v320
    %v509 = vpack.c.b16 %v325, %v321
    %v510 = vpack.c.b16 %v326, %v322
    %v511 = vpack.c.b16 %v327, %v323
    %v512 = vpack.c.b16 %v332, %v328
    %v513 = vpack.c.b16 %v333, %v329
    %v514 = vpack.c.b16 %v334, %v330
    %v515 = vpack.c.b16 %v335, %v331
    %v516 = vpack.c.b16 %v340, %v336
    %v517 = vpack.c.b16 %v341, %v337
    %v518 = vpack.c.b16 %v342, %v338
    %v519 = vpack.c.b16 %v343, %v339
    %v520 = vpack.c.b16 %v348, %v344
    %v521 = vpack.c.b16 %v349, %v345
    %v522 = vpack.c.b16 %v350, %v346
    %v523 = vpack.c.b16 %v351, %v347
    %v524 = vpack.c.b16 %v356, %v352
    %v525 = vpack.c.b16 %v357, %v353
    %v526 = vpack.c.b16 %v358, %v354
    %v527 = vpack.c.b16 %v359, %v355
    %v528 = vpack.c.b16 %v364, %v360
    %v529 = vpack.c.b16 %v365, %v361
    %v530 = vpack.c.b16 %v366, %v362
    %v531 = vpack.c.b16 %v367, %v363
    %v532 = vpack.c.b16 %v372, %v368
    %v533 = vpack.c.b16 %v373, %v369
    %v534 = vpack.c.b16 %v374, %v370
    %v535 = vpack.c.b16 %v375, %v371
    %v536 = vpack.c.b16 %v380, %v376
    %v537 = vpack.c.b16 %v381, %v377
    %v538 = vpack.c.b16 %v382, %v378
    %v539 = vpack.c.b16 %v383, %v379
    %v540 = vpack.c.b16 %v388, %v384
    %v541 = vpack.c.b16 %v389, %v385
    %v542 = vpack.c.b16 %v390, %v386
    %v543 = vpack.c.b16 %v391, %v387
    %v544 = vpack.c.b16 %v396, %v392
    %v545 = vpack.c.b16 %v397, %v393
    %v546 = vpack.c.b16 %v398, %v394
    %v547 = vpack.c.b16 %v399, %v395
    %v548 = vpack.c.b16 %v404, %v400
    %v549 = vpack.c.b16 %v405, %v401
    %v550 = vpack.c.b16 %v406, %v402
    %v551 = vpack.c.b16 %v407, %v403
    %v552 = vpack.c.b16 %v412, %v408
    %v553 = vpack.c.b16 %v413, %v409
    %v554 = vpack.c.b16 %v414, %v410
    %v555 = vpack.c.b16 %v415, %v411
    %v556 = vpack.c.b16 %v420, %v416
    %v557 = vpack.c.b16 %v421, %v417
    %v558 = vpack.c.b16 %v422, %v418
    %v559 = vpack.c.b16 %v423, %v419
    %v560 = vpack.c.b16 %v428, %v424
    %v561 = vpack.c.b16 %v429, %v425
    %v562 = vpack.c.b16 %v430, %v426
    %v563 = vpack.c.b16 %v431, %v427
    %v564 = vpack.c.b16 %v436, %v432
    %v565 = vpack.c.b16 %v437, %v433
    %v566 = vpack.c.b16 %v438, %v434
    %v567 = vpack.c.b16 %v439, %v435
    %v568 = vpack.c.b16 %v444, %v440
    %v569 = vpack.c.b16 %v445, %v441
    %v570 = vpack.c.b16 %v446, %v442
    %v571 = vpack.c.b16 %v447, %v443
    %v572 = vpack.c.b16 %v452, %v448
    %v573 = vpack.c.b16 %v453, %v449
    %v574 = vpack.c.b16 %v454, %v450
    %v575 = vpack.c.b16 %v455, %v451
    %v576 = vpack.c.b16 %v460, %v456
    %v577 = vpack.c.b16 %v461, %v457
    %v578 = vpack.c.b16 %v462, %v458
    %v579 = vpack.c.b16 %v463, %v459
    %v580 = vpack.c.b16 %v468, %v464
    %v581 = vpack.c.b16 %v469, %v465
    %v582 = vpack.c.b16 %v470, %v466
    %v583 = vpack.c.b16 %v471, %v467
    %v584 = vpack.c.b16 %v476, %v472
    %v585 = vpack.c.b16 %v477, %v473
    %v586 = vpack.c.b16 %v478, %v474
    %v587 = vpack.c.b16 %v479, %v475
    %v588 = vpack.c.b16 %v484, %v480
    %v589 = vpack.c.b16 %v485, %v481
    %v590 = vpack.c.b16 %v486, %v482
    %v591 = vpack.c.b16 %v487, %v483
    %v592 = vpack.c.b16 %v492, %v488
    %v593 = vpack.c.b16 %v493, %v489
    %v594 = vpack.c.b16 %v494, %v490
    %v595 = vpack.c.b16 %v495, %v491
    %v596 = vpack.c.b16 %v500, %v496
    %v597 = vpack.c.b16 %v501, %v497
    %v598 = vpack.c.b16 %v502, %v498
    %v599 = vpack.c.b16 %v503, %v499
    %696 = vmatprep.subr.bf16.mxu0 %v505
    %697 = vmatpush1.bf16.msra.mxu0 %v504
    %698 = vmatprep.subr.bf16.mxu0 %v509
    %699 = vmatpush1.bf16.msra.mxu0 %v508
    %700 = vmatprep.subr.bf16.mxu0 %v513
    %701 = vmatpush1.bf16.msra.mxu0 %v512
    %702 = vmatprep.subr.bf16.mxu0 %v517
    %703 = vmatpush1.bf16.msra.mxu0 %v516
    %704 = vmatprep.subr.bf16.mxu0 %v521
    %705 = vmatpush1.bf16.msra.mxu0 %v520
    %706 = vmatprep.subr.bf16.mxu0 %v525
    %707 = vmatpush1.bf16.msra.mxu0 %v524
    %708 = vmatprep.subr.bf16.mxu0 %v529
    %709 = vmatpush1.bf16.msra.mxu0 %v528
    %710 = vmatprep.subr.bf16.mxu0 %v533
    %711 = vmatpush1.bf16.msra.mxu0 %v532
    %712 = vmatprep.subr.bf16.mxu0 %v537
    %713 = vmatpush1.bf16.msra.mxu0 %v536
    %714 = vmatprep.subr.bf16.mxu0 %v541
    %715 = vmatpush1.bf16.msra.mxu0 %v540
    %716 = vmatprep.subr.bf16.mxu0 %v545
    %717 = vmatpush1.bf16.msra.mxu0 %v544
    %718 = vmatprep.subr.bf16.mxu0 %v549
    %719 = vmatpush1.bf16.msra.mxu0 %v548
    %720 = vmatprep.subr.bf16.mxu0 %v553
    %721 = vmatpush1.bf16.msra.mxu0 %v552
    %722 = vmatprep.subr.bf16.mxu0 %v557
    %723 = vmatpush1.bf16.msra.mxu0 %v556
    %724 = vmatprep.subr.bf16.mxu0 %v561
    %725 = vmatpush1.bf16.msra.mxu0 %v560
    %726 = vmatprep.subr.bf16.mxu0 %v565
    %727 = vmatpush1.bf16.msra.mxu0 %v564
    %728 = vmatprep.mubr.bf16.mxu0 %v211
    %729 = vmatmul.mubr.bf16.gmra.mrb[0].mxu0 %v210
    %v730 = vpop.f32.mrb[0].mxu0
    %v731 = vadd.f32 %v188, %v730
    %v732 = vpop.f32.mrb[0].mxu0
    %v733 = vadd.f32 %v192, %v732
    %v734 = vpop.f32.mrb[0].mxu0
    %v735 = vpop.f32.mrb[0].mxu0
    %736 = vdwg.mxu0
    %737 = vmatprep.subr.bf16.mxu0 %v569
    %738 = vmatpush1.bf16.msra.mxu0 %v568
    %739 = vmatprep.subr.bf16.mxu0 %v573
    %740 = vmatpush1.bf16.msra.mxu0 %v572
    %741 = vmatprep.subr.bf16.mxu0 %v577
    %742 = vmatpush1.bf16.msra.mxu0 %v576
    %743 = vmatprep.subr.bf16.mxu0 %v581
    %744 = vmatpush1.bf16.msra.mxu0 %v580
    %745 = vmatprep.subr.bf16.mxu0 %v585
    %746 = vmatpush1.bf16.msra.mxu0 %v584
    %747 = vmatprep.subr.bf16.mxu0 %v589
    %748 = vmatpush1.bf16.msra.mxu0 %v588
    %749 = vmatprep.subr.bf16.mxu0 %v593
    %750 = vmatpush1.bf16.msra.mxu0 %v592
    %751 = vmatprep.subr.bf16.mxu0 %v597
    %752 = vmatpush1.bf16.msra.mxu0 %v596
    %753 = vmatprep.subr.bf16.mxu0 0
    %754 = vmatpush1.bf16.msra.mxu0 0
    %755 = vmatprep.subr.bf16.mxu0 0
    %756 = vmatpush1.bf16.msra.mxu0 0
    %757 = vmatprep.subr.bf16.mxu0 0
    %758 = vmatpush1.bf16.msra.mxu0 0
    %759 = vmatprep.subr.bf16.mxu0 0
    %760 = vmatpush1.bf16.msra.mxu0 0
    %761 = vmatprep.subr.bf16.mxu0 0
    %762 = vmatpush1.bf16.msra.mxu0 0
    %763 = vmatprep.subr.bf16.mxu0 0
    %764 = vmatpush1.bf16.msra.mxu0 0
    %765 = vmatprep.subr.bf16.mxu0 0
    %766 = vmatpush1.bf16.msra.mxu0 0
    %767 = vmatprep.subr.bf16.mxu0 0
    %768 = vmatpush1.bf16.msra.mxu0 0
    %769 = vmatprep.mubr.bf16.mxu0 0
    %770 = vmatmul.mubr.bf16.gmra.mrb[0].mxu0 %v212
    %v771 = vpop.f32.mrb[0].mxu0
    %v772 = vadd.f32 %v731, %v771
    %v773 = vpop.f32.mrb[0].mxu0
    %v774 = vadd.f32 %v733, %v773
    %v775 = vpop.f32.mrb[0].mxu0
    %v776 = vpop.f32.mrb[0].mxu0
    %777 = vdwg.mxu0
    %778 = vmatprep.subr.bf16.mxu0 %v507
    %779 = vmatpush1.bf16.msra.mxu0 %v506
    %780 = vmatprep.subr.bf16.mxu0 %v511
    %781 = vmatpush1.bf16.msra.mxu0 %v510
    %782 = vmatprep.subr.bf16.mxu0 %v515
    %783 = vmatpush1.bf16.msra.mxu0 %v514
    %784 = vmatprep.subr.bf16.mxu0 %v519
    %785 = vmatpush1.bf16.msra.mxu0 %v518
    %786 = vmatprep.subr.bf16.mxu0 %v523
    %787 = vmatpush1.bf16.msra.mxu0 %v522
    %788 = vmatprep.subr.bf16.mxu0 %v527
    %789 = vmatpush1.bf16.msra.mxu0 %v526
    %790 = vmatprep.subr.bf16.mxu0 %v531
    %791 = vmatpush1.bf16.msra.mxu0 %v530
    %792 = vmatprep.subr.bf16.mxu0 %v535
    %793 = vmatpush1.bf16.msra.mxu0 %v534
    %794 = vmatprep.subr.bf16.mxu0 %v539
    %795 = vmatpush1.bf16.msra.mxu0 %v538
    %796 = vmatprep.subr.bf16.mxu0 %v543
    %797 = vmatpush1.bf16.msra.mxu0 %v542
    %798 = vmatprep.subr.bf16.mxu0 %v547
    %799 = vmatpush1.bf16.msra.mxu0 %v546
    %800 = vmatprep.subr.bf16.mxu0 %v551
    %801 = vmatpush1.bf16.msra.mxu0 %v550
    %802 = vmatprep.subr.bf16.mxu0 %v555
    %803 = vmatpush1.bf16.msra.mxu0 %v554
    %804 = vmatprep.subr.bf16.mxu0 %v559
    %805 = vmatpush1.bf16.msra.mxu0 %v558
    %806 = vmatprep.subr.bf16.mxu0 %v563
    %807 = vmatpush1.bf16.msra.mxu0 %v562
    %808 = vmatprep.subr.bf16.mxu0 %v567
    %809 = vmatpush1.bf16.msra.mxu0 %v566
    %810 = vmatprep.mubr.bf16.mxu0 %v211
    %811 = vmatmul.mubr.bf16.gmra.mrb[0].mxu0 %v210
    %v812 = vpop.f32.mrb[0].mxu0
    %v813 = vadd.f32 %v196, %v812
    %v814 = vpop.f32.mrb[0].mxu0
    %v815 = vadd.f32 %v200, %v814
    %v816 = vpop.f32.mrb[0].mxu0
    %v817 = vpop.f32.mrb[0].mxu0
    %818 = vdwg.mxu0
    %819 = vmatprep.subr.bf16.mxu0 %v571
    %820 = vmatpush1.bf16.msra.mxu0 %v570
    %821 = vmatprep.subr.bf16.mxu0 %v575
    %822 = vmatpush1.bf16.msra.mxu0 %v574
    %823 = vmatprep.subr.bf16.mxu0 %v579
    %824 = vmatpush1.bf16.msra.mxu0 %v578
    %825 = vmatprep.subr.bf16.mxu0 %v583
    %826 = vmatpush1.bf16.msra.mxu0 %v582
    %827 = vmatprep.subr.bf16.mxu0 %v587
    %828 = vmatpush1.bf16.msra.mxu0 %v586
    %829 = vmatprep.subr.bf16.mxu0 %v591
    %830 = vmatpush1.bf16.msra.mxu0 %v590
    %831 = vmatprep.subr.bf16.mxu0 %v595
    %832 = vmatpush1.bf16.msra.mxu0 %v594
    %833 = vmatprep.subr.bf16.mxu0 %v599
    %834 = vmatpush1.bf16.msra.mxu0 %v598
    %835 = vmatprep.subr.bf16.mxu0 0
    %836 = vmatpush1.bf16.msra.mxu0 0
    %837 = vmatprep.subr.bf16.mxu0 0
    %838 = vmatpush1.bf16.msra.mxu0 0
    %839 = vmatprep.subr.bf16.mxu0 0
    %840 = vmatpush1.bf16.msra.mxu0 0
    %841 = vmatprep.subr.bf16.mxu0 0
    %842 = vmatpush1.bf16.msra.mxu0 0
    %843 = vmatprep.subr.bf16.mxu0 0
    %844 = vmatpush1.bf16.msra.mxu0 0
    %845 = vmatprep.subr.bf16.mxu0 0
    %846 = vmatpush1.bf16.msra.mxu0 0
    %847 = vmatprep.subr.bf16.mxu0 0
    %848 = vmatpush1.bf16.msra.mxu0 0
    %849 = vmatprep.subr.bf16.mxu0 0
    %850 = vmatpush1.bf16.msra.mxu0 0
    %851 = vmatprep.mubr.bf16.mxu0 0
    %852 = vmatmul.mubr.bf16.gmra.mrb[0].mxu0 %v212
    %v853 = vpop.f32.mrb[0].mxu0
    %v854 = vadd.f32 %v813, %v853
    %v855 = vpop.f32.mrb[0].mxu0
    %v856 = vadd.f32 %v815, %v855
    %v857 = vpop.f32.mrb[0].mxu0
    %v858 = vpop.f32.mrb[0].mxu0
    %859 = vdwg.mxu0
    %v860 = vmax.f32 %v772, 0.0
    %v861 = vmax.f32 %v774, 0.0
    %v862 = vmax.f32 %v854, 0.0
    %v863 = vmax.f32 %v856, 0.0
    %v864 = vpack.c.bf16 %v860, %v860
    %v865 = vpack.c.bf16 %v861, %v861
    %v866 = vpack.c.bf16 %v862, %v862
    %v867 = vpack.c.bf16 %v863, %v863
    %v868 = vld [vmem:[#allocation8] sm:$0xff]
    %v869 = vld [vmem:[#allocation8 + $0x8] sm:$0xff]
    %v870 = vld [vmem:[#allocation8 + $0x10] sm:$0xff]
    %v871 = vld [vmem:[#allocation8 + $0x18] sm:$0xff]
    %v872 = vld [vmem:[#allocation8 + $0x20] sm:$0xff]
    %v873 = vld [vmem:[#allocation8 + $0x28] sm:$0xff]
    %v874 = vld [vmem:[#allocation8 + $0x30] sm:$0xff]
    %v875 = vld [vmem:[#allocation8 + $0x38] sm:$0xff]
    %v876 = vld [vmem:[#allocation8 + $0x40] sm:$0xff]
    %v877 = vld [vmem:[#allocation8 + $0x48] sm:$0xff]
    %v878 = vld [vmem:[#allocation8 + $0x50] sm:$0xff]
    %v879 = vld [vmem:[#allocation8 + $0x58] sm:$0xff]
    %v880 = vld [vmem:[#allocation8 + $0x60] sm:$0xff]
    %v881 = vld [vmem:[#allocation8 + $0x68] sm:$0xff]
    %v882 = vld [vmem:[#allocation8 + $0x70] sm:$0xff]
    %v883 = vld [vmem:[#allocation8 + $0x78] sm:$0xff]
    %v884 = vld [vmem:[#allocation8 + $0x80] sm:$0xff]
    %v885 = vld [vmem:[#allocation8 + $0x88] sm:$0xff]
    %v886 = vld [vmem:[#allocation8 + $0x90] sm:$0xff]
    %v887 = vld [vmem:[#allocation8 + $0x98] sm:$0xff]
    %v888 = vld [vmem:[#allocation8 + $0xa0] sm:$0xff]
    %v889 = vld [vmem:[#allocation8 + $0xa8] sm:$0xff]
    %v890 = vld [vmem:[#allocation8 + $0xb0] sm:$0xff]
    %v891 = vld [vmem:[#allocation8 + $0xb8] sm:$0xff]
    %v892 = vld [vmem:[#allocation8 + $0xc0] sm:$0xff]
    %v893 = vld [vmem:[#allocation8 + $0xc8] sm:$0xff]
    %v894 = vld [vmem:[#allocation8 + $0xd0] sm:$0xff]
    %v895 = vld [vmem:[#allocation8 + $0xd8] sm:$0xff]
    %v896 = vld [vmem:[#allocation8 + $0xe0] sm:$0xff]
    %v897 = vld [vmem:[#allocation8 + $0xe8] sm:$0xff]
    %v898 = vld [vmem:[#allocation8 + $0xf0] sm:$0xff]
    %v899 = vld [vmem:[#allocation8 + $0xf8] sm:$0xff]
    %v900 = vld [vmem:[#allocation8 + $0x100] sm:$0xff]
    %v901 = vld [vmem:[#allocation8 + $0x108] sm:$0xff]
    %v902 = vld [vmem:[#allocation8 + $0x110] sm:$0xff]
    %v903 = vld [vmem:[#allocation8 + $0x118] sm:$0xff]
    %v904 = vld [vmem:[#allocation8 + $0x120] sm:$0xff]
    %v905 = vld [vmem:[#allocation8 + $0x128] sm:$0xff]
    %v906 = vld [vmem:[#allocation8 + $0x130] sm:$0xff]
    %v907 = vld [vmem:[#allocation8 + $0x138] sm:$0xff]
    %v908 = vld [vmem:[#allocation8 + $0x140] sm:$0xff]
    %v909 = vld [vmem:[#allocation8 + $0x148] sm:$0xff]
    %v910 = vld [vmem:[#allocation8 + $0x150] sm:$0xff]
    %v911 = vld [vmem:[#allocation8 + $0x158] sm:$0xff]
    %v912 = vld [vmem:[#allocation8 + $0x160] sm:$0xff]
    %v913 = vld [vmem:[#allocation8 + $0x168] sm:$0xff]
    %v914 = vld [vmem:[#allocation8 + $0x170] sm:$0xff]
    %v915 = vld [vmem:[#allocation8 + $0x178] sm:$0xff]
    %v916 = vld [vmem:[#allocation8 + $0x180] sm:$0xff]
    %v917 = vld [vmem:[#allocation8 + $0x188] sm:$0xff]
    %v918 = vld [vmem:[#allocation8 + $0x190] sm:$0xff]
    %v919 = vld [vmem:[#allocation8 + $0x198] sm:$0xff]
    %v920 = vld [vmem:[#allocation8 + $0x1a0] sm:$0xff]
    %v921 = vld [vmem:[#allocation8 + $0x1a8] sm:$0xff]
    %v922 = vld [vmem:[#allocation8 + $0x1b0] sm:$0xff]
    %v923 = vld [vmem:[#allocation8 + $0x1b8] sm:$0xff]
    %v924 = vld [vmem:[#allocation8 + $0x1c0] sm:$0xff]
    %v925 = vld [vmem:[#allocation8 + $0x1c8] sm:$0xff]
    %v926 = vld [vmem:[#allocation8 + $0x1d0] sm:$0xff]
    %v927 = vld [vmem:[#allocation8 + $0x1d8] sm:$0xff]
    %v928 = vld [vmem:[#allocation8 + $0x1e0] sm:$0xff]
    %v929 = vld [vmem:[#allocation8 + $0x1e8] sm:$0xff]
    %v930 = vld [vmem:[#allocation8 + $0x1f0] sm:$0xff]
    %v931 = vld [vmem:[#allocation8 + $0x1f8] sm:$0xff]
    %v932 = vld [vmem:[#allocation8 + $0x200] sm:$0xff]
    %v933 = vld [vmem:[#allocation8 + $0x208] sm:$0xff]
    %v934 = vld [vmem:[#allocation8 + $0x210] sm:$0xff]
    %v935 = vld [vmem:[#allocation8 + $0x218] sm:$0xff]
    %v936 = vld [vmem:[#allocation8 + $0x220] sm:$0xff]
    %v937 = vld [vmem:[#allocation8 + $0x228] sm:$0xff]
    %v938 = vld [vmem:[#allocation8 + $0x230] sm:$0xff]
    %v939 = vld [vmem:[#allocation8 + $0x238] sm:$0xff]
    %v940 = vld [vmem:[#allocation8 + $0x240] sm:$0xff]
    %v941 = vld [vmem:[#allocation8 + $0x248] sm:$0xff]
    %v942 = vld [vmem:[#allocation8 + $0x250] sm:$0xff]
    %v943 = vld [vmem:[#allocation8 + $0x258] sm:$0xff]
    %v944 = vld [vmem:[#allocation8 + $0x260] sm:$0xff]
    %v945 = vld [vmem:[#allocation8 + $0x268] sm:$0xff]
    %v946 = vld [vmem:[#allocation8 + $0x270] sm:$0xff]
    %v947 = vld [vmem:[#allocation8 + $0x278] sm:$0xff]
    %v948 = vld [vmem:[#allocation8 + $0x280] sm:$0xff]
    %v949 = vld [vmem:[#allocation8 + $0x288] sm:$0xff]
    %v950 = vld [vmem:[#allocation8 + $0x290] sm:$0xff]
    %v951 = vld [vmem:[#allocation8 + $0x298] sm:$0xff]
    %v952 = vld [vmem:[#allocation8 + $0x2a0] sm:$0xff]
    %v953 = vld [vmem:[#allocation8 + $0x2a8] sm:$0xff]
    %v954 = vld [vmem:[#allocation8 + $0x2b0] sm:$0xff]
    %v955 = vld [vmem:[#allocation8 + $0x2b8] sm:$0xff]
    %v956 = vld [vmem:[#allocation8 + $0x2c0] sm:$0xff]
    %v957 = vld [vmem:[#allocation8 + $0x2c8] sm:$0xff]
    %v958 = vld [vmem:[#allocation8 + $0x2d0] sm:$0xff]
    %v959 = vld [vmem:[#allocation8 + $0x2d8] sm:$0xff]
    %v960 = vld [vmem:[#allocation8 + $0x2e0] sm:$0xff]
    %v961 = vld [vmem:[#allocation8 + $0x2e8] sm:$0xff]
    %v962 = vld [vmem:[#allocation8 + $0x2f0] sm:$0xff]
    %v963 = vld [vmem:[#allocation8 + $0x2f8] sm:$0xff]
    %v964 = vld [vmem:[#allocation8 + $0x300] sm:$0xff]
    %v965 = vld [vmem:[#allocation8 + $0x308] sm:$0xff]
    %v966 = vld [vmem:[#allocation8 + $0x310] sm:$0xff]
    %v967 = vld [vmem:[#allocation8 + $0x318] sm:$0xff]
    %v968 = vld [vmem:[#allocation8 + $0x320] sm:$0xff]
    %v969 = vld [vmem:[#allocation8 + $0x328] sm:$0xff]
    %v970 = vld [vmem:[#allocation8 + $0x330] sm:$0xff]
    %v971 = vld [vmem:[#allocation8 + $0x338] sm:$0xff]
    %v972 = vld [vmem:[#allocation8 + $0x340] sm:$0xff]
    %v973 = vld [vmem:[#allocation8 + $0x348] sm:$0xff]
    %v974 = vld [vmem:[#allocation8 + $0x350] sm:$0xff]
    %v975 = vld [vmem:[#allocation8 + $0x358] sm:$0xff]
    %v976 = vld [vmem:[#allocation8 + $0x360] sm:$0xff]
    %v977 = vld [vmem:[#allocation8 + $0x368] sm:$0xff]
    %v978 = vld [vmem:[#allocation8 + $0x370] sm:$0xff]
    %v979 = vld [vmem:[#allocation8 + $0x378] sm:$0xff]
    %v980 = vld [vmem:[#allocation8 + $0x380] sm:$0xff]
    %v981 = vld [vmem:[#allocation8 + $0x388] sm:$0xff]
    %v982 = vld [vmem:[#allocation8 + $0x390] sm:$0xff]
    %v983 = vld [vmem:[#allocation8 + $0x398] sm:$0xff]
    %v984 = vld [vmem:[#allocation8 + $0x3a0] sm:$0xff]
    %v985 = vld [vmem:[#allocation8 + $0x3a8] sm:$0xff]
    %v986 = vld [vmem:[#allocation8 + $0x3b0] sm:$0xff]
    %v987 = vld [vmem:[#allocation8 + $0x3b8] sm:$0xff]
    %v988 = vld [vmem:[#allocation8 + $0x3c0] sm:$0xff]
    %v989 = vld [vmem:[#allocation8 + $0x3c8] sm:$0xff]
    %v990 = vld [vmem:[#allocation8 + $0x3d0] sm:$0xff]
    %v991 = vld [vmem:[#allocation8 + $0x3d8] sm:$0xff]
    %v992 = vld [vmem:[#allocation8 + $0x3e0] sm:$0xff]
    %v993 = vld [vmem:[#allocation8 + $0x3e8] sm:$0xff]
    %v994 = vld [vmem:[#allocation8 + $0x3f0] sm:$0xff]
    %v995 = vld [vmem:[#allocation8 + $0x3f8] sm:$0xff]
    %v996 = vld [vmem:[#allocation8 + $0x400] sm:$0xff]
    %v997 = vld [vmem:[#allocation8 + $0x408] sm:$0xff]
    %v998 = vld [vmem:[#allocation8 + $0x410] sm:$0xff]
    %v999 = vld [vmem:[#allocation8 + $0x418] sm:$0xff]
    %v1000 = vld [vmem:[#allocation8 + $0x420] sm:$0xff]
    %v1001 = vld [vmem:[#allocation8 + $0x428] sm:$0xff]
    %v1002 = vld [vmem:[#allocation8 + $0x430] sm:$0xff]
    %v1003 = vld [vmem:[#allocation8 + $0x438] sm:$0xff]
    %v1004 = vld [vmem:[#allocation8 + $0x440] sm:$0xff]
    %v1005 = vld [vmem:[#allocation8 + $0x448] sm:$0xff]
    %v1006 = vld [vmem:[#allocation8 + $0x450] sm:$0xff]
    %v1007 = vld [vmem:[#allocation8 + $0x458] sm:$0xff]
    %v1008 = vld [vmem:[#allocation8 + $0x460] sm:$0xff]
    %v1009 = vld [vmem:[#allocation8 + $0x468] sm:$0xff]
    %v1010 = vld [vmem:[#allocation8 + $0x470] sm:$0xff]
    %v1011 = vld [vmem:[#allocation8 + $0x478] sm:$0xff]
    %v1012 = vld [vmem:[#allocation8 + $0x480] sm:$0xff]
    %v1013 = vld [vmem:[#allocation8 + $0x488] sm:$0xff]
    %v1014 = vld [vmem:[#allocation8 + $0x490] sm:$0xff]
    %v1015 = vld [vmem:[#allocation8 + $0x498] sm:$0xff]
    %v1016 = vld [vmem:[#allocation8 + $0x4a0] sm:$0xff]
    %v1017 = vld [vmem:[#allocation8 + $0x4a8] sm:$0xff]
    %v1018 = vld [vmem:[#allocation8 + $0x4b0] sm:$0xff]
    %v1019 = vld [vmem:[#allocation8 + $0x4b8] sm:$0xff]
    %v1020 = vld [vmem:[#allocation8 + $0x4c0] sm:$0xff]
    %v1021 = vld [vmem:[#allocation8 + $0x4c8] sm:$0xff]
    %v1022 = vld [vmem:[#allocation8 + $0x4d0] sm:$0xff]
    %v1023 = vld [vmem:[#allocation8 + $0x4d8] sm:$0xff]
    %v1024 = vld [vmem:[#allocation8 + $0x4e0] sm:$0xff]
    %v1025 = vld [vmem:[#allocation8 + $0x4e8] sm:$0xff]
    %v1026 = vld [vmem:[#allocation8 + $0x4f0] sm:$0xff]
    %v1027 = vld [vmem:[#allocation8 + $0x4f8] sm:$0xff]
    %v1028 = vld [vmem:[#allocation8 + $0x500] sm:$0xff]
    %v1029 = vld [vmem:[#allocation8 + $0x508] sm:$0xff]
    %v1030 = vld [vmem:[#allocation8 + $0x510] sm:$0xff]
    %v1031 = vld [vmem:[#allocation8 + $0x518] sm:$0xff]
    %v1032 = vld [vmem:[#allocation8 + $0x520] sm:$0xff]
    %v1033 = vld [vmem:[#allocation8 + $0x528] sm:$0xff]
    %v1034 = vld [vmem:[#allocation8 + $0x530] sm:$0xff]
    %v1035 = vld [vmem:[#allocation8 + $0x538] sm:$0xff]
    %v1036 = vld [vmem:[#allocation8 + $0x540] sm:$0xff]
    %v1037 = vld [vmem:[#allocation8 + $0x548] sm:$0xff]
    %v1038 = vld [vmem:[#allocation8 + $0x550] sm:$0xff]
    %v1039 = vld [vmem:[#allocation8 + $0x558] sm:$0xff]
    %v1040 = vld [vmem:[#allocation8 + $0x560] sm:$0xff]
    %v1041 = vld [vmem:[#allocation8 + $0x568] sm:$0xff]
    %v1042 = vld [vmem:[#allocation8 + $0x570] sm:$0xff]
    %v1043 = vld [vmem:[#allocation8 + $0x578] sm:$0xff]
    %v1044 = vld [vmem:[#allocation8 + $0x580] sm:$0xff]
    %v1045 = vld [vmem:[#allocation8 + $0x588] sm:$0xff]
    %v1046 = vld [vmem:[#allocation8 + $0x590] sm:$0xff]
    %v1047 = vld [vmem:[#allocation8 + $0x598] sm:$0xff]
    %v1048 = vld [vmem:[#allocation8 + $0x5a0] sm:$0xff]
    %v1049 = vld [vmem:[#allocation8 + $0x5a8] sm:$0xff]
    %v1050 = vld [vmem:[#allocation8 + $0x5b0] sm:$0xff]
    %v1051 = vld [vmem:[#allocation8 + $0x5b8] sm:$0xff]
    %v1052 = vld [vmem:[#allocation8 + $0x5c0] sm:$0xff]
    %v1053 = vld [vmem:[#allocation8 + $0x5c8] sm:$0xff]
    %v1054 = vld [vmem:[#allocation8 + $0x5d0] sm:$0xff]
    %v1055 = vld [vmem:[#allocation8 + $0x5d8] sm:$0xff]
    %v1056 = vld [vmem:[#allocation8 + $0x5e0] sm:$0xff]
    %v1057 = vld [vmem:[#allocation8 + $0x5e8] sm:$0xff]
    %v1058 = vld [vmem:[#allocation8 + $0x5f0] sm:$0xff]
    %v1059 = vld [vmem:[#allocation8 + $0x5f8] sm:$0xff]
    %v1060 = vld [vmem:[#allocation8 + $0x600] sm:$0xff]
    %v1061 = vld [vmem:[#allocation8 + $0x608] sm:$0xff]
    %v1062 = vld [vmem:[#allocation8 + $0x610] sm:$0xff]
    %v1063 = vld [vmem:[#allocation8 + $0x618] sm:$0xff]
    %v1064 = vld [vmem:[#allocation8 + $0x620] sm:$0xff]
    %v1065 = vld [vmem:[#allocation8 + $0x628] sm:$0xff]
    %v1066 = vld [vmem:[#allocation8 + $0x630] sm:$0xff]
    %v1067 = vld [vmem:[#allocation8 + $0x638] sm:$0xff]
    %v1068 = vld [vmem:[#allocation8 + $0x640] sm:$0xff]
    %v1069 = vld [vmem:[#allocation8 + $0x648] sm:$0xff]
    %v1070 = vld [vmem:[#allocation8 + $0x650] sm:$0xff]
    %v1071 = vld [vmem:[#allocation8 + $0x658] sm:$0xff]
    %v1072 = vld [vmem:[#allocation8 + $0x660] sm:$0xff]
    %v1073 = vld [vmem:[#allocation8 + $0x668] sm:$0xff]
    %v1074 = vld [vmem:[#allocation8 + $0x670] sm:$0xff]
    %v1075 = vld [vmem:[#allocation8 + $0x678] sm:$0xff]
    %v1076 = vld [vmem:[#allocation8 + $0x680] sm:$0xff]
    %v1077 = vld [vmem:[#allocation8 + $0x688] sm:$0xff]
    %v1078 = vld [vmem:[#allocation8 + $0x690] sm:$0xff]
    %v1079 = vld [vmem:[#allocation8 + $0x698] sm:$0xff]
    %v1080 = vld [vmem:[#allocation8 + $0x6a0] sm:$0xff]
    %v1081 = vld [vmem:[#allocation8 + $0x6a8] sm:$0xff]
    %v1082 = vld [vmem:[#allocation8 + $0x6b0] sm:$0xff]
    %v1083 = vld [vmem:[#allocation8 + $0x6b8] sm:$0xff]
    %v1084 = vld [vmem:[#allocation8 + $0x6c0] sm:$0xff]
    %v1085 = vld [vmem:[#allocation8 + $0x6c8] sm:$0xff]
    %v1086 = vld [vmem:[#allocation8 + $0x6d0] sm:$0xff]
    %v1087 = vld [vmem:[#allocation8 + $0x6d8] sm:$0xff]
    %v1088 = vld [vmem:[#allocation8 + $0x6e0] sm:$0xff]
    %v1089 = vld [vmem:[#allocation8 + $0x6e8] sm:$0xff]
    %v1090 = vld [vmem:[#allocation8 + $0x6f0] sm:$0xff]
    %v1091 = vld [vmem:[#allocation8 + $0x6f8] sm:$0xff]
    %v1092 = vld [vmem:[#allocation8 + $0x700] sm:$0xff]
    %v1093 = vld [vmem:[#allocation8 + $0x708] sm:$0xff]
    %v1094 = vld [vmem:[#allocation8 + $0x710] sm:$0xff]
    %v1095 = vld [vmem:[#allocation8 + $0x718] sm:$0xff]
    %v1096 = vld [vmem:[#allocation8 + $0x720] sm:$0xff]
    %v1097 = vld [vmem:[#allocation8 + $0x728] sm:$0xff]
    %v1098 = vld [vmem:[#allocation8 + $0x730] sm:$0xff]
    %v1099 = vld [vmem:[#allocation8 + $0x738] sm:$0xff]
    %v1100 = vld [vmem:[#allocation8 + $0x740] sm:$0xff]
    %v1101 = vld [vmem:[#allocation8 + $0x748] sm:$0xff]
    %v1102 = vld [vmem:[#allocation8 + $0x750] sm:$0xff]
    %v1103 = vld [vmem:[#allocation8 + $0x758] sm:$0xff]
    %v1104 = vld [vmem:[#allocation8 + $0x760] sm:$0xff]
    %v1105 = vld [vmem:[#allocation8 + $0x768] sm:$0xff]
    %v1106 = vld [vmem:[#allocation8 + $0x770] sm:$0xff]
    %v1107 = vld [vmem:[#allocation8 + $0x778] sm:$0xff]
    %v1108 = vld [vmem:[#allocation8 + $0x780] sm:$0xff]
    %v1109 = vld [vmem:[#allocation8 + $0x788] sm:$0xff]
    %v1110 = vld [vmem:[#allocation8 + $0x790] sm:$0xff]
    %v1111 = vld [vmem:[#allocation8 + $0x798] sm:$0xff]
    %v1112 = vld [vmem:[#allocation8 + $0x7a0] sm:$0xff]
    %v1113 = vld [vmem:[#allocation8 + $0x7a8] sm:$0xff]
    %v1114 = vld [vmem:[#allocation8 + $0x7b0] sm:$0xff]
    %v1115 = vld [vmem:[#allocation8 + $0x7b8] sm:$0xff]
    %v1116 = vld [vmem:[#allocation8 + $0x7c0] sm:$0xff]
    %v1117 = vld [vmem:[#allocation8 + $0x7c8] sm:$0xff]
    %v1118 = vld [vmem:[#allocation8 + $0x7d0] sm:$0xff]
    %v1119 = vld [vmem:[#allocation8 + $0x7d8] sm:$0xff]
    %v1120 = vld [vmem:[#allocation8 + $0x7e0] sm:$0xff]
    %v1121 = vld [vmem:[#allocation8 + $0x7e8] sm:$0xff]
    %v1122 = vld [vmem:[#allocation8 + $0x7f0] sm:$0xff]
    %v1123 = vld [vmem:[#allocation8 + $0x7f8] sm:$0xff]
    %v1124 = vld [vmem:[%s5] sm:$0xff]
    %v1126 = vlaneseq
    %v1127 = vshrl.u32 %v1126, 7
    %v1128 = vsub.s32 0, %v1127
    %v1129 = vrot.slane %v1124, %v1128
    %v1130 = vlaneseq
    %v1131 = vshrl.u32 %v1130, 7
    %v1132 = vsub.s32 1, %v1131
    %v1133 = vrot.slane %v1124, %v1132
    %v1134 = vlaneseq
    %v1135 = vshrl.u32 %v1134, 7
    %v1136 = vsub.s32 2, %v1135
    %v1137 = vrot.slane %v1124, %v1136
    %v1138 = vlaneseq
    %v1139 = vshrl.u32 %v1138, 7
    %v1140 = vsub.s32 3, %v1139
    %v1141 = vrot.slane %v1124, %v1140
    %v1142 = vlaneseq
    %v1143 = vshrl.u32 %v1142, 7
    %v1144 = vsub.s32 4, %v1143
    %v1145 = vrot.slane %v1124, %v1144
    %v1146 = vlaneseq
    %v1147 = vshrl.u32 %v1146, 7
    %v1148 = vsub.s32 5, %v1147
    %v1149 = vrot.slane %v1124, %v1148
    %v1150 = vlaneseq
    %v1151 = vshrl.u32 %v1150, 7
    %v1152 = vsub.s32 6, %v1151
    %v1153 = vrot.slane %v1124, %v1152
    %v1154 = vlaneseq
    %v1155 = vshrl.u32 %v1154, 7
    %v1156 = vsub.s32 7, %v1155
    %v1157 = vrot.slane %v1124, %v1156
    %v1422 = vunpack.c.l.b16 %v868
    %v1423 = vunpack.c.h.b16 %v868
    %v1424 = vunpack.c.l.b16 %v869
    %v1425 = vunpack.c.h.b16 %v869
    %v1426 = vunpack.c.l.b16 %v870
    %v1427 = vunpack.c.h.b16 %v870
    %v1428 = vunpack.c.l.b16 %v871
    %v1429 = vunpack.c.h.b16 %v871
    %v1430 = vunpack.c.l.b16 %v872
    %v1431 = vunpack.c.h.b16 %v872
    %v1432 = vunpack.c.l.b16 %v873
    %v1433 = vunpack.c.h.b16 %v873
    %v1434 = vunpack.c.l.b16 %v874
    %v1435 = vunpack.c.h.b16 %v874
    %v1436 = vunpack.c.l.b16 %v875
    %v1437 = vunpack.c.h.b16 %v875
    %v1438 = vunpack.c.l.b16 %v876
    %v1439 = vunpack.c.h.b16 %v876
    %v1440 = vunpack.c.l.b16 %v877
    %v1441 = vunpack.c.h.b16 %v877
    %v1442 = vunpack.c.l.b16 %v878
    %v1443 = vunpack.c.h.b16 %v878
    %v1444 = vunpack.c.l.b16 %v879
    %v1445 = vunpack.c.h.b16 %v879
    %v1446 = vunpack.c.l.b16 %v880
    %v1447 = vunpack.c.h.b16 %v880
    %v1448 = vunpack.c.l.b16 %v881
    %v1449 = vunpack.c.h.b16 %v881
    %v1450 = vunpack.c.l.b16 %v882
    %v1451 = vunpack.c.h.b16 %v882
    %v1452 = vunpack.c.l.b16 %v883
    %v1453 = vunpack.c.h.b16 %v883
    %v1454 = vunpack.c.l.b16 %v884
    %v1455 = vunpack.c.h.b16 %v884
    %v1456 = vunpack.c.l.b16 %v885
    %v1457 = vunpack.c.h.b16 %v885
    %v1458 = vunpack.c.l.b16 %v886
    %v1459 = vunpack.c.h.b16 %v886
    %v1460 = vunpack.c.l.b16 %v887
    %v1461 = vunpack.c.h.b16 %v887
    %v1462 = vunpack.c.l.b16 %v888
    %v1463 = vunpack.c.h.b16 %v888
    %v1464 = vunpack.c.l.b16 %v889
    %v1465 = vunpack.c.h.b16 %v889
    %v1466 = vunpack.c.l.b16 %v890
    %v1467 = vunpack.c.h.b16 %v890
    %v1468 = vunpack.c.l.b16 %v891
    %v1469 = vunpack.c.h.b16 %v891
    %v1470 = vunpack.c.l.b16 %v892
    %v1471 = vunpack.c.h.b16 %v892
    %v1472 = vunpack.c.l.b16 %v893
    %v1473 = vunpack.c.h.b16 %v893
    %v1474 = vunpack.c.l.b16 %v894
    %v1475 = vunpack.c.h.b16 %v894
    %v1476 = vunpack.c.l.b16 %v895
    %v1477 = vunpack.c.h.b16 %v895
    %v1478 = vunpack.c.l.b16 %v896
    %v1479 = vunpack.c.h.b16 %v896
    %v1480 = vunpack.c.l.b16 %v897
    %v1481 = vunpack.c.h.b16 %v897
    %v1482 = vunpack.c.l.b16 %v898
    %v1483 = vunpack.c.h.b16 %v898
    %v1484 = vunpack.c.l.b16 %v899
    %v1485 = vunpack.c.h.b16 %v899
    %v1486 = vunpack.c.l.b16 %v900
    %v1487 = vunpack.c.h.b16 %v900
    %v1488 = vunpack.c.l.b16 %v901
    %v1489 = vunpack.c.h.b16 %v901
    %v1490 = vunpack.c.l.b16 %v902
    %v1491 = vunpack.c.h.b16 %v902
    %v1492 = vunpack.c.l.b16 %v903
    %v1493 = vunpack.c.h.b16 %v903
    %v1494 = vunpack.c.l.b16 %v904
    %v1495 = vunpack.c.h.b16 %v904
    %v1496 = vunpack.c.l.b16 %v905
    %v1497 = vunpack.c.h.b16 %v905
    %v1498 = vunpack.c.l.b16 %v906
    %v1499 = vunpack.c.h.b16 %v906
    %v1500 = vunpack.c.l.b16 %v907
    %v1501 = vunpack.c.h.b16 %v907
    %v1502 = vunpack.c.l.b16 %v908
    %v1503 = vunpack.c.h.b16 %v908
    %v1504 = vunpack.c.l.b16 %v909
    %v1505 = vunpack.c.h.b16 %v909
    %v1506 = vunpack.c.l.b16 %v910
    %v1507 = vunpack.c.h.b16 %v910
    %v1508 = vunpack.c.l.b16 %v911
    %v1509 = vunpack.c.h.b16 %v911
    %v1510 = vunpack.c.l.b16 %v912
    %v1511 = vunpack.c.h.b16 %v912
    %v1512 = vunpack.c.l.b16 %v913
    %v1513 = vunpack.c.h.b16 %v913
    %v1514 = vunpack.c.l.b16 %v914
    %v1515 = vunpack.c.h.b16 %v914
    %v1516 = vunpack.c.l.b16 %v915
    %v1517 = vunpack.c.h.b16 %v915
    %v1518 = vunpack.c.l.b16 %v916
    %v1519 = vunpack.c.h.b16 %v916
    %v1520 = vunpack.c.l.b16 %v917
    %v1521 = vunpack.c.h.b16 %v917
    %v1522 = vunpack.c.l.b16 %v918
    %v1523 = vunpack.c.h.b16 %v918
    %v1524 = vunpack.c.l.b16 %v919
    %v1525 = vunpack.c.h.b16 %v919
    %v1526 = vunpack.c.l.b16 %v920
    %v1527 = vunpack.c.h.b16 %v920
    %v1528 = vunpack.c.l.b16 %v921
    %v1529 = vunpack.c.h.b16 %v921
    %v1530 = vunpack.c.l.b16 %v922
    %v1531 = vunpack.c.h.b16 %v922
    %v1532 = vunpack.c.l.b16 %v923
    %v1533 = vunpack.c.h.b16 %v923
    %v1534 = vunpack.c.l.b16 %v924
    %v1535 = vunpack.c.h.b16 %v924
    %v1536 = vunpack.c.l.b16 %v925
    %v1537 = vunpack.c.h.b16 %v925
    %v1538 = vunpack.c.l.b16 %v926
    %v1539 = vunpack.c.h.b16 %v926
    %v1540 = vunpack.c.l.b16 %v927
    %v1541 = vunpack.c.h.b16 %v927
    %v1542 = vunpack.c.l.b16 %v928
    %v1543 = vunpack.c.h.b16 %v928
    %v1544 = vunpack.c.l.b16 %v929
    %v1545 = vunpack.c.h.b16 %v929
    %v1546 = vunpack.c.l.b16 %v930
    %v1547 = vunpack.c.h.b16 %v930
    %v1548 = vunpack.c.l.b16 %v931
    %v1549 = vunpack.c.h.b16 %v931
    %v1550 = vunpack.c.l.b16 %v932
    %v1551 = vunpack.c.h.b16 %v932
    %v1552 = vunpack.c.l.b16 %v933
    %v1553 = vunpack.c.h.b16 %v933
    %v1554 = vunpack.c.l.b16 %v934
    %v1555 = vunpack.c.h.b16 %v934
    %v1556 = vunpack.c.l.b16 %v935
    %v1557 = vunpack.c.h.b16 %v935
    %v1558 = vunpack.c.l.b16 %v936
    %v1559 = vunpack.c.h.b16 %v936
    %v1560 = vunpack.c.l.b16 %v937
    %v1561 = vunpack.c.h.b16 %v937
    %v1562 = vunpack.c.l.b16 %v938
    %v1563 = vunpack.c.h.b16 %v938
    %v1564 = vunpack.c.l.b16 %v939
    %v1565 = vunpack.c.h.b16 %v939
    %v1566 = vunpack.c.l.b16 %v940
    %v1567 = vunpack.c.h.b16 %v940
    %v1568 = vunpack.c.l.b16 %v941
    %v1569 = vunpack.c.h.b16 %v941
    %v1570 = vunpack.c.l.b16 %v942
    %v1571 = vunpack.c.h.b16 %v942
    %v1572 = vunpack.c.l.b16 %v943
    %v1573 = vunpack.c.h.b16 %v943
    %v1574 = vunpack.c.l.b16 %v944
    %v1575 = vunpack.c.h.b16 %v944
    %v1576 = vunpack.c.l.b16 %v945
    %v1577 = vunpack.c.h.b16 %v945
    %v1578 = vunpack.c.l.b16 %v946
    %v1579 = vunpack.c.h.b16 %v946
    %v1580 = vunpack.c.l.b16 %v947
    %v1581 = vunpack.c.h.b16 %v947
    %v1582 = vunpack.c.l.b16 %v948
    %v1583 = vunpack.c.h.b16 %v948
    %v1584 = vunpack.c.l.b16 %v949
    %v1585 = vunpack.c.h.b16 %v949
    %v1586 = vunpack.c.l.b16 %v950
    %v1587 = vunpack.c.h.b16 %v950
    %v1588 = vunpack.c.l.b16 %v951
    %v1589 = vunpack.c.h.b16 %v951
    %v1590 = vunpack.c.l.b16 %v952
    %v1591 = vunpack.c.h.b16 %v952
    %v1592 = vunpack.c.l.b16 %v953
    %v1593 = vunpack.c.h.b16 %v953
    %v1594 = vunpack.c.l.b16 %v954
    %v1595 = vunpack.c.h.b16 %v954
    %v1596 = vunpack.c.l.b16 %v955
    %v1597 = vunpack.c.h.b16 %v955
    %v1598 = vunpack.c.l.b16 %v956
    %v1599 = vunpack.c.h.b16 %v956
    %v1600 = vunpack.c.l.b16 %v957
    %v1601 = vunpack.c.h.b16 %v957
    %v1602 = vunpack.c.l.b16 %v958
    %v1603 = vunpack.c.h.b16 %v958
    %v1604 = vunpack.c.l.b16 %v959
    %v1605 = vunpack.c.h.b16 %v959
    %v1606 = vunpack.c.l.b16 %v960
    %v1607 = vunpack.c.h.b16 %v960
    %v1608 = vunpack.c.l.b16 %v961
    %v1609 = vunpack.c.h.b16 %v961
    %v1610 = vunpack.c.l.b16 %v962
    %v1611 = vunpack.c.h.b16 %v962
    %v1612 = vunpack.c.l.b16 %v963
    %v1613 = vunpack.c.h.b16 %v963
    %v1614 = vunpack.c.l.b16 %v964
    %v1615 = vunpack.c.h.b16 %v964
    %v1616 = vunpack.c.l.b16 %v965
    %v1617 = vunpack.c.h.b16 %v965
    %v1618 = vunpack.c.l.b16 %v966
    %v1619 = vunpack.c.h.b16 %v966
    %v1620 = vunpack.c.l.b16 %v967
    %v1621 = vunpack.c.h.b16 %v967
    %v1622 = vunpack.c.l.b16 %v968
    %v1623 = vunpack.c.h.b16 %v968
    %v1624 = vunpack.c.l.b16 %v969
    %v1625 = vunpack.c.h.b16 %v969
    %v1626 = vunpack.c.l.b16 %v970
    %v1627 = vunpack.c.h.b16 %v970
    %v1628 = vunpack.c.l.b16 %v971
    %v1629 = vunpack.c.h.b16 %v971
    %v1630 = vunpack.c.l.b16 %v972
    %v1631 = vunpack.c.h.b16 %v972
    %v1632 = vunpack.c.l.b16 %v973
    %v1633 = vunpack.c.h.b16 %v973
    %v1634 = vunpack.c.l.b16 %v974
    %v1635 = vunpack.c.h.b16 %v974
    %v1636 = vunpack.c.l.b16 %v975
    %v1637 = vunpack.c.h.b16 %v975
    %v1638 = vunpack.c.l.b16 %v976
    %v1639 = vunpack.c.h.b16 %v976
    %v1640 = vunpack.c.l.b16 %v977
    %v1641 = vunpack.c.h.b16 %v977
    %v1642 = vunpack.c.l.b16 %v978
    %v1643 = vunpack.c.h.b16 %v978
    %v1644 = vunpack.c.l.b16 %v979
    %v1645 = vunpack.c.h.b16 %v979
    %v1646 = vunpack.c.l.b16 %v980
    %v1647 = vunpack.c.h.b16 %v980
    %v1648 = vunpack.c.l.b16 %v981
    %v1649 = vunpack.c.h.b16 %v981
    %v1650 = vunpack.c.l.b16 %v982
    %v1651 = vunpack.c.h.b16 %v982
    %v1652 = vunpack.c.l.b16 %v983
    %v1653 = vunpack.c.h.b16 %v983
    %v1654 = vunpack.c.l.b16 %v984
    %v1655 = vunpack.c.h.b16 %v984
    %v1656 = vunpack.c.l.b16 %v985
    %v1657 = vunpack.c.h.b16 %v985
    %v1658 = vunpack.c.l.b16 %v986
    %v1659 = vunpack.c.h.b16 %v986
    %v1660 = vunpack.c.l.b16 %v987
    %v1661 = vunpack.c.h.b16 %v987
    %v1662 = vunpack.c.l.b16 %v988
    %v1663 = vunpack.c.h.b16 %v988
    %v1664 = vunpack.c.l.b16 %v989
    %v1665 = vunpack.c.h.b16 %v989
    %v1666 = vunpack.c.l.b16 %v990
    %v1667 = vunpack.c.h.b16 %v990
    %v1668 = vunpack.c.l.b16 %v991
    %v1669 = vunpack.c.h.b16 %v991
    %v1670 = vunpack.c.l.b16 %v992
    %v1671 = vunpack.c.h.b16 %v992
    %v1672 = vunpack.c.l.b16 %v993
    %v1673 = vunpack.c.h.b16 %v993
    %v1674 = vunpack.c.l.b16 %v994
    %v1675 = vunpack.c.h.b16 %v994
    %v1676 = vunpack.c.l.b16 %v995
    %v1677 = vunpack.c.h.b16 %v995
    %v1678 = vunpack.c.l.b16 %v996
    %v1679 = vunpack.c.h.b16 %v996
    %v1680 = vunpack.c.l.b16 %v997
    %v1681 = vunpack.c.h.b16 %v997
    %v1682 = vunpack.c.l.b16 %v998
    %v1683 = vunpack.c.h.b16 %v998
    %v1684 = vunpack.c.l.b16 %v999
    %v1685 = vunpack.c.h.b16 %v999
    %v1686 = vunpack.c.l.b16 %v1000
    %v1687 = vunpack.c.h.b16 %v1000
    %v1688 = vunpack.c.l.b16 %v1001
    %v1689 = vunpack.c.h.b16 %v1001
    %v1690 = vunpack.c.l.b16 %v1002
    %v1691 = vunpack.c.h.b16 %v1002
    %v1692 = vunpack.c.l.b16 %v1003
    %v1693 = vunpack.c.h.b16 %v1003
    %v1694 = vunpack.c.l.b16 %v1004
    %v1695 = vunpack.c.h.b16 %v1004
    %v1696 = vunpack.c.l.b16 %v1005
    %v1697 = vunpack.c.h.b16 %v1005
    %v1698 = vunpack.c.l.b16 %v1006
    %v1699 = vunpack.c.h.b16 %v1006
    %v1700 = vunpack.c.l.b16 %v1007
    %v1701 = vunpack.c.h.b16 %v1007
    %v1702 = vunpack.c.l.b16 %v1008
    %v1703 = vunpack.c.h.b16 %v1008
    %v1704 = vunpack.c.l.b16 %v1009
    %v1705 = vunpack.c.h.b16 %v1009
    %v1706 = vunpack.c.l.b16 %v1010
    %v1707 = vunpack.c.h.b16 %v1010
    %v1708 = vunpack.c.l.b16 %v1011
    %v1709 = vunpack.c.h.b16 %v1011
    %v1710 = vunpack.c.l.b16 %v1012
    %v1711 = vunpack.c.h.b16 %v1012
    %v1712 = vunpack.c.l.b16 %v1013
    %v1713 = vunpack.c.h.b16 %v1013
    %v1714 = vunpack.c.l.b16 %v1014
    %v1715 = vunpack.c.h.b16 %v1014
    %v1716 = vunpack.c.l.b16 %v1015
    %v1717 = vunpack.c.h.b16 %v1015
    %v1718 = vunpack.c.l.b16 %v1016
    %v1719 = vunpack.c.h.b16 %v1016
    %v1720 = vunpack.c.l.b16 %v1017
    %v1721 = vunpack.c.h.b16 %v1017
    %v1722 = vunpack.c.l.b16 %v1018
    %v1723 = vunpack.c.h.b16 %v1018
    %v1724 = vunpack.c.l.b16 %v1019
    %v1725 = vunpack.c.h.b16 %v1019
    %v1726 = vunpack.c.l.b16 %v1020
    %v1727 = vunpack.c.h.b16 %v1020
    %v1728 = vunpack.c.l.b16 %v1021
    %v1729 = vunpack.c.h.b16 %v1021
    %v1730 = vunpack.c.l.b16 %v1022
    %v1731 = vunpack.c.h.b16 %v1022
    %v1732 = vunpack.c.l.b16 %v1023
    %v1733 = vunpack.c.h.b16 %v1023
    %v1734 = vunpack.c.l.b16 %v1024
    %v1735 = vunpack.c.h.b16 %v1024
    %v1736 = vunpack.c.l.b16 %v1025
    %v1737 = vunpack.c.h.b16 %v1025
    %v1738 = vunpack.c.l.b16 %v1026
    %v1739 = vunpack.c.h.b16 %v1026
    %v1740 = vunpack.c.l.b16 %v1027
    %v1741 = vunpack.c.h.b16 %v1027
    %v1742 = vunpack.c.l.b16 %v1028
    %v1743 = vunpack.c.h.b16 %v1028
    %v1744 = vunpack.c.l.b16 %v1029
    %v1745 = vunpack.c.h.b16 %v1029
    %v1746 = vunpack.c.l.b16 %v1030
    %v1747 = vunpack.c.h.b16 %v1030
    %v1748 = vunpack.c.l.b16 %v1031
    %v1749 = vunpack.c.h.b16 %v1031
    %v1750 = vunpack.c.l.b16 %v1032
    %v1751 = vunpack.c.h.b16 %v1032
    %v1752 = vunpack.c.l.b16 %v1033
    %v1753 = vunpack.c.h.b16 %v1033
    %v1754 = vunpack.c.l.b16 %v1034
    %v1755 = vunpack.c.h.b16 %v1034
    %v1756 = vunpack.c.l.b16 %v1035
    %v1757 = vunpack.c.h.b16 %v1035
    %v1758 = vunpack.c.l.b16 %v1036
    %v1759 = vunpack.c.h.b16 %v1036
    %v1760 = vunpack.c.l.b16 %v1037
    %v1761 = vunpack.c.h.b16 %v1037
    %v1762 = vunpack.c.l.b16 %v1038
    %v1763 = vunpack.c.h.b16 %v1038
    %v1764 = vunpack.c.l.b16 %v1039
    %v1765 = vunpack.c.h.b16 %v1039
    %v1766 = vunpack.c.l.b16 %v1040
    %v1767 = vunpack.c.h.b16 %v1040
    %v1768 = vunpack.c.l.b16 %v1041
    %v1769 = vunpack.c.h.b16 %v1041
    %v1770 = vunpack.c.l.b16 %v1042
    %v1771 = vunpack.c.h.b16 %v1042
    %v1772 = vunpack.c.l.b16 %v1043
    %v1773 = vunpack.c.h.b16 %v1043
    %v1774 = vunpack.c.l.b16 %v1044
    %v1775 = vunpack.c.h.b16 %v1044
    %v1776 = vunpack.c.l.b16 %v1045
    %v1777 = vunpack.c.h.b16 %v1045
    %v1778 = vunpack.c.l.b16 %v1046
    %v1779 = vunpack.c.h.b16 %v1046
    %v1780 = vunpack.c.l.b16 %v1047
    %v1781 = vunpack.c.h.b16 %v1047
    %v1782 = vunpack.c.l.b16 %v1048
    %v1783 = vunpack.c.h.b16 %v1048
    %v1784 = vunpack.c.l.b16 %v1049
    %v1785 = vunpack.c.h.b16 %v1049
    %v1786 = vunpack.c.l.b16 %v1050
    %v1787 = vunpack.c.h.b16 %v1050
    %v1788 = vunpack.c.l.b16 %v1051
    %v1789 = vunpack.c.h.b16 %v1051
    %v1790 = vunpack.c.l.b16 %v1052
    %v1791 = vunpack.c.h.b16 %v1052
    %v1792 = vunpack.c.l.b16 %v1053
    %v1793 = vunpack.c.h.b16 %v1053
    %v1794 = vunpack.c.l.b16 %v1054
    %v1795 = vunpack.c.h.b16 %v1054
    %v1796 = vunpack.c.l.b16 %v1055
    %v1797 = vunpack.c.h.b16 %v1055
    %v1798 = vunpack.c.l.b16 %v1056
    %v1799 = vunpack.c.h.b16 %v1056
    %v1800 = vunpack.c.l.b16 %v1057
    %v1801 = vunpack.c.h.b16 %v1057
    %v1802 = vunpack.c.l.b16 %v1058
    %v1803 = vunpack.c.h.b16 %v1058
    %v1804 = vunpack.c.l.b16 %v1059
    %v1805 = vunpack.c.h.b16 %v1059
    %v1806 = vunpack.c.l.b16 %v1060
    %v1807 = vunpack.c.h.b16 %v1060
    %v1808 = vunpack.c.l.b16 %v1061
    %v1809 = vunpack.c.h.b16 %v1061
    %v1810 = vunpack.c.l.b16 %v1062
    %v1811 = vunpack.c.h.b16 %v1062
    %v1812 = vunpack.c.l.b16 %v1063
    %v1813 = vunpack.c.h.b16 %v1063
    %v1814 = vunpack.c.l.b16 %v1064
    %v1815 = vunpack.c.h.b16 %v1064
    %v1816 = vunpack.c.l.b16 %v1065
    %v1817 = vunpack.c.h.b16 %v1065
    %v1818 = vunpack.c.l.b16 %v1066
    %v1819 = vunpack.c.h.b16 %v1066
    %v1820 = vunpack.c.l.b16 %v1067
    %v1821 = vunpack.c.h.b16 %v1067
    %v1822 = vunpack.c.l.b16 %v1068
    %v1823 = vunpack.c.h.b16 %v1068
    %v1824 = vunpack.c.l.b16 %v1069
    %v1825 = vunpack.c.h.b16 %v1069
    %v1826 = vunpack.c.l.b16 %v1070
    %v1827 = vunpack.c.h.b16 %v1070
    %v1828 = vunpack.c.l.b16 %v1071
    %v1829 = vunpack.c.h.b16 %v1071
    %v1830 = vunpack.c.l.b16 %v1072
    %v1831 = vunpack.c.h.b16 %v1072
    %v1832 = vunpack.c.l.b16 %v1073
    %v1833 = vunpack.c.h.b16 %v1073
    %v1834 = vunpack.c.l.b16 %v1074
    %v1835 = vunpack.c.h.b16 %v1074
    %v1836 = vunpack.c.l.b16 %v1075
    %v1837 = vunpack.c.h.b16 %v1075
    %v1838 = vunpack.c.l.b16 %v1076
    %v1839 = vunpack.c.h.b16 %v1076
    %v1840 = vunpack.c.l.b16 %v1077
    %v1841 = vunpack.c.h.b16 %v1077
    %v1842 = vunpack.c.l.b16 %v1078
    %v1843 = vunpack.c.h.b16 %v1078
    %v1844 = vunpack.c.l.b16 %v1079
    %v1845 = vunpack.c.h.b16 %v1079
    %v1846 = vunpack.c.l.b16 %v1080
    %v1847 = vunpack.c.h.b16 %v1080
    %v1848 = vunpack.c.l.b16 %v1081
    %v1849 = vunpack.c.h.b16 %v1081
    %v1850 = vunpack.c.l.b16 %v1082
    %v1851 = vunpack.c.h.b16 %v1082
    %v1852 = vunpack.c.l.b16 %v1083
    %v1853 = vunpack.c.h.b16 %v1083
    %v1854 = vunpack.c.l.b16 %v1084
    %v1855 = vunpack.c.h.b16 %v1084
    %v1856 = vunpack.c.l.b16 %v1085
    %v1857 = vunpack.c.h.b16 %v1085
    %v1858 = vunpack.c.l.b16 %v1086
    %v1859 = vunpack.c.h.b16 %v1086
    %v1860 = vunpack.c.l.b16 %v1087
    %v1861 = vunpack.c.h.b16 %v1087
    %v1862 = vunpack.c.l.b16 %v1088
    %v1863 = vunpack.c.h.b16 %v1088
    %v1864 = vunpack.c.l.b16 %v1089
    %v1865 = vunpack.c.h.b16 %v1089
    %v1866 = vunpack.c.l.b16 %v1090
    %v1867 = vunpack.c.h.b16 %v1090
    %v1868 = vunpack.c.l.b16 %v1091
    %v1869 = vunpack.c.h.b16 %v1091
    %v1870 = vunpack.c.l.b16 %v1092
    %v1871 = vunpack.c.h.b16 %v1092
    %v1872 = vunpack.c.l.b16 %v1093
    %v1873 = vunpack.c.h.b16 %v1093
    %v1874 = vunpack.c.l.b16 %v1094
    %v1875 = vunpack.c.h.b16 %v1094
    %v1876 = vunpack.c.l.b16 %v1095
    %v1877 = vunpack.c.h.b16 %v1095
    %v1878 = vunpack.c.l.b16 %v1096
    %v1879 = vunpack.c.h.b16 %v1096
    %v1880 = vunpack.c.l.b16 %v1097
    %v1881 = vunpack.c.h.b16 %v1097
    %v1882 = vunpack.c.l.b16 %v1098
    %v1883 = vunpack.c.h.b16 %v1098
    %v1884 = vunpack.c.l.b16 %v1099
    %v1885 = vunpack.c.h.b16 %v1099
    %v1886 = vunpack.c.l.b16 %v1100
    %v1887 = vunpack.c.h.b16 %v1100
    %v1888 = vunpack.c.l.b16 %v1101
    %v1889 = vunpack.c.h.b16 %v1101
    %v1890 = vunpack.c.l.b16 %v1102
    %v1891 = vunpack.c.h.b16 %v1102
    %v1892 = vunpack.c.l.b16 %v1103
    %v1893 = vunpack.c.h.b16 %v1103
    %v1894 = vunpack.c.l.b16 %v1104
    %v1895 = vunpack.c.h.b16 %v1104
    %v1896 = vunpack.c.l.b16 %v1105
    %v1897 = vunpack.c.h.b16 %v1105
    %v1898 = vunpack.c.l.b16 %v1106
    %v1899 = vunpack.c.h.b16 %v1106
    %v1900 = vunpack.c.l.b16 %v1107
    %v1901 = vunpack.c.h.b16 %v1107
    %v1902 = vunpack.c.l.b16 %v1108
    %v1903 = vunpack.c.h.b16 %v1108
    %v1904 = vunpack.c.l.b16 %v1109
    %v1905 = vunpack.c.h.b16 %v1109
    %v1906 = vunpack.c.l.b16 %v1110
    %v1907 = vunpack.c.h.b16 %v1110
    %v1908 = vunpack.c.l.b16 %v1111
    %v1909 = vunpack.c.h.b16 %v1111
    %v1910 = vunpack.c.l.b16 %v1112
    %v1911 = vunpack.c.h.b16 %v1112
    %v1912 = vunpack.c.l.b16 %v1113
    %v1913 = vunpack.c.h.b16 %v1113
    %v1914 = vunpack.c.l.b16 %v1114
    %v1915 = vunpack.c.h.b16 %v1114
    %v1916 = vunpack.c.l.b16 %v1115
    %v1917 = vunpack.c.h.b16 %v1115
    %v1918 = vunpack.c.l.b16 %v1116
    %v1919 = vunpack.c.h.b16 %v1116
    %v1920 = vunpack.c.l.b16 %v1117
    %v1921 = vunpack.c.h.b16 %v1117
    %v1922 = vunpack.c.l.b16 %v1118
    %v1923 = vunpack.c.h.b16 %v1118
    %v1924 = vunpack.c.l.b16 %v1119
    %v1925 = vunpack.c.h.b16 %v1119
    %v1926 = vunpack.c.l.b16 %v1120
    %v1927 = vunpack.c.h.b16 %v1120
    %v1928 = vunpack.c.l.b16 %v1121
    %v1929 = vunpack.c.h.b16 %v1121
    %v1930 = vunpack.c.l.b16 %v1122
    %v1931 = vunpack.c.h.b16 %v1122
    %v1932 = vunpack.c.l.b16 %v1123
    %v1933 = vunpack.c.h.b16 %v1123
    %v1934 = vpack.c.b16 %v1430, %v1422
    %v1935 = vpack.c.b16 %v1431, %v1423
    %v1936 = vpack.c.b16 %v1432, %v1424
    %v1937 = vpack.c.b16 %v1433, %v1425
    %v1938 = vpack.c.b16 %v1434, %v1426
    %v1939 = vpack.c.b16 %v1435, %v1427
    %v1940 = vpack.c.b16 %v1436, %v1428
    %v1941 = vpack.c.b16 %v1437, %v1429
    %v1942 = vpack.c.b16 %v1446, %v1438
    %v1943 = vpack.c.b16 %v1447, %v1439
    %v1944 = vpack.c.b16 %v1448, %v1440
    %v1945 = vpack.c.b16 %v1449, %v1441
    %v1946 = vpack.c.b16 %v1450, %v1442
    %v1947 = vpack.c.b16 %v1451, %v1443
    %v1948 = vpack.c.b16 %v1452, %v1444
    %v1949 = vpack.c.b16 %v1453, %v1445
    %v1950 = vpack.c.b16 %v1462, %v1454
    %v1951 = vpack.c.b16 %v1463, %v1455
    %v1952 = vpack.c.b16 %v1464, %v1456
    %v1953 = vpack.c.b16 %v1465, %v1457
    %v1954 = vpack.c.b16 %v1466, %v1458
    %v1955 = vpack.c.b16 %v1467, %v1459
    %v1956 = vpack.c.b16 %v1468, %v1460
    %v1957 = vpack.c.b16 %v1469, %v1461
    %v1958 = vpack.c.b16 %v1478, %v1470
    %v1959 = vpack.c.b16 %v1479, %v1471
    %v1960 = vpack.c.b16 %v1480, %v1472
    %v1961 = vpack.c.b16 %v1481, %v1473
    %v1962 = vpack.c.b16 %v1482, %v1474
    %v1963 = vpack.c.b16 %v1483, %v1475
    %v1964 = vpack.c.b16 %v1484, %v1476
    %v1965 = vpack.c.b16 %v1485, %v1477
    %v1966 = vpack.c.b16 %v1494, %v1486
    %v1967 = vpack.c.b16 %v1495, %v1487
    %v1968 = vpack.c.b16 %v1496, %v1488
    %v1969 = vpack.c.b16 %v1497, %v1489
    %v1970 = vpack.c.b16 %v1498, %v1490
    %v1971 = vpack.c.b16 %v1499, %v1491
    %v1972 = vpack.c.b16 %v1500, %v1492
    %v1973 = vpack.c.b16 %v1501, %v1493
    %v1974 = vpack.c.b16 %v1510, %v1502
    %v1975 = vpack.c.b16 %v1511, %v1503
    %v1976 = vpack.c.b16 %v1512, %v1504
    %v1977 = vpack.c.b16 %v1513, %v1505
    %v1978 = vpack.c.b16 %v1514, %v1506
    %v1979 = vpack.c.b16 %v1515, %v1507
    %v1980 = vpack.c.b16 %v1516, %v1508
    %v1981 = vpack.c.b16 %v1517, %v1509
    %v1982 = vpack.c.b16 %v1526, %v1518
    %v1983 = vpack.c.b16 %v1527, %v1519
    %v1984 = vpack.c.b16 %v1528, %v1520
    %v1985 = vpack.c.b16 %v1529, %v1521
    %v1986 = vpack.c.b16 %v1530, %v1522
    %v1987 = vpack.c.b16 %v1531, %v1523
    %v1988 = vpack.c.b16 %v1532, %v1524
    %v1989 = vpack.c.b16 %v1533, %v1525
    %v1990 = vpack.c.b16 %v1542, %v1534
    %v1991 = vpack.c.b16 %v1543, %v1535
    %v1992 = vpack.c.b16 %v1544, %v1536
    %v1993 = vpack.c.b16 %v1545, %v1537
    %v1994 = vpack.c.b16 %v1546, %v1538
    %v1995 = vpack.c.b16 %v1547, %v1539
    %v1996 = vpack.c.b16 %v1548, %v1540
    %v1997 = vpack.c.b16 %v1549, %v1541
    %v1998 = vpack.c.b16 %v1558, %v1550
    %v1999 = vpack.c.b16 %v1559, %v1551
    %v2000 = vpack.c.b16 %v1560, %v1552
    %v2001 = vpack.c.b16 %v1561, %v1553
    %v2002 = vpack.c.b16 %v1562, %v1554
    %v2003 = vpack.c.b16 %v1563, %v1555
    %v2004 = vpack.c.b16 %v1564, %v1556
    %v2005 = vpack.c.b16 %v1565, %v1557
    %v2006 = vpack.c.b16 %v1574, %v1566
    %v2007 = vpack.c.b16 %v1575, %v1567
    %v2008 = vpack.c.b16 %v1576, %v1568
    %v2009 = vpack.c.b16 %v1577, %v1569
    %v2010 = vpack.c.b16 %v1578, %v1570
    %v2011 = vpack.c.b16 %v1579, %v1571
    %v2012 = vpack.c.b16 %v1580, %v1572
    %v2013 = vpack.c.b16 %v1581, %v1573
    %v2014 = vpack.c.b16 %v1590, %v1582
    %v2015 = vpack.c.b16 %v1591, %v1583
    %v2016 = vpack.c.b16 %v1592, %v1584
    %v2017 = vpack.c.b16 %v1593, %v1585
    %v2018 = vpack.c.b16 %v1594, %v1586
    %v2019 = vpack.c.b16 %v1595, %v1587
    %v2020 = vpack.c.b16 %v1596, %v1588
    %v2021 = vpack.c.b16 %v1597, %v1589
    %v2022 = vpack.c.b16 %v1606, %v1598
    %v2023 = vpack.c.b16 %v1607, %v1599
    %v2024 = vpack.c.b16 %v1608, %v1600
    %v2025 = vpack.c.b16 %v1609, %v1601
    %v2026 = vpack.c.b16 %v1610, %v1602
    %v2027 = vpack.c.b16 %v1611, %v1603
    %v2028 = vpack.c.b16 %v1612, %v1604
    %v2029 = vpack.c.b16 %v1613, %v1605
    %v2030 = vpack.c.b16 %v1622, %v1614
    %v2031 = vpack.c.b16 %v1623, %v1615
    %v2032 = vpack.c.b16 %v1624, %v1616
    %v2033 = vpack.c.b16 %v1625, %v1617
    %v2034 = vpack.c.b16 %v1626, %v1618
    %v2035 = vpack.c.b16 %v1627, %v1619
    %v2036 = vpack.c.b16 %v1628, %v1620
    %v2037 = vpack.c.b16 %v1629, %v1621
    %v2038 = vpack.c.b16 %v1638, %v1630
    %v2039 = vpack.c.b16 %v1639, %v1631
    %v2040 = vpack.c.b16 %v1640, %v1632
    %v2041 = vpack.c.b16 %v1641, %v1633
    %v2042 = vpack.c.b16 %v1642, %v1634
    %v2043 = vpack.c.b16 %v1643, %v1635
    %v2044 = vpack.c.b16 %v1644, %v1636
    %v2045 = vpack.c.b16 %v1645, %v1637
    %v2046 = vpack.c.b16 %v1654, %v1646
    %v2047 = vpack.c.b16 %v1655, %v1647
    %v2048 = vpack.c.b16 %v1656, %v1648
    %v2049 = vpack.c.b16 %v1657, %v1649
    %v2050 = vpack.c.b16 %v1658, %v1650
    %v2051 = vpack.c.b16 %v1659, %v1651
    %v2052 = vpack.c.b16 %v1660, %v1652
    %v2053 = vpack.c.b16 %v1661, %v1653
    %v2054 = vpack.c.b16 %v1670, %v1662
    %v2055 = vpack.c.b16 %v1671, %v1663
    %v2056 = vpack.c.b16 %v1672, %v1664
    %v2057 = vpack.c.b16 %v1673, %v1665
    %v2058 = vpack.c.b16 %v1674, %v1666
    %v2059 = vpack.c.b16 %v1675, %v1667
    %v2060 = vpack.c.b16 %v1676, %v1668
    %v2061 = vpack.c.b16 %v1677, %v1669
    %v2062 = vpack.c.b16 %v1686, %v1678
    %v2063 = vpack.c.b16 %v1687, %v1679
    %v2064 = vpack.c.b16 %v1688, %v1680
    %v2065 = vpack.c.b16 %v1689, %v1681
    %v2066 = vpack.c.b16 %v1690, %v1682
    %v2067 = vpack.c.b16 %v1691, %v1683
    %v2068 = vpack.c.b16 %v1692, %v1684
    %v2069 = vpack.c.b16 %v1693, %v1685
    %v2070 = vpack.c.b16 %v1702, %v1694
    %v2071 = vpack.c.b16 %v1703, %v1695
    %v2072 = vpack.c.b16 %v1704, %v1696
    %v2073 = vpack.c.b16 %v1705, %v1697
    %v2074 = vpack.c.b16 %v1706, %v1698
    %v2075 = vpack.c.b16 %v1707, %v1699
    %v2076 = vpack.c.b16 %v1708, %v1700
    %v2077 = vpack.c.b16 %v1709, %v1701
    %v2078 = vpack.c.b16 %v1718, %v1710
    %v2079 = vpack.c.b16 %v1719, %v1711
    %v2080 = vpack.c.b16 %v1720, %v1712
    %v2081 = vpack.c.b16 %v1721, %v1713
    %v2082 = vpack.c.b16 %v1722, %v1714
    %v2083 = vpack.c.b16 %v1723, %v1715
    %v2084 = vpack.c.b16 %v1724, %v1716
    %v2085 = vpack.c.b16 %v1725, %v1717
    %v2086 = vpack.c.b16 %v1734, %v1726
    %v2087 = vpack.c.b16 %v1735, %v1727
    %v2088 = vpack.c.b16 %v1736, %v1728
    %v2089 = vpack.c.b16 %v1737, %v1729
    %v2090 = vpack.c.b16 %v1738, %v1730
    %v2091 = vpack.c.b16 %v1739, %v1731
    %v2092 = vpack.c.b16 %v1740, %v1732
    %v2093 = vpack.c.b16 %v1741, %v1733
    %v2094 = vpack.c.b16 %v1750, %v1742
    %v2095 = vpack.c.b16 %v1751, %v1743
    %v2096 = vpack.c.b16 %v1752, %v1744
    %v2097 = vpack.c.b16 %v1753, %v1745
    %v2098 = vpack.c.b16 %v1754, %v1746
    %v2099 = vpack.c.b16 %v1755, %v1747
    %v2100 = vpack.c.b16 %v1756, %v1748
    %v2101 = vpack.c.b16 %v1757, %v1749
    %v2102 = vpack.c.b16 %v1766, %v1758
    %v2103 = vpack.c.b16 %v1767, %v1759
    %v2104 = vpack.c.b16 %v1768, %v1760
    %v2105 = vpack.c.b16 %v1769, %v1761
    %v2106 = vpack.c.b16 %v1770, %v1762
    %v2107 = vpack.c.b16 %v1771, %v1763
    %v2108 = vpack.c.b16 %v1772, %v1764
    %v2109 = vpack.c.b16 %v1773, %v1765
    %v2110 = vpack.c.b16 %v1782, %v1774
    %v2111 = vpack.c.b16 %v1783, %v1775
    %v2112 = vpack.c.b16 %v1784, %v1776
    %v2113 = vpack.c.b16 %v1785, %v1777
    %v2114 = vpack.c.b16 %v1786, %v1778
    %v2115 = vpack.c.b16 %v1787, %v1779
    %v2116 = vpack.c.b16 %v1788, %v1780
    %v2117 = vpack.c.b16 %v1789, %v1781
    %v2118 = vpack.c.b16 %v1798, %v1790
    %v2119 = vpack.c.b16 %v1799, %v1791
    %v2120 = vpack.c.b16 %v1800, %v1792
    %v2121 = vpack.c.b16 %v1801, %v1793
    %v2122 = vpack.c.b16 %v1802, %v1794
    %v2123 = vpack.c.b16 %v1803, %v1795
    %v2124 = vpack.c.b16 %v1804, %v1796
    %v2125 = vpack.c.b16 %v1805, %v1797
    %v2126 = vpack.c.b16 %v1814, %v1806
    %v2127 = vpack.c.b16 %v1815, %v1807
    %v2128 = vpack.c.b16 %v1816, %v1808
    %v2129 = vpack.c.b16 %v1817, %v1809
    %v2130 = vpack.c.b16 %v1818, %v1810
    %v2131 = vpack.c.b16 %v1819, %v1811
    %v2132 = vpack.c.b16 %v1820, %v1812
    %v2133 = vpack.c.b16 %v1821, %v1813
    %v2134 = vpack.c.b16 %v1830, %v1822
    %v2135 = vpack.c.b16 %v1831, %v1823
    %v2136 = vpack.c.b16 %v1832, %v1824
    %v2137 = vpack.c.b16 %v1833, %v1825
    %v2138 = vpack.c.b16 %v1834, %v1826
    %v2139 = vpack.c.b16 %v1835, %v1827
    %v2140 = vpack.c.b16 %v1836, %v1828
    %v2141 = vpack.c.b16 %v1837, %v1829
    %v2142 = vpack.c.b16 %v1846, %v1838
    %v2143 = vpack.c.b16 %v1847, %v1839
    %v2144 = vpack.c.b16 %v1848, %v1840
    %v2145 = vpack.c.b16 %v1849, %v1841
    %v2146 = vpack.c.b16 %v1850, %v1842
    %v2147 = vpack.c.b16 %v1851, %v1843
    %v2148 = vpack.c.b16 %v1852, %v1844
    %v2149 = vpack.c.b16 %v1853, %v1845
    %v2150 = vpack.c.b16 %v1862, %v1854
    %v2151 = vpack.c.b16 %v1863, %v1855
    %v2152 = vpack.c.b16 %v1864, %v1856
    %v2153 = vpack.c.b16 %v1865, %v1857
    %v2154 = vpack.c.b16 %v1866, %v1858
    %v2155 = vpack.c.b16 %v1867, %v1859
    %v2156 = vpack.c.b16 %v1868, %v1860
    %v2157 = vpack.c.b16 %v1869, %v1861
    %v2158 = vpack.c.b16 %v1878, %v1870
    %v2159 = vpack.c.b16 %v1879, %v1871
    %v2160 = vpack.c.b16 %v1880, %v1872
    %v2161 = vpack.c.b16 %v1881, %v1873
    %v2162 = vpack.c.b16 %v1882, %v1874
    %v2163 = vpack.c.b16 %v1883, %v1875
    %v2164 = vpack.c.b16 %v1884, %v1876
    %v2165 = vpack.c.b16 %v1885, %v1877
    %v2166 = vpack.c.b16 %v1894, %v1886
    %v2167 = vpack.c.b16 %v1895, %v1887
    %v2168 = vpack.c.b16 %v1896, %v1888
    %v2169 = vpack.c.b16 %v1897, %v1889
    %v2170 = vpack.c.b16 %v1898, %v1890
    %v2171 = vpack.c.b16 %v1899, %v1891
    %v2172 = vpack.c.b16 %v1900, %v1892
    %v2173 = vpack.c.b16 %v1901, %v1893
    %v2174 = vpack.c.b16 %v1910, %v1902
    %v2175 = vpack.c.b16 %v1911, %v1903
    %v2176 = vpack.c.b16 %v1912, %v1904
    %v2177 = vpack.c.b16 %v1913, %v1905
    %v2178 = vpack.c.b16 %v1914, %v1906
    %v2179 = vpack.c.b16 %v1915, %v1907
    %v2180 = vpack.c.b16 %v1916, %v1908
    %v2181 = vpack.c.b16 %v1917, %v1909
    %v2182 = vpack.c.b16 %v1926, %v1918
    %v2183 = vpack.c.b16 %v1927, %v1919
    %v2184 = vpack.c.b16 %v1928, %v1920
    %v2185 = vpack.c.b16 %v1929, %v1921
    %v2186 = vpack.c.b16 %v1930, %v1922
    %v2187 = vpack.c.b16 %v1931, %v1923
    %v2188 = vpack.c.b16 %v1932, %v1924
    %v2189 = vpack.c.b16 %v1933, %v1925
    %2446 = vmatprep.subr.bf16.mxu0 %v1935
    %2447 = vmatpush1.bf16.msra.mxu0 %v1934
    %2448 = vmatprep.subr.bf16.mxu0 %v1943
    %2449 = vmatpush1.bf16.msra.mxu0 %v1942
    %2450 = vmatprep.subr.bf16.mxu0 %v1951
    %2451 = vmatpush1.bf16.msra.mxu0 %v1950
    %2452 = vmatprep.subr.bf16.mxu0 %v1959
    %2453 = vmatpush1.bf16.msra.mxu0 %v1958
    %2454 = vmatprep.subr.bf16.mxu0 %v1967
    %2455 = vmatpush1.bf16.msra.mxu0 %v1966
    %2456 = vmatprep.subr.bf16.mxu0 %v1975
    %2457 = vmatpush1.bf16.msra.mxu0 %v1974
    %2458 = vmatprep.subr.bf16.mxu0 %v1983
    %2459 = vmatpush1.bf16.msra.mxu0 %v1982
    %2460 = vmatprep.subr.bf16.mxu0 %v1991
    %2461 = vmatpush1.bf16.msra.mxu0 %v1990
    %2462 = vmatprep.subr.bf16.mxu0 %v1999
    %2463 = vmatpush1.bf16.msra.mxu0 %v1998
    %2464 = vmatprep.subr.bf16.mxu0 %v2007
    %2465 = vmatpush1.bf16.msra.mxu0 %v2006
    %2466 = vmatprep.subr.bf16.mxu0 %v2015
    %2467 = vmatpush1.bf16.msra.mxu0 %v2014
    %2468 = vmatprep.subr.bf16.mxu0 %v2023
    %2469 = vmatpush1.bf16.msra.mxu0 %v2022
    %2470 = vmatprep.subr.bf16.mxu0 %v2031
    %2471 = vmatpush1.bf16.msra.mxu0 %v2030
    %2472 = vmatprep.subr.bf16.mxu0 %v2039
    %2473 = vmatpush1.bf16.msra.mxu0 %v2038
    %2474 = vmatprep.subr.bf16.mxu0 %v2047
    %2475 = vmatpush1.bf16.msra.mxu0 %v2046
    %2476 = vmatprep.subr.bf16.mxu0 %v2055
    %2477 = vmatpush1.bf16.msra.mxu0 %v2054
    %2478 = vmatprep.mubr.bf16.mxu0 %v865
    %2479 = vmatmul.mubr.bf16.gmra.mrb[0].mxu0 %v864
    %v2480 = vpop.f32.mrb[0].mxu0
    %v2481 = vadd.f32 %v1129, %v2480
    %v2482 = vpop.f32.mrb[0].mxu0
    %v2483 = vadd.f32 %v1133, %v2482
    %v2484 = vpop.f32.mrb[0].mxu0
    %v2485 = vpop.f32.mrb[0].mxu0
    %2486 = vdwg.mxu0
    %2487 = vmatprep.subr.bf16.mxu0 %v2063
    %2488 = vmatpush1.bf16.msra.mxu0 %v2062
    %2489 = vmatprep.subr.bf16.mxu0 %v2071
    %2490 = vmatpush1.bf16.msra.mxu0 %v2070
    %2491 = vmatprep.subr.bf16.mxu0 %v2079
    %2492 = vmatpush1.bf16.msra.mxu0 %v2078
    %2493 = vmatprep.subr.bf16.mxu0 %v2087
    %2494 = vmatpush1.bf16.msra.mxu0 %v2086
    %2495 = vmatprep.subr.bf16.mxu0 %v2095
    %2496 = vmatpush1.bf16.msra.mxu0 %v2094
    %2497 = vmatprep.subr.bf16.mxu0 %v2103
    %2498 = vmatpush1.bf16.msra.mxu0 %v2102
    %2499 = vmatprep.subr.bf16.mxu0 %v2111
    %2500 = vmatpush1.bf16.msra.mxu0 %v2110
    %2501 = vmatprep.subr.bf16.mxu0 %v2119
    %2502 = vmatpush1.bf16.msra.mxu0 %v2118
    %2503 = vmatprep.subr.bf16.mxu0 %v2127
    %2504 = vmatpush1.bf16.msra.mxu0 %v2126
    %2505 = vmatprep.subr.bf16.mxu0 %v2135
    %2506 = vmatpush1.bf16.msra.mxu0 %v2134
    %2507 = vmatprep.subr.bf16.mxu0 %v2143
    %2508 = vmatpush1.bf16.msra.mxu0 %v2142
    %2509 = vmatprep.subr.bf16.mxu0 %v2151
    %2510 = vmatpush1.bf16.msra.mxu0 %v2150
    %2511 = vmatprep.subr.bf16.mxu0 %v2159
    %2512 = vmatpush1.bf16.msra.mxu0 %v2158
    %2513 = vmatprep.subr.bf16.mxu0 %v2167
    %2514 = vmatpush1.bf16.msra.mxu0 %v2166
    %2515 = vmatprep.subr.bf16.mxu0 %v2175
    %2516 = vmatpush1.bf16.msra.mxu0 %v2174
    %2517 = vmatprep.subr.bf16.mxu0 %v2183
    %2518 = vmatpush1.bf16.msra.mxu0 %v2182
    %2519 = vmatprep.mubr.bf16.mxu0 %v867
    %2520 = vmatmul.mubr.bf16.gmra.mrb[0].mxu0 %v866
    %v2521 = vpop.f32.mrb[0].mxu0
    %v2522 = vadd.f32 %v2481, %v2521
    %v2523 = vpop.f32.mrb[0].mxu0
    %v2524 = vadd.f32 %v2483, %v2523
    %v2525 = vpop.f32.mrb[0].mxu0
    %v2526 = vpop.f32.mrb[0].mxu0
    %2527 = vdwg.mxu0
    %2528 = vmatprep.subr.bf16.mxu0 %v1937
    %2529 = vmatpush1.bf16.msra.mxu0 %v1936
    %2530 = vmatprep.subr.bf16.mxu0 %v1945
    %2531 = vmatpush1.bf16.msra.mxu0 %v1944
    %2532 = vmatprep.subr.bf16.mxu0 %v1953
    %2533 = vmatpush1.bf16.msra.mxu0 %v1952
    %2534 = vmatprep.subr.bf16.mxu0 %v1961
    %2535 = vmatpush1.bf16.msra.mxu0 %v1960
    %2536 = vmatprep.subr.bf16.mxu0 %v1969
    %2537 = vmatpush1.bf16.msra.mxu0 %v1968
    %2538 = vmatprep.subr.bf16.mxu0 %v1977
    %2539 = vmatpush1.bf16.msra.mxu0 %v1976
    %2540 = vmatprep.subr.bf16.mxu0 %v1985
    %2541 = vmatpush1.bf16.msra.mxu0 %v1984
    %2542 = vmatprep.subr.bf16.mxu0 %v1993
    %2543 = vmatpush1.bf16.msra.mxu0 %v1992
    %2544 = vmatprep.subr.bf16.mxu0 %v2001
    %2545 = vmatpush1.bf16.msra.mxu0 %v2000
    %2546 = vmatprep.subr.bf16.mxu0 %v2009
    %2547 = vmatpush1.bf16.msra.mxu0 %v2008
    %2548 = vmatprep.subr.bf16.mxu0 %v2017
    %2549 = vmatpush1.bf16.msra.mxu0 %v2016
    %2550 = vmatprep.subr.bf16.mxu0 %v2025
    %2551 = vmatpush1.bf16.msra.mxu0 %v2024
    %2552 = vmatprep.subr.bf16.mxu0 %v2033
    %2553 = vmatpush1.bf16.msra.mxu0 %v2032
    %2554 = vmatprep.subr.bf16.mxu0 %v2041
    %2555 = vmatpush1.bf16.msra.mxu0 %v2040
    %2556 = vmatprep.subr.bf16.mxu0 %v2049
    %2557 = vmatpush1.bf16.msra.mxu0 %v2048
    %2558 = vmatprep.subr.bf16.mxu0 %v2057
    %2559 = vmatpush1.bf16.msra.mxu0 %v2056
    %2560 = vmatprep.mubr.bf16.mxu0 %v865
    %2561 = vmatmul.mubr.bf16.gmra.mrb[0].mxu0 %v864
    %v2562 = vpop.f32.mrb[0].mxu0
    %v2563 = vadd.f32 %v1137, %v2562
    %v2564 = vpop.f32.mrb[0].mxu0
    %v2565 = vadd.f32 %v1141, %v2564
    %v2566 = vpop.f32.mrb[0].mxu0
    %v2567 = vpop.f32.mrb[0].mxu0
    %2568 = vdwg.mxu0
    %2569 = vmatprep.subr.bf16.mxu0 %v2065
    %2570 = vmatpush1.bf16.msra.mxu0 %v2064
    %2571 = vmatprep.subr.bf16.mxu0 %v2073
    %2572 = vmatpush1.bf16.msra.mxu0 %v2072
    %2573 = vmatprep.subr.bf16.mxu0 %v2081
    %2574 = vmatpush1.bf16.msra.mxu0 %v2080
    %2575 = vmatprep.subr.bf16.mxu0 %v2089
    %2576 = vmatpush1.bf16.msra.mxu0 %v2088
    %2577 = vmatprep.subr.bf16.mxu0 %v2097
    %2578 = vmatpush1.bf16.msra.mxu0 %v2096
    %2579 = vmatprep.subr.bf16.mxu0 %v2105
    %2580 = vmatpush1.bf16.msra.mxu0 %v2104
    %2581 = vmatprep.subr.bf16.mxu0 %v2113
    %2582 = vmatpush1.bf16.msra.mxu0 %v2112
    %2583 = vmatprep.subr.bf16.mxu0 %v2121
    %2584 = vmatpush1.bf16.msra.mxu0 %v2120
    %2585 = vmatprep.subr.bf16.mxu0 %v2129
    %2586 = vmatpush1.bf16.msra.mxu0 %v2128
    %2587 = vmatprep.subr.bf16.mxu0 %v2137
    %2588 = vmatpush1.bf16.msra.mxu0 %v2136
    %2589 = vmatprep.subr.bf16.mxu0 %v2145
    %2590 = vmatpush1.bf16.msra.mxu0 %v2144
    %2591 = vmatprep.subr.bf16.mxu0 %v2153
    %2592 = vmatpush1.bf16.msra.mxu0 %v2152
    %2593 = vmatprep.subr.bf16.mxu0 %v2161
    %2594 = vmatpush1.bf16.msra.mxu0 %v2160
    %2595 = vmatprep.subr.bf16.mxu0 %v2169
    %2596 = vmatpush1.bf16.msra.mxu0 %v2168
    %2597 = vmatprep.subr.bf16.mxu0 %v2177
    %2598 = vmatpush1.bf16.msra.mxu0 %v2176
    %2599 = vmatprep.subr.bf16.mxu0 %v2185
    %2600 = vmatpush1.bf16.msra.mxu0 %v2184
    %2601 = vmatprep.mubr.bf16.mxu0 %v867
    %2602 = vmatmul.mubr.bf16.gmra.mrb[0].mxu0 %v866
    %v2603 = vpop.f32.mrb[0].mxu0
    %v2604 = vadd.f32 %v2563, %v2603
    %v2605 = vpop.f32.mrb[0].mxu0
    %v2606 = vadd.f32 %v2565, %v2605
    %v2607 = vpop.f32.mrb[0].mxu0
    %v2608 = vpop.f32.mrb[0].mxu0
    %2609 = vdwg.mxu0
    %2610 = vmatprep.subr.bf16.mxu0 %v1939
    %2611 = vmatpush1.bf16.msra.mxu0 %v1938
    %2612 = vmatprep.subr.bf16.mxu0 %v1947
    %2613 = vmatpush1.bf16.msra.mxu0 %v1946
    %2614 = vmatprep.subr.bf16.mxu0 %v1955
    %2615 = vmatpush1.bf16.msra.mxu0 %v1954
    %2616 = vmatprep.subr.bf16.mxu0 %v1963
    %2617 = vmatpush1.bf16.msra.mxu0 %v1962
    %2618 = vmatprep.subr.bf16.mxu0 %v1971
    %2619 = vmatpush1.bf16.msra.mxu0 %v1970
    %2620 = vmatprep.subr.bf16.mxu0 %v1979
    %2621 = vmatpush1.bf16.msra.mxu0 %v1978
    %2622 = vmatprep.subr.bf16.mxu0 %v1987
    %2623 = vmatpush1.bf16.msra.mxu0 %v1986
    %2624 = vmatprep.subr.bf16.mxu0 %v1995
    %2625 = vmatpush1.bf16.msra.mxu0 %v1994
    %2626 = vmatprep.subr.bf16.mxu0 %v2003
    %2627 = vmatpush1.bf16.msra.mxu0 %v2002
    %2628 = vmatprep.subr.bf16.mxu0 %v2011
    %2629 = vmatpush1.bf16.msra.mxu0 %v2010
    %2630 = vmatprep.subr.bf16.mxu0 %v2019
    %2631 = vmatpush1.bf16.msra.mxu0 %v2018
    %2632 = vmatprep.subr.bf16.mxu0 %v2027
    %2633 = vmatpush1.bf16.msra.mxu0 %v2026
    %2634 = vmatprep.subr.bf16.mxu0 %v2035
    %2635 = vmatpush1.bf16.msra.mxu0 %v2034
    %2636 = vmatprep.subr.bf16.mxu0 %v2043
    %2637 = vmatpush1.bf16.msra.mxu0 %v2042
    %2638 = vmatprep.subr.bf16.mxu0 %v2051
    %2639 = vmatpush1.bf16.msra.mxu0 %v2050
    %2640 = vmatprep.subr.bf16.mxu0 %v2059
    %2641 = vmatpush1.bf16.msra.mxu0 %v2058
    %2642 = vmatprep.mubr.bf16.mxu0 %v865
    %2643 = vmatmul.mubr.bf16.gmra.mrb[0].mxu0 %v864
    %v2644 = vpop.f32.mrb[0].mxu0
    %v2645 = vadd.f32 %v1145, %v2644
    %v2646 = vpop.f32.mrb[0].mxu0
    %v2647 = vadd.f32 %v1149, %v2646
    %v2648 = vpop.f32.mrb[0].mxu0
    %v2649 = vpop.f32.mrb[0].mxu0
    %2650 = vdwg.mxu0
    %2651 = vmatprep.subr.bf16.mxu0 %v2067
    %2652 = vmatpush1.bf16.msra.mxu0 %v2066
    %2653 = vmatprep.subr.bf16.mxu0 %v2075
    %2654 = vmatpush1.bf16.msra.mxu0 %v2074
    %2655 = vmatprep.subr.bf16.mxu0 %v2083
    %2656 = vmatpush1.bf16.msra.mxu0 %v2082
    %2657 = vmatprep.subr.bf16.mxu0 %v2091
    %2658 = vmatpush1.bf16.msra.mxu0 %v2090
    %2659 = vmatprep.subr.bf16.mxu0 %v2099
    %2660 = vmatpush1.bf16.msra.mxu0 %v2098
    %2661 = vmatprep.subr.bf16.mxu0 %v2107
    %2662 = vmatpush1.bf16.msra.mxu0 %v2106
    %2663 = vmatprep.subr.bf16.mxu0 %v2115
    %2664 = vmatpush1.bf16.msra.mxu0 %v2114
    %2665 = vmatprep.subr.bf16.mxu0 %v2123
    %2666 = vmatpush1.bf16.msra.mxu0 %v2122
    %2667 = vmatprep.subr.bf16.mxu0 %v2131
    %2668 = vmatpush1.bf16.msra.mxu0 %v2130
    %2669 = vmatprep.subr.bf16.mxu0 %v2139
    %2670 = vmatpush1.bf16.msra.mxu0 %v2138
    %2671 = vmatprep.subr.bf16.mxu0 %v2147
    %2672 = vmatpush1.bf16.msra.mxu0 %v2146
    %2673 = vmatprep.subr.bf16.mxu0 %v2155
    %2674 = vmatpush1.bf16.msra.mxu0 %v2154
    %2675 = vmatprep.subr.bf16.mxu0 %v2163
    %2676 = vmatpush1.bf16.msra.mxu0 %v2162
    %2677 = vmatprep.subr.bf16.mxu0 %v2171
    %2678 = vmatpush1.bf16.msra.mxu0 %v2170
    %2679 = vmatprep.subr.bf16.mxu0 %v2179
    %2680 = vmatpush1.bf16.msra.mxu0 %v2178
    %2681 = vmatprep.subr.bf16.mxu0 %v2187
    %2682 = vmatpush1.bf16.msra.mxu0 %v2186
    %2683 = vmatprep.mubr.bf16.mxu0 %v867
    %2684 = vmatmul.mubr.bf16.gmra.mrb[0].mxu0 %v866
    %v2685 = vpop.f32.mrb[0].mxu0
    %v2686 = vadd.f32 %v2645, %v2685
    %v2687 = vpop.f32.mrb[0].mxu0
    %v2688 = vadd.f32 %v2647, %v2687
    %v2689 = vpop.f32.mrb[0].mxu0
    %v2690 = vpop.f32.mrb[0].mxu0
    %2691 = vdwg.mxu0
    %2692 = vmatprep.subr.bf16.mxu0 %v1941
    %2693 = vmatpush1.bf16.msra.mxu0 %v1940
    %2694 = vmatprep.subr.bf16.mxu0 %v1949
    %2695 = vmatpush1.bf16.msra.mxu0 %v1948
    %2696 = vmatprep.subr.bf16.mxu0 %v1957
    %2697 = vmatpush1.bf16.msra.mxu0 %v1956
    %2698 = vmatprep.subr.bf16.mxu0 %v1965
    %2699 = vmatpush1.bf16.msra.mxu0 %v1964
    %2700 = vmatprep.subr.bf16.mxu0 %v1973
    %2701 = vmatpush1.bf16.msra.mxu0 %v1972
    %2702 = vmatprep.subr.bf16.mxu0 %v1981
    %2703 = vmatpush1.bf16.msra.mxu0 %v1980
    %2704 = vmatprep.subr.bf16.mxu0 %v1989
    %2705 = vmatpush1.bf16.msra.mxu0 %v1988
    %2706 = vmatprep.subr.bf16.mxu0 %v1997
    %2707 = vmatpush1.bf16.msra.mxu0 %v1996
    %2708 = vmatprep.subr.bf16.mxu0 %v2005
    %2709 = vmatpush1.bf16.msra.mxu0 %v2004
    %2710 = vmatprep.subr.bf16.mxu0 %v2013
    %2711 = vmatpush1.bf16.msra.mxu0 %v2012
    %2712 = vmatprep.subr.bf16.mxu0 %v2021
    %2713 = vmatpush1.bf16.msra.mxu0 %v2020
    %2714 = vmatprep.subr.bf16.mxu0 %v2029
    %2715 = vmatpush1.bf16.msra.mxu0 %v2028
    %2716 = vmatprep.subr.bf16.mxu0 %v2037
    %2717 = vmatpush1.bf16.msra.mxu0 %v2036
    %2718 = vmatprep.subr.bf16.mxu0 %v2045
    %2719 = vmatpush1.bf16.msra.mxu0 %v2044
    %2720 = vmatprep.subr.bf16.mxu0 %v2053
    %2721 = vmatpush1.bf16.msra.mxu0 %v2052
    %2722 = vmatprep.subr.bf16.mxu0 %v2061
    %2723 = vmatpush1.bf16.msra.mxu0 %v2060
    %2724 = vmatprep.mubr.bf16.mxu0 %v865
    %2725 = vmatmul.mubr.bf16.gmra.mrb[0].mxu0 %v864
    %v2726 = vpop.f32.mrb[0].mxu0
    %v2727 = vadd.f32 %v1153, %v2726
    %v2728 = vpop.f32.mrb[0].mxu0
    %v2729 = vadd.f32 %v1157, %v2728
    %v2730 = vpop.f32.mrb[0].mxu0
    %v2731 = vpop.f32.mrb[0].mxu0
    %2732 = vdwg.mxu0
    %2733 = vmatprep.subr.bf16.mxu0 %v2069
    %2734 = vmatpush1.bf16.msra.mxu0 %v2068
    %2735 = vmatprep.subr.bf16.mxu0 %v2077
    %2736 = vmatpush1.bf16.msra.mxu0 %v2076
    %2737 = vmatprep.subr.bf16.mxu0 %v2085
    %2738 = vmatpush1.bf16.msra.mxu0 %v2084
    %2739 = vmatprep.subr.bf16.mxu0 %v2093
    %2740 = vmatpush1.bf16.msra.mxu0 %v2092
    %2741 = vmatprep.subr.bf16.mxu0 %v2101
    %2742 = vmatpush1.bf16.msra.mxu0 %v2100
    %2743 = vmatprep.subr.bf16.mxu0 %v2109
    %2744 = vmatpush1.bf16.msra.mxu0 %v2108
    %2745 = vmatprep.subr.bf16.mxu0 %v2117
    %2746 = vmatpush1.bf16.msra.mxu0 %v2116
    %2747 = vmatprep.subr.bf16.mxu0 %v2125
    %2748 = vmatpush1.bf16.msra.mxu0 %v2124
    %2749 = vmatprep.subr.bf16.mxu0 %v2133
    %2750 = vmatpush1.bf16.msra.mxu0 %v2132
    %2751 = vmatprep.subr.bf16.mxu0 %v2141
    %2752 = vmatpush1.bf16.msra.mxu0 %v2140
    %2753 = vmatprep.subr.bf16.mxu0 %v2149
    %2754 = vmatpush1.bf16.msra.mxu0 %v2148
    %2755 = vmatprep.subr.bf16.mxu0 %v2157
    %2756 = vmatpush1.bf16.msra.mxu0 %v2156
    %2757 = vmatprep.subr.bf16.mxu0 %v2165
    %2758 = vmatpush1.bf16.msra.mxu0 %v2164
    %2759 = vmatprep.subr.bf16.mxu0 %v2173
    %2760 = vmatpush1.bf16.msra.mxu0 %v2172
    %2761 = vmatprep.subr.bf16.mxu0 %v2181
    %2762 = vmatpush1.bf16.msra.mxu0 %v2180
    %2763 = vmatprep.subr.bf16.mxu0 %v2189
    %2764 = vmatpush1.bf16.msra.mxu0 %v2188
    %2765 = vmatprep.mubr.bf16.mxu0 %v867
    %2766 = vmatmul.mubr.bf16.gmra.mrb[0].mxu0 %v866
    %v2767 = vpop.f32.mrb[0].mxu0
    %v2768 = vadd.f32 %v2727, %v2767
    %v2769 = vpop.f32.mrb[0].mxu0
    %v2770 = vadd.f32 %v2729, %v2769
    %v2771 = vpop.f32.mrb[0].mxu0
    %v2772 = vpop.f32.mrb[0].mxu0
    %2773 = vdwg.mxu0
    %v2774 = vmax.f32 %v2522, 0.0
    %v2775 = vmax.f32 %v2524, 0.0
    %v2776 = vmax.f32 %v2604, 0.0
    %v2777 = vmax.f32 %v2606, 0.0
    %v2778 = vmax.f32 %v2686, 0.0
    %v2779 = vmax.f32 %v2688, 0.0
    %v2780 = vmax.f32 %v2768, 0.0
    %v2781 = vmax.f32 %v2770, 0.0
    %v2782 = vpack.c.bf16 %v2774, %v2774
    %v2783 = vpack.c.bf16 %v2775, %v2775
    %v2784 = vpack.c.bf16 %v2776, %v2776
    %v2785 = vpack.c.bf16 %v2777, %v2777
    %v2786 = vpack.c.bf16 %v2778, %v2778
    %v2787 = vpack.c.bf16 %v2779, %v2779
    %v2788 = vpack.c.bf16 %v2780, %v2780
    %v2789 = vpack.c.bf16 %v2781, %v2781
    %v2790 = vld [vmem:[#allocation9] sm:$0xff]
    %v2791 = vld [vmem:[#allocation9 + $0x8] sm:$0xf]
    %v2792 = vld [vmem:[#allocation9 + $0xc] sm:$0xff]
    %v2793 = vld [vmem:[#allocation9 + $0x14] sm:$0xf]
    %v2794 = vld [vmem:[#allocation9 + $0x18] sm:$0xff]
    %v2795 = vld [vmem:[#allocation9 + $0x20] sm:$0xf]
    %v2796 = vld [vmem:[#allocation9 + $0x24] sm:$0xff]
    %v2797 = vld [vmem:[#allocation9 + $0x2c] sm:$0xf]
    %v2798 = vld [vmem:[#allocation9 + $0x30] sm:$0xff]
    %v2799 = vld [vmem:[#allocation9 + $0x38] sm:$0xf]
    %v2800 = vld [vmem:[#allocation9 + $0x3c] sm:$0xff]
    %v2801 = vld [vmem:[#allocation9 + $0x44] sm:$0xf]
    %v2802 = vld [vmem:[#allocation9 + $0x48] sm:$0xff]
    %v2803 = vld [vmem:[#allocation9 + $0x50] sm:$0xf]
    %v2804 = vld [vmem:[#allocation9 + $0x54] sm:$0xff]
    %v2805 = vld [vmem:[#allocation9 + $0x5c] sm:$0xf]
    %v2806 = vld [vmem:[#allocation9 + $0x60] sm:$0xff]
    %v2807 = vld [vmem:[#allocation9 + $0x68] sm:$0xf]
    %v2808 = vld [vmem:[#allocation9 + $0x6c] sm:$0xff]
    %v2809 = vld [vmem:[#allocation9 + $0x74] sm:$0xf]
    %v2810 = vld [vmem:[#allocation9 + $0x78] sm:$0xff]
    %v2811 = vld [vmem:[#allocation9 + $0x80] sm:$0xf]
    %v2812 = vld [vmem:[#allocation9 + $0x84] sm:$0xff]
    %v2813 = vld [vmem:[#allocation9 + $0x8c] sm:$0xf]
    %v2814 = vld [vmem:[#allocation9 + $0x90] sm:$0xff]
    %v2815 = vld [vmem:[#allocation9 + $0x98] sm:$0xf]
    %v2816 = vld [vmem:[#allocation9 + $0x9c] sm:$0xff]
    %v2817 = vld [vmem:[#allocation9 + $0xa4] sm:$0xf]
    %v2818 = vld [vmem:[#allocation9 + $0xa8] sm:$0xff]
    %v2819 = vld [vmem:[#allocation9 + $0xb0] sm:$0xf]
    %v2820 = vld [vmem:[#allocation9 + $0xb4] sm:$0xff]
    %v2821 = vld [vmem:[#allocation9 + $0xbc] sm:$0xf]
    %v2822 = vld [vmem:[#allocation9 + $0xc0] sm:$0xff]
    %v2823 = vld [vmem:[#allocation9 + $0xc8] sm:$0xf]
    %v2824 = vld [vmem:[#allocation9 + $0xcc] sm:$0xff]
    %v2825 = vld [vmem:[#allocation9 + $0xd4] sm:$0xf]
    %v2826 = vld [vmem:[#allocation9 + $0xd8] sm:$0xff]
    %v2827 = vld [vmem:[#allocation9 + $0xe0] sm:$0xf]
    %v2828 = vld [vmem:[#allocation9 + $0xe4] sm:$0xff]
    %v2829 = vld [vmem:[#allocation9 + $0xec] sm:$0xf]
    %v2830 = vld [vmem:[#allocation9 + $0xf0] sm:$0xff]
    %v2831 = vld [vmem:[#allocation9 + $0xf8] sm:$0xf]
    %v2832 = vld [vmem:[#allocation9 + $0xfc] sm:$0xff]
    %v2833 = vld [vmem:[#allocation9 + $0x104] sm:$0xf]
    %v2834 = vld [vmem:[#allocation9 + $0x108] sm:$0xff]
    %v2835 = vld [vmem:[#allocation9 + $0x110] sm:$0xf]
    %v2836 = vld [vmem:[#allocation9 + $0x114] sm:$0xff]
    %v2837 = vld [vmem:[#allocation9 + $0x11c] sm:$0xf]
    %v2838 = vld [vmem:[#allocation9 + $0x120] sm:$0xff]
    %v2839 = vld [vmem:[#allocation9 + $0x128] sm:$0xf]
    %v2840 = vld [vmem:[#allocation9 + $0x12c] sm:$0xff]
    %v2841 = vld [vmem:[#allocation9 + $0x134] sm:$0xf]
    %v2842 = vld [vmem:[#allocation9 + $0x138] sm:$0xff]
    %v2843 = vld [vmem:[#allocation9 + $0x140] sm:$0xf]
    %v2844 = vld [vmem:[#allocation9 + $0x144] sm:$0xff]
    %v2845 = vld [vmem:[#allocation9 + $0x14c] sm:$0xf]
    %v2846 = vld [vmem:[#allocation9 + $0x150] sm:$0xff]
    %v2847 = vld [vmem:[#allocation9 + $0x158] sm:$0xf]
    %v2848 = vld [vmem:[#allocation9 + $0x15c] sm:$0xff]
    %v2849 = vld [vmem:[#allocation9 + $0x164] sm:$0xf]
    %v2850 = vld [vmem:[#allocation9 + $0x168] sm:$0xff]
    %v2851 = vld [vmem:[#allocation9 + $0x170] sm:$0xf]
    %v2852 = vld [vmem:[#allocation9 + $0x174] sm:$0xff]
    %v2853 = vld [vmem:[#allocation9 + $0x17c] sm:$0xf]
    %v2854 = vld [vmem:[#allocation9 + $0x180] sm:$0xff]
    %v2855 = vld [vmem:[#allocation9 + $0x188] sm:$0xf]
    %v2856 = vld [vmem:[#allocation9 + $0x18c] sm:$0xff]
    %v2857 = vld [vmem:[#allocation9 + $0x194] sm:$0xf]
    %v2858 = vld [vmem:[#allocation9 + $0x198] sm:$0xff]
    %v2859 = vld [vmem:[#allocation9 + $0x1a0] sm:$0xf]
    %v2860 = vld [vmem:[#allocation9 + $0x1a4] sm:$0xff]
    %v2861 = vld [vmem:[#allocation9 + $0x1ac] sm:$0xf]
    %v2862 = vld [vmem:[#allocation9 + $0x1b0] sm:$0xff]
    %v2863 = vld [vmem:[#allocation9 + $0x1b8] sm:$0xf]
    %v2864 = vld [vmem:[#allocation9 + $0x1bc] sm:$0xff]
    %v2865 = vld [vmem:[#allocation9 + $0x1c4] sm:$0xf]
    %v2866 = vld [vmem:[#allocation9 + $0x1c8] sm:$0xff]
    %v2867 = vld [vmem:[#allocation9 + $0x1d0] sm:$0xf]
    %v2868 = vld [vmem:[#allocation9 + $0x1d4] sm:$0xff]
    %v2869 = vld [vmem:[#allocation9 + $0x1dc] sm:$0xf]
    %v2870 = vld [vmem:[#allocation9 + $0x1e0] sm:$0xff]
    %v2871 = vld [vmem:[#allocation9 + $0x1e8] sm:$0xf]
    %v2872 = vld [vmem:[#allocation9 + $0x1ec] sm:$0xff]
    %v2873 = vld [vmem:[#allocation9 + $0x1f4] sm:$0xf]
    %v2874 = vld [vmem:[#allocation9 + $0x1f8] sm:$0xff]
    %v2875 = vld [vmem:[#allocation9 + $0x200] sm:$0xf]
    %v2876 = vld [vmem:[#allocation9 + $0x204] sm:$0xff]
    %v2877 = vld [vmem:[#allocation9 + $0x20c] sm:$0xf]
    %v2878 = vld [vmem:[#allocation9 + $0x210] sm:$0xff]
    %v2879 = vld [vmem:[#allocation9 + $0x218] sm:$0xf]
    %v2880 = vld [vmem:[#allocation9 + $0x21c] sm:$0xff]
    %v2881 = vld [vmem:[#allocation9 + $0x224] sm:$0xf]
    %v2882 = vld [vmem:[#allocation9 + $0x228] sm:$0xff]
    %v2883 = vld [vmem:[#allocation9 + $0x230] sm:$0xf]
    %v2884 = vld [vmem:[#allocation9 + $0x234] sm:$0xff]
    %v2885 = vld [vmem:[#allocation9 + $0x23c] sm:$0xf]
    %v2886 = vld [vmem:[#allocation9 + $0x240] sm:$0xff]
    %v2887 = vld [vmem:[#allocation9 + $0x248] sm:$0xf]
    %v2888 = vld [vmem:[#allocation9 + $0x24c] sm:$0xff]
    %v2889 = vld [vmem:[#allocation9 + $0x254] sm:$0xf]
    %v2890 = vld [vmem:[#allocation9 + $0x258] sm:$0xff]
    %v2891 = vld [vmem:[#allocation9 + $0x260] sm:$0xf]
    %v2892 = vld [vmem:[#allocation9 + $0x264] sm:$0xff]
    %v2893 = vld [vmem:[#allocation9 + $0x26c] sm:$0xf]
    %v2894 = vld [vmem:[#allocation9 + $0x270] sm:$0xff]
    %v2895 = vld [vmem:[#allocation9 + $0x278] sm:$0xf]
    %v2896 = vld [vmem:[#allocation9 + $0x27c] sm:$0xff]
    %v2897 = vld [vmem:[#allocation9 + $0x284] sm:$0xf]
    %v2898 = vld [vmem:[#allocation9 + $0x288] sm:$0xff]
    %v2899 = vld [vmem:[#allocation9 + $0x290] sm:$0xf]
    %v2900 = vld [vmem:[#allocation9 + $0x294] sm:$0xff]
    %v2901 = vld [vmem:[#allocation9 + $0x29c] sm:$0xf]
    %v2902 = vld [vmem:[#allocation9 + $0x2a0] sm:$0xff]
    %v2903 = vld [vmem:[#allocation9 + $0x2a8] sm:$0xf]
    %v2904 = vld [vmem:[#allocation9 + $0x2ac] sm:$0xff]
    %v2905 = vld [vmem:[#allocation9 + $0x2b4] sm:$0xf]
    %v2906 = vld [vmem:[#allocation9 + $0x2b8] sm:$0xff]
    %v2907 = vld [vmem:[#allocation9 + $0x2c0] sm:$0xf]
    %v2908 = vld [vmem:[#allocation9 + $0x2c4] sm:$0xff]
    %v2909 = vld [vmem:[#allocation9 + $0x2cc] sm:$0xf]
    %v2910 = vld [vmem:[#allocation9 + $0x2d0] sm:$0xff]
    %v2911 = vld [vmem:[#allocation9 + $0x2d8] sm:$0xf]
    %v2912 = vld [vmem:[#allocation9 + $0x2dc] sm:$0xff]
    %v2913 = vld [vmem:[#allocation9 + $0x2e4] sm:$0xf]
    %v2914 = vld [vmem:[#allocation9 + $0x2e8] sm:$0xff]
    %v2915 = vld [vmem:[#allocation9 + $0x2f0] sm:$0xf]
    %v2916 = vld [vmem:[#allocation9 + $0x2f4] sm:$0xff]
    %v2917 = vld [vmem:[#allocation9 + $0x2fc] sm:$0xf]
    %v2918 = vld [vmem:[#allocation9 + $0x300] sm:$0xff]
    %v2919 = vld [vmem:[#allocation9 + $0x308] sm:$0xf]
    %v2920 = vld [vmem:[#allocation9 + $0x30c] sm:$0xff]
    %v2921 = vld [vmem:[#allocation9 + $0x314] sm:$0xf]
    %v2922 = vld [vmem:[#allocation9 + $0x318] sm:$0xff]
    %v2923 = vld [vmem:[#allocation9 + $0x320] sm:$0xf]
    %v2924 = vld [vmem:[#allocation9 + $0x324] sm:$0xff]
    %v2925 = vld [vmem:[#allocation9 + $0x32c] sm:$0xf]
    %v2926 = vld [vmem:[#allocation9 + $0x330] sm:$0xff]
    %v2927 = vld [vmem:[#allocation9 + $0x338] sm:$0xf]
    %v2928 = vld [vmem:[#allocation9 + $0x33c] sm:$0xff]
    %v2929 = vld [vmem:[#allocation9 + $0x344] sm:$0xf]
    %v2930 = vld [vmem:[#allocation9 + $0x348] sm:$0xff]
    %v2931 = vld [vmem:[#allocation9 + $0x350] sm:$0xf]
    %v2932 = vld [vmem:[#allocation9 + $0x354] sm:$0xff]
    %v2933 = vld [vmem:[#allocation9 + $0x35c] sm:$0xf]
    %v2934 = vld [vmem:[#allocation9 + $0x360] sm:$0xff]
    %v2935 = vld [vmem:[#allocation9 + $0x368] sm:$0xf]
    %v2936 = vld [vmem:[#allocation9 + $0x36c] sm:$0xff]
    %v2937 = vld [vmem:[#allocation9 + $0x374] sm:$0xf]
    %v2938 = vld [vmem:[#allocation9 + $0x378] sm:$0xff]
    %v2939 = vld [vmem:[#allocation9 + $0x380] sm:$0xf]
    %v2940 = vld [vmem:[#allocation9 + $0x384] sm:$0xff]
    %v2941 = vld [vmem:[#allocation9 + $0x38c] sm:$0xf]
    %v2942 = vld [vmem:[#allocation9 + $0x390] sm:$0xff]
    %v2943 = vld [vmem:[#allocation9 + $0x398] sm:$0xf]
    %v2944 = vld [vmem:[#allocation9 + $0x39c] sm:$0xff]
    %v2945 = vld [vmem:[#allocation9 + $0x3a4] sm:$0xf]
    %v2946 = vld [vmem:[#allocation9 + $0x3a8] sm:$0xff]
    %v2947 = vld [vmem:[#allocation9 + $0x3b0] sm:$0xf]
    %v2948 = vld [vmem:[#allocation9 + $0x3b4] sm:$0xff]
    %v2949 = vld [vmem:[#allocation9 + $0x3bc] sm:$0xf]
    %v2950 = vld [vmem:[#allocation9 + $0x3c0] sm:$0xff]
    %v2951 = vld [vmem:[#allocation9 + $0x3c8] sm:$0xf]
    %v2952 = vld [vmem:[#allocation9 + $0x3cc] sm:$0xff]
    %v2953 = vld [vmem:[#allocation9 + $0x3d4] sm:$0xf]
    %v2954 = vld [vmem:[#allocation9 + $0x3d8] sm:$0xff]
    %v2955 = vld [vmem:[#allocation9 + $0x3e0] sm:$0xf]
    %v2956 = vld [vmem:[#allocation9 + $0x3e4] sm:$0xff]
    %v2957 = vld [vmem:[#allocation9 + $0x3ec] sm:$0xf]
    %v2958 = vld [vmem:[#allocation9 + $0x3f0] sm:$0xff]
    %v2959 = vld [vmem:[#allocation9 + $0x3f8] sm:$0xf]
    %v2960 = vld [vmem:[#allocation9 + $0x3fc] sm:$0xff]
    %v2961 = vld [vmem:[#allocation9 + $0x404] sm:$0xf]
    %v2962 = vld [vmem:[#allocation9 + $0x408] sm:$0xff]
    %v2963 = vld [vmem:[#allocation9 + $0x410] sm:$0xf]
    %v2964 = vld [vmem:[#allocation9 + $0x414] sm:$0xff]
    %v2965 = vld [vmem:[#allocation9 + $0x41c] sm:$0xf]
    %v2966 = vld [vmem:[#allocation9 + $0x420] sm:$0xff]
    %v2967 = vld [vmem:[#allocation9 + $0x428] sm:$0xf]
    %v2968 = vld [vmem:[#allocation9 + $0x42c] sm:$0xff]
    %v2969 = vld [vmem:[#allocation9 + $0x434] sm:$0xf]
    %v2970 = vld [vmem:[#allocation9 + $0x438] sm:$0xff]
    %v2971 = vld [vmem:[#allocation9 + $0x440] sm:$0xf]
    %v2972 = vld [vmem:[#allocation9 + $0x444] sm:$0xff]
    %v2973 = vld [vmem:[#allocation9 + $0x44c] sm:$0xf]
    %v2974 = vld [vmem:[#allocation9 + $0x450] sm:$0xff]
    %v2975 = vld [vmem:[#allocation9 + $0x458] sm:$0xf]
    %v2976 = vld [vmem:[#allocation9 + $0x45c] sm:$0xff]
    %v2977 = vld [vmem:[#allocation9 + $0x464] sm:$0xf]
    %v2978 = vld [vmem:[#allocation9 + $0x468] sm:$0xff]
    %v2979 = vld [vmem:[#allocation9 + $0x470] sm:$0xf]
    %v2980 = vld [vmem:[#allocation9 + $0x474] sm:$0xff]
    %v2981 = vld [vmem:[#allocation9 + $0x47c] sm:$0xf]
    %v2982 = vld [vmem:[#allocation9 + $0x480] sm:$0xff]
    %v2983 = vld [vmem:[#allocation9 + $0x488] sm:$0xf]
    %v2984 = vld [vmem:[#allocation9 + $0x48c] sm:$0xff]
    %v2985 = vld [vmem:[#allocation9 + $0x494] sm:$0xf]
    %v2986 = vld [vmem:[#allocation9 + $0x498] sm:$0xff]
    %v2987 = vld [vmem:[#allocation9 + $0x4a0] sm:$0xf]
    %v2988 = vld [vmem:[#allocation9 + $0x4a4] sm:$0xff]
    %v2989 = vld [vmem:[#allocation9 + $0x4ac] sm:$0xf]
    %v2990 = vld [vmem:[#allocation9 + $0x4b0] sm:$0xff]
    %v2991 = vld [vmem:[#allocation9 + $0x4b8] sm:$0xf]
    %v2992 = vld [vmem:[#allocation9 + $0x4bc] sm:$0xff]
    %v2993 = vld [vmem:[#allocation9 + $0x4c4] sm:$0xf]
    %v2994 = vld [vmem:[#allocation9 + $0x4c8] sm:$0xff]
    %v2995 = vld [vmem:[#allocation9 + $0x4d0] sm:$0xf]
    %v2996 = vld [vmem:[#allocation9 + $0x4d4] sm:$0xff]
    %v2997 = vld [vmem:[#allocation9 + $0x4dc] sm:$0xf]
    %v2998 = vld [vmem:[#allocation9 + $0x4e0] sm:$0xff]
    %v2999 = vld [vmem:[#allocation9 + $0x4e8] sm:$0xf]
    %v3000 = vld [vmem:[#allocation9 + $0x4ec] sm:$0xff]
    %v3001 = vld [vmem:[#allocation9 + $0x4f4] sm:$0xf]
    %v3002 = vld [vmem:[#allocation9 + $0x4f8] sm:$0xff]
    %v3003 = vld [vmem:[#allocation9 + $0x500] sm:$0xf]
    %v3004 = vld [vmem:[#allocation9 + $0x504] sm:$0xff]
    %v3005 = vld [vmem:[#allocation9 + $0x50c] sm:$0xf]
    %v3006 = vld [vmem:[#allocation9 + $0x510] sm:$0xff]
    %v3007 = vld [vmem:[#allocation9 + $0x518] sm:$0xf]
    %v3008 = vld [vmem:[#allocation9 + $0x51c] sm:$0xff]
    %v3009 = vld [vmem:[#allocation9 + $0x524] sm:$0xf]
    %v3010 = vld [vmem:[#allocation9 + $0x528] sm:$0xff]
    %v3011 = vld [vmem:[#allocation9 + $0x530] sm:$0xf]
    %v3012 = vld [vmem:[#allocation9 + $0x534] sm:$0xff]
    %v3013 = vld [vmem:[#allocation9 + $0x53c] sm:$0xf]
    %v3014 = vld [vmem:[#allocation9 + $0x540] sm:$0xff]
    %v3015 = vld [vmem:[#allocation9 + $0x548] sm:$0xf]
    %v3016 = vld [vmem:[#allocation9 + $0x54c] sm:$0xff]
    %v3017 = vld [vmem:[#allocation9 + $0x554] sm:$0xf]
    %v3018 = vld [vmem:[#allocation9 + $0x558] sm:$0xff]
    %v3019 = vld [vmem:[#allocation9 + $0x560] sm:$0xf]
    %v3020 = vld [vmem:[#allocation9 + $0x564] sm:$0xff]
    %v3021 = vld [vmem:[#allocation9 + $0x56c] sm:$0xf]
    %v3022 = vld [vmem:[#allocation9 + $0x570] sm:$0xff]
    %v3023 = vld [vmem:[#allocation9 + $0x578] sm:$0xf]
    %v3024 = vld [vmem:[#allocation9 + $0x57c] sm:$0xff]
    %v3025 = vld [vmem:[#allocation9 + $0x584] sm:$0xf]
    %v3026 = vld [vmem:[#allocation9 + $0x588] sm:$0xff]
    %v3027 = vld [vmem:[#allocation9 + $0x590] sm:$0xf]
    %v3028 = vld [vmem:[#allocation9 + $0x594] sm:$0xff]
    %v3029 = vld [vmem:[#allocation9 + $0x59c] sm:$0xf]
    %v3030 = vld [vmem:[#allocation9 + $0x5a0] sm:$0xff]
    %v3031 = vld [vmem:[#allocation9 + $0x5a8] sm:$0xf]
    %v3032 = vld [vmem:[#allocation9 + $0x5ac] sm:$0xff]
    %v3033 = vld [vmem:[#allocation9 + $0x5b4] sm:$0xf]
    %v3034 = vld [vmem:[#allocation9 + $0x5b8] sm:$0xff]
    %v3035 = vld [vmem:[#allocation9 + $0x5c0] sm:$0xf]
    %v3036 = vld [vmem:[#allocation9 + $0x5c4] sm:$0xff]
    %v3037 = vld [vmem:[#allocation9 + $0x5cc] sm:$0xf]
    %v3038 = vld [vmem:[#allocation9 + $0x5d0] sm:$0xff]
    %v3039 = vld [vmem:[#allocation9 + $0x5d8] sm:$0xf]
    %v3040 = vld [vmem:[#allocation9 + $0x5dc] sm:$0xff]
    %v3041 = vld [vmem:[#allocation9 + $0x5e4] sm:$0xf]
    %v3042 = vld [vmem:[#allocation9 + $0x5e8] sm:$0xff]
    %v3043 = vld [vmem:[#allocation9 + $0x5f0] sm:$0xf]
    %v3044 = vld [vmem:[#allocation9 + $0x5f4] sm:$0xff]
    %v3045 = vld [vmem:[#allocation9 + $0x5fc] sm:$0xf]
    %v3046 = vld [vmem:[%s7] sm:$0x7]
    %v3048 = vlaneseq
    %v3049 = vshrl.u32 %v3048, 7
    %v3050 = vsub.s32 0, %v3049
    %v3051 = vrot.slane %v3046, %v3050
    %v3052 = vlaneseq
    %v3053 = vshrl.u32 %v3052, 7
    %v3054 = vsub.s32 1, %v3053
    %v3055 = vrot.slane %v3046, %v3054
    %v3056 = vlaneseq
    %v3057 = vshrl.u32 %v3056, 7
    %v3058 = vsub.s32 2, %v3057
    %v3059 = vrot.slane %v3046, %v3058
    %v3319 = vunpack.c.l.b16 %v2790
    %v3320 = vunpack.c.h.b16 %v2790
    %v3321 = vunpack.c.l.b16 %v2791
    %v3322 = vunpack.c.l.b16 %v2792
    %v3323 = vunpack.c.h.b16 %v2792
    %v3324 = vunpack.c.l.b16 %v2793
    %v3325 = vunpack.c.l.b16 %v2794
    %v3326 = vunpack.c.h.b16 %v2794
    %v3327 = vunpack.c.l.b16 %v2795
    %v3328 = vunpack.c.l.b16 %v2796
    %v3329 = vunpack.c.h.b16 %v2796
    %v3330 = vunpack.c.l.b16 %v2797
    %v3331 = vunpack.c.l.b16 %v2798
    %v3332 = vunpack.c.h.b16 %v2798
    %v3333 = vunpack.c.l.b16 %v2799
    %v3334 = vunpack.c.l.b16 %v2800
    %v3335 = vunpack.c.h.b16 %v2800
    %v3336 = vunpack.c.l.b16 %v2801
    %v3337 = vunpack.c.l.b16 %v2802
    %v3338 = vunpack.c.h.b16 %v2802
    %v3339 = vunpack.c.l.b16 %v2803
    %v3340 = vunpack.c.l.b16 %v2804
    %v3341 = vunpack.c.h.b16 %v2804
    %v3342 = vunpack.c.l.b16 %v2805
    %v3343 = vunpack.c.l.b16 %v2806
    %v3344 = vunpack.c.h.b16 %v2806
    %v3345 = vunpack.c.l.b16 %v2807
    %v3346 = vunpack.c.l.b16 %v2808
    %v3347 = vunpack.c.h.b16 %v2808
    %v3348 = vunpack.c.l.b16 %v2809
    %v3349 = vunpack.c.l.b16 %v2810
    %v3350 = vunpack.c.h.b16 %v2810
    %v3351 = vunpack.c.l.b16 %v2811
    %v3352 = vunpack.c.l.b16 %v2812
    %v3353 = vunpack.c.h.b16 %v2812
    %v3354 = vunpack.c.l.b16 %v2813
    %v3355 = vunpack.c.l.b16 %v2814
    %v3356 = vunpack.c.h.b16 %v2814
    %v3357 = vunpack.c.l.b16 %v2815
    %v3358 = vunpack.c.l.b16 %v2816
    %v3359 = vunpack.c.h.b16 %v2816
    %v3360 = vunpack.c.l.b16 %v2817
    %v3361 = vunpack.c.l.b16 %v2818
    %v3362 = vunpack.c.h.b16 %v2818
    %v3363 = vunpack.c.l.b16 %v2819
    %v3364 = vunpack.c.l.b16 %v2820
    %v3365 = vunpack.c.h.b16 %v2820
    %v3366 = vunpack.c.l.b16 %v2821
    %v3367 = vunpack.c.l.b16 %v2822
    %v3368 = vunpack.c.h.b16 %v2822
    %v3369 = vunpack.c.l.b16 %v2823
    %v3370 = vunpack.c.l.b16 %v2824
    %v3371 = vunpack.c.h.b16 %v2824
    %v3372 = vunpack.c.l.b16 %v2825
    %v3373 = vunpack.c.l.b16 %v2826
    %v3374 = vunpack.c.h.b16 %v2826
    %v3375 = vunpack.c.l.b16 %v2827
    %v3376 = vunpack.c.l.b16 %v2828
    %v3377 = vunpack.c.h.b16 %v2828
    %v3378 = vunpack.c.l.b16 %v2829
    %v3379 = vunpack.c.l.b16 %v2830
    %v3380 = vunpack.c.h.b16 %v2830
    %v3381 = vunpack.c.l.b16 %v2831
    %v3382 = vunpack.c.l.b16 %v2832
    %v3383 = vunpack.c.h.b16 %v2832
    %v3384 = vunpack.c.l.b16 %v2833
    %v3385 = vunpack.c.l.b16 %v2834
    %v3386 = vunpack.c.h.b16 %v2834
    %v3387 = vunpack.c.l.b16 %v2835
    %v3388 = vunpack.c.l.b16 %v2836
    %v3389 = vunpack.c.h.b16 %v2836
    %v3390 = vunpack.c.l.b16 %v2837
    %v3391 = vunpack.c.l.b16 %v2838
    %v3392 = vunpack.c.h.b16 %v2838
    %v3393 = vunpack.c.l.b16 %v2839
    %v3394 = vunpack.c.l.b16 %v2840
    %v3395 = vunpack.c.h.b16 %v2840
    %v3396 = vunpack.c.l.b16 %v2841
    %v3397 = vunpack.c.l.b16 %v2842
    %v3398 = vunpack.c.h.b16 %v2842
    %v3399 = vunpack.c.l.b16 %v2843
    %v3400 = vunpack.c.l.b16 %v2844
    %v3401 = vunpack.c.h.b16 %v2844
    %v3402 = vunpack.c.l.b16 %v2845
    %v3403 = vunpack.c.l.b16 %v2846
    %v3404 = vunpack.c.h.b16 %v2846
    %v3405 = vunpack.c.l.b16 %v2847
    %v3406 = vunpack.c.l.b16 %v2848
    %v3407 = vunpack.c.h.b16 %v2848
    %v3408 = vunpack.c.l.b16 %v2849
    %v3409 = vunpack.c.l.b16 %v2850
    %v3410 = vunpack.c.h.b16 %v2850
    %v3411 = vunpack.c.l.b16 %v2851
    %v3412 = vunpack.c.l.b16 %v2852
    %v3413 = vunpack.c.h.b16 %v2852
    %v3414 = vunpack.c.l.b16 %v2853
    %v3415 = vunpack.c.l.b16 %v2854
    %v3416 = vunpack.c.h.b16 %v2854
    %v3417 = vunpack.c.l.b16 %v2855
    %v3418 = vunpack.c.l.b16 %v2856
    %v3419 = vunpack.c.h.b16 %v2856
    %v3420 = vunpack.c.l.b16 %v2857
    %v3421 = vunpack.c.l.b16 %v2858
    %v3422 = vunpack.c.h.b16 %v2858
    %v3423 = vunpack.c.l.b16 %v2859
    %v3424 = vunpack.c.l.b16 %v2860
    %v3425 = vunpack.c.h.b16 %v2860
    %v3426 = vunpack.c.l.b16 %v2861
    %v3427 = vunpack.c.l.b16 %v2862
    %v3428 = vunpack.c.h.b16 %v2862
    %v3429 = vunpack.c.l.b16 %v2863
    %v3430 = vunpack.c.l.b16 %v2864
    %v3431 = vunpack.c.h.b16 %v2864
    %v3432 = vunpack.c.l.b16 %v2865
    %v3433 = vunpack.c.l.b16 %v2866
    %v3434 = vunpack.c.h.b16 %v2866
    %v3435 = vunpack.c.l.b16 %v2867
    %v3436 = vunpack.c.l.b16 %v2868
    %v3437 = vunpack.c.h.b16 %v2868
    %v3438 = vunpack.c.l.b16 %v2869
    %v3439 = vunpack.c.l.b16 %v2870
    %v3440 = vunpack.c.h.b16 %v2870
    %v3441 = vunpack.c.l.b16 %v2871
    %v3442 = vunpack.c.l.b16 %v2872
    %v3443 = vunpack.c.h.b16 %v2872
    %v3444 = vunpack.c.l.b16 %v2873
    %v3445 = vunpack.c.l.b16 %v2874
    %v3446 = vunpack.c.h.b16 %v2874
    %v3447 = vunpack.c.l.b16 %v2875
    %v3448 = vunpack.c.l.b16 %v2876
    %v3449 = vunpack.c.h.b16 %v2876
    %v3450 = vunpack.c.l.b16 %v2877
    %v3451 = vunpack.c.l.b16 %v2878
    %v3452 = vunpack.c.h.b16 %v2878
    %v3453 = vunpack.c.l.b16 %v2879
    %v3454 = vunpack.c.l.b16 %v2880
    %v3455 = vunpack.c.h.b16 %v2880
    %v3456 = vunpack.c.l.b16 %v2881
    %v3457 = vunpack.c.l.b16 %v2882
    %v3458 = vunpack.c.h.b16 %v2882
    %v3459 = vunpack.c.l.b16 %v2883
    %v3460 = vunpack.c.l.b16 %v2884
    %v3461 = vunpack.c.h.b16 %v2884
    %v3462 = vunpack.c.l.b16 %v2885
    %v3463 = vunpack.c.l.b16 %v2886
    %v3464 = vunpack.c.h.b16 %v2886
    %v3465 = vunpack.c.l.b16 %v2887
    %v3466 = vunpack.c.l.b16 %v2888
    %v3467 = vunpack.c.h.b16 %v2888
    %v3468 = vunpack.c.l.b16 %v2889
    %v3469 = vunpack.c.l.b16 %v2890
    %v3470 = vunpack.c.h.b16 %v2890
    %v3471 = vunpack.c.l.b16 %v2891
    %v3472 = vunpack.c.l.b16 %v2892
    %v3473 = vunpack.c.h.b16 %v2892
    %v3474 = vunpack.c.l.b16 %v2893
    %v3475 = vunpack.c.l.b16 %v2894
    %v3476 = vunpack.c.h.b16 %v2894
    %v3477 = vunpack.c.l.b16 %v2895
    %v3478 = vunpack.c.l.b16 %v2896
    %v3479 = vunpack.c.h.b16 %v2896
    %v3480 = vunpack.c.l.b16 %v2897
    %v3481 = vunpack.c.l.b16 %v2898
    %v3482 = vunpack.c.h.b16 %v2898
    %v3483 = vunpack.c.l.b16 %v2899
    %v3484 = vunpack.c.l.b16 %v2900
    %v3485 = vunpack.c.h.b16 %v2900
    %v3486 = vunpack.c.l.b16 %v2901
    %v3487 = vunpack.c.l.b16 %v2902
    %v3488 = vunpack.c.h.b16 %v2902
    %v3489 = vunpack.c.l.b16 %v2903
    %v3490 = vunpack.c.l.b16 %v2904
    %v3491 = vunpack.c.h.b16 %v2904
    %v3492 = vunpack.c.l.b16 %v2905
    %v3493 = vunpack.c.l.b16 %v2906
    %v3494 = vunpack.c.h.b16 %v2906
    %v3495 = vunpack.c.l.b16 %v2907
    %v3496 = vunpack.c.l.b16 %v2908
    %v3497 = vunpack.c.h.b16 %v2908
    %v3498 = vunpack.c.l.b16 %v2909
    %v3499 = vunpack.c.l.b16 %v2910
    %v3500 = vunpack.c.h.b16 %v2910
    %v3501 = vunpack.c.l.b16 %v2911
    %v3502 = vunpack.c.l.b16 %v2912
    %v3503 = vunpack.c.h.b16 %v2912
    %v3504 = vunpack.c.l.b16 %v2913
    %v3505 = vunpack.c.l.b16 %v2914
    %v3506 = vunpack.c.h.b16 %v2914
    %v3507 = vunpack.c.l.b16 %v2915
    %v3508 = vunpack.c.l.b16 %v2916
    %v3509 = vunpack.c.h.b16 %v2916
    %v3510 = vunpack.c.l.b16 %v2917
    %v3511 = vunpack.c.l.b16 %v2918
    %v3512 = vunpack.c.h.b16 %v2918
    %v3513 = vunpack.c.l.b16 %v2919
    %v3514 = vunpack.c.l.b16 %v2920
    %v3515 = vunpack.c.h.b16 %v2920
    %v3516 = vunpack.c.l.b16 %v2921
    %v3517 = vunpack.c.l.b16 %v2922
    %v3518 = vunpack.c.h.b16 %v2922
    %v3519 = vunpack.c.l.b16 %v2923
    %v3520 = vunpack.c.l.b16 %v2924
    %v3521 = vunpack.c.h.b16 %v2924
    %v3522 = vunpack.c.l.b16 %v2925
    %v3523 = vunpack.c.l.b16 %v2926
    %v3524 = vunpack.c.h.b16 %v2926
    %v3525 = vunpack.c.l.b16 %v2927
    %v3526 = vunpack.c.l.b16 %v2928
    %v3527 = vunpack.c.h.b16 %v2928
    %v3528 = vunpack.c.l.b16 %v2929
    %v3529 = vunpack.c.l.b16 %v2930
    %v3530 = vunpack.c.h.b16 %v2930
    %v3531 = vunpack.c.l.b16 %v2931
    %v3532 = vunpack.c.l.b16 %v2932
    %v3533 = vunpack.c.h.b16 %v2932
    %v3534 = vunpack.c.l.b16 %v2933
    %v3535 = vunpack.c.l.b16 %v2934
    %v3536 = vunpack.c.h.b16 %v2934
    %v3537 = vunpack.c.l.b16 %v2935
    %v3538 = vunpack.c.l.b16 %v2936
    %v3539 = vunpack.c.h.b16 %v2936
    %v3540 = vunpack.c.l.b16 %v2937
    %v3541 = vunpack.c.l.b16 %v2938
    %v3542 = vunpack.c.h.b16 %v2938
    %v3543 = vunpack.c.l.b16 %v2939
    %v3544 = vunpack.c.l.b16 %v2940
    %v3545 = vunpack.c.h.b16 %v2940
    %v3546 = vunpack.c.l.b16 %v2941
    %v3547 = vunpack.c.l.b16 %v2942
    %v3548 = vunpack.c.h.b16 %v2942
    %v3549 = vunpack.c.l.b16 %v2943
    %v3550 = vunpack.c.l.b16 %v2944
    %v3551 = vunpack.c.h.b16 %v2944
    %v3552 = vunpack.c.l.b16 %v2945
    %v3553 = vunpack.c.l.b16 %v2946
    %v3554 = vunpack.c.h.b16 %v2946
    %v3555 = vunpack.c.l.b16 %v2947
    %v3556 = vunpack.c.l.b16 %v2948
    %v3557 = vunpack.c.h.b16 %v2948
    %v3558 = vunpack.c.l.b16 %v2949
    %v3559 = vunpack.c.l.b16 %v2950
    %v3560 = vunpack.c.h.b16 %v2950
    %v3561 = vunpack.c.l.b16 %v2951
    %v3562 = vunpack.c.l.b16 %v2952
    %v3563 = vunpack.c.h.b16 %v2952
    %v3564 = vunpack.c.l.b16 %v2953
    %v3565 = vunpack.c.l.b16 %v2954
    %v3566 = vunpack.c.h.b16 %v2954
    %v3567 = vunpack.c.l.b16 %v2955
    %v3568 = vunpack.c.l.b16 %v2956
    %v3569 = vunpack.c.h.b16 %v2956
    %v3570 = vunpack.c.l.b16 %v2957
    %v3571 = vunpack.c.l.b16 %v2958
    %v3572 = vunpack.c.h.b16 %v2958
    %v3573 = vunpack.c.l.b16 %v2959
    %v3574 = vunpack.c.l.b16 %v2960
    %v3575 = vunpack.c.h.b16 %v2960
    %v3576 = vunpack.c.l.b16 %v2961
    %v3577 = vunpack.c.l.b16 %v2962
    %v3578 = vunpack.c.h.b16 %v2962
    %v3579 = vunpack.c.l.b16 %v2963
    %v3580 = vunpack.c.l.b16 %v2964
    %v3581 = vunpack.c.h.b16 %v2964
    %v3582 = vunpack.c.l.b16 %v2965
    %v3583 = vunpack.c.l.b16 %v2966
    %v3584 = vunpack.c.h.b16 %v2966
    %v3585 = vunpack.c.l.b16 %v2967
    %v3586 = vunpack.c.l.b16 %v2968
    %v3587 = vunpack.c.h.b16 %v2968
    %v3588 = vunpack.c.l.b16 %v2969
    %v3589 = vunpack.c.l.b16 %v2970
    %v3590 = vunpack.c.h.b16 %v2970
    %v3591 = vunpack.c.l.b16 %v2971
    %v3592 = vunpack.c.l.b16 %v2972
    %v3593 = vunpack.c.h.b16 %v2972
    %v3594 = vunpack.c.l.b16 %v2973
    %v3595 = vunpack.c.l.b16 %v2974
    %v3596 = vunpack.c.h.b16 %v2974
    %v3597 = vunpack.c.l.b16 %v2975
    %v3598 = vunpack.c.l.b16 %v2976
    %v3599 = vunpack.c.h.b16 %v2976
    %v3600 = vunpack.c.l.b16 %v2977
    %v3601 = vunpack.c.l.b16 %v2978
    %v3602 = vunpack.c.h.b16 %v2978
    %v3603 = vunpack.c.l.b16 %v2979
    %v3604 = vunpack.c.l.b16 %v2980
    %v3605 = vunpack.c.h.b16 %v2980
    %v3606 = vunpack.c.l.b16 %v2981
    %v3607 = vunpack.c.l.b16 %v2982
    %v3608 = vunpack.c.h.b16 %v2982
    %v3609 = vunpack.c.l.b16 %v2983
    %v3610 = vunpack.c.l.b16 %v2984
    %v3611 = vunpack.c.h.b16 %v2984
    %v3612 = vunpack.c.l.b16 %v2985
    %v3613 = vunpack.c.l.b16 %v2986
    %v3614 = vunpack.c.h.b16 %v2986
    %v3615 = vunpack.c.l.b16 %v2987
    %v3616 = vunpack.c.l.b16 %v2988
    %v3617 = vunpack.c.h.b16 %v2988
    %v3618 = vunpack.c.l.b16 %v2989
    %v3619 = vunpack.c.l.b16 %v2990
    %v3620 = vunpack.c.h.b16 %v2990
    %v3621 = vunpack.c.l.b16 %v2991
    %v3622 = vunpack.c.l.b16 %v2992
    %v3623 = vunpack.c.h.b16 %v2992
    %v3624 = vunpack.c.l.b16 %v2993
    %v3625 = vunpack.c.l.b16 %v2994
    %v3626 = vunpack.c.h.b16 %v2994
    %v3627 = vunpack.c.l.b16 %v2995
    %v3628 = vunpack.c.l.b16 %v2996
    %v3629 = vunpack.c.h.b16 %v2996
    %v3630 = vunpack.c.l.b16 %v2997
    %v3631 = vunpack.c.l.b16 %v2998
    %v3632 = vunpack.c.h.b16 %v2998
    %v3633 = vunpack.c.l.b16 %v2999
    %v3634 = vunpack.c.l.b16 %v3000
    %v3635 = vunpack.c.h.b16 %v3000
    %v3636 = vunpack.c.l.b16 %v3001
    %v3637 = vunpack.c.l.b16 %v3002
    %v3638 = vunpack.c.h.b16 %v3002
    %v3639 = vunpack.c.l.b16 %v3003
    %v3640 = vunpack.c.l.b16 %v3004
    %v3641 = vunpack.c.h.b16 %v3004
    %v3642 = vunpack.c.l.b16 %v3005
    %v3643 = vunpack.c.l.b16 %v3006
    %v3644 = vunpack.c.h.b16 %v3006
    %v3645 = vunpack.c.l.b16 %v3007
    %v3646 = vunpack.c.l.b16 %v3008
    %v3647 = vunpack.c.h.b16 %v3008
    %v3648 = vunpack.c.l.b16 %v3009
    %v3649 = vunpack.c.l.b16 %v3010
    %v3650 = vunpack.c.h.b16 %v3010
    %v3651 = vunpack.c.l.b16 %v3011
    %v3652 = vunpack.c.l.b16 %v3012
    %v3653 = vunpack.c.h.b16 %v3012
    %v3654 = vunpack.c.l.b16 %v3013
    %v3655 = vunpack.c.l.b16 %v3014
    %v3656 = vunpack.c.h.b16 %v3014
    %v3657 = vunpack.c.l.b16 %v3015
    %v3658 = vunpack.c.l.b16 %v3016
    %v3659 = vunpack.c.h.b16 %v3016
    %v3660 = vunpack.c.l.b16 %v3017
    %v3661 = vunpack.c.l.b16 %v3018
    %v3662 = vunpack.c.h.b16 %v3018
    %v3663 = vunpack.c.l.b16 %v3019
    %v3664 = vunpack.c.l.b16 %v3020
    %v3665 = vunpack.c.h.b16 %v3020
    %v3666 = vunpack.c.l.b16 %v3021
    %v3667 = vunpack.c.l.b16 %v3022
    %v3668 = vunpack.c.h.b16 %v3022
    %v3669 = vunpack.c.l.b16 %v3023
    %v3670 = vunpack.c.l.b16 %v3024
    %v3671 = vunpack.c.h.b16 %v3024
    %v3672 = vunpack.c.l.b16 %v3025
    %v3673 = vunpack.c.l.b16 %v3026
    %v3674 = vunpack.c.h.b16 %v3026
    %v3675 = vunpack.c.l.b16 %v3027
    %v3676 = vunpack.c.l.b16 %v3028
    %v3677 = vunpack.c.h.b16 %v3028
    %v3678 = vunpack.c.l.b16 %v3029
    %v3679 = vunpack.c.l.b16 %v3030
    %v3680 = vunpack.c.h.b16 %v3030
    %v3681 = vunpack.c.l.b16 %v3031
    %v3682 = vunpack.c.l.b16 %v3032
    %v3683 = vunpack.c.h.b16 %v3032
    %v3684 = vunpack.c.l.b16 %v3033
    %v3685 = vunpack.c.l.b16 %v3034
    %v3686 = vunpack.c.h.b16 %v3034
    %v3687 = vunpack.c.l.b16 %v3035
    %v3688 = vunpack.c.l.b16 %v3036
    %v3689 = vunpack.c.h.b16 %v3036
    %v3690 = vunpack.c.l.b16 %v3037
    %v3691 = vunpack.c.l.b16 %v3038
    %v3692 = vunpack.c.h.b16 %v3038
    %v3693 = vunpack.c.l.b16 %v3039
    %v3694 = vunpack.c.l.b16 %v3040
    %v3695 = vunpack.c.h.b16 %v3040
    %v3696 = vunpack.c.l.b16 %v3041
    %v3697 = vunpack.c.l.b16 %v3042
    %v3698 = vunpack.c.h.b16 %v3042
    %v3699 = vunpack.c.l.b16 %v3043
    %v3700 = vunpack.c.l.b16 %v3044
    %v3701 = vunpack.c.h.b16 %v3044
    %v3702 = vunpack.c.l.b16 %v3045
    %v3703 = vpack.c.b16 %v3322, %v3319
    %v3704 = vpack.c.b16 %v3323, %v3320
    %v3705 = vpack.c.b16 %v3324, %v3321
    %v3706 = vpack.c.b16 %v3328, %v3325
    %v3707 = vpack.c.b16 %v3329, %v3326
    %v3708 = vpack.c.b16 %v3330, %v3327
    %v3709 = vpack.c.b16 %v3334, %v3331
    %v3710 = vpack.c.b16 %v3335, %v3332
    %v3711 = vpack.c.b16 %v3336, %v3333
    %v3712 = vpack.c.b16 %v3340, %v3337
    %v3713 = vpack.c.b16 %v3341, %v3338
    %v3714 = vpack.c.b16 %v3342, %v3339
    %v3715 = vpack.c.b16 %v3346, %v3343
    %v3716 = vpack.c.b16 %v3347, %v3344
    %v3717 = vpack.c.b16 %v3348, %v3345
    %v3718 = vpack.c.b16 %v3352, %v3349
    %v3719 = vpack.c.b16 %v3353, %v3350
    %v3720 = vpack.c.b16 %v3354, %v3351
    %v3721 = vpack.c.b16 %v3358, %v3355
    %v3722 = vpack.c.b16 %v3359, %v3356
    %v3723 = vpack.c.b16 %v3360, %v3357
    %v3724 = vpack.c.b16 %v3364, %v3361
    %v3725 = vpack.c.b16 %v3365, %v3362
    %v3726 = vpack.c.b16 %v3366, %v3363
    %v3727 = vpack.c.b16 %v3370, %v3367
    %v3728 = vpack.c.b16 %v3371, %v3368
    %v3729 = vpack.c.b16 %v3372, %v3369
    %v3730 = vpack.c.b16 %v3376, %v3373
    %v3731 = vpack.c.b16 %v3377, %v3374
    %v3732 = vpack.c.b16 %v3378, %v3375
    %v3733 = vpack.c.b16 %v3382, %v3379
    %v3734 = vpack.c.b16 %v3383, %v3380
    %v3735 = vpack.c.b16 %v3384, %v3381
    %v3736 = vpack.c.b16 %v3388, %v3385
    %v3737 = vpack.c.b16 %v3389, %v3386
    %v3738 = vpack.c.b16 %v3390, %v3387
    %v3739 = vpack.c.b16 %v3394, %v3391
    %v3740 = vpack.c.b16 %v3395, %v3392
    %v3741 = vpack.c.b16 %v3396, %v3393
    %v3742 = vpack.c.b16 %v3400, %v3397
    %v3743 = vpack.c.b16 %v3401, %v3398
    %v3744 = vpack.c.b16 %v3402, %v3399
    %v3745 = vpack.c.b16 %v3406, %v3403
    %v3746 = vpack.c.b16 %v3407, %v3404
    %v3747 = vpack.c.b16 %v3408, %v3405
    %v3748 = vpack.c.b16 %v3412, %v3409
    %v3749 = vpack.c.b16 %v3413, %v3410
    %v3750 = vpack.c.b16 %v3414, %v3411
    %v3751 = vpack.c.b16 %v3418, %v3415
    %v3752 = vpack.c.b16 %v3419, %v3416
    %v3753 = vpack.c.b16 %v3420, %v3417
    %v3754 = vpack.c.b16 %v3424, %v3421
    %v3755 = vpack.c.b16 %v3425, %v3422
    %v3756 = vpack.c.b16 %v3426, %v3423
    %v3757 = vpack.c.b16 %v3430, %v3427
    %v3758 = vpack.c.b16 %v3431, %v3428
    %v3759 = vpack.c.b16 %v3432, %v3429
    %v3760 = vpack.c.b16 %v3436, %v3433
    %v3761 = vpack.c.b16 %v3437, %v3434
    %v3762 = vpack.c.b16 %v3438, %v3435
    %v3763 = vpack.c.b16 %v3442, %v3439
    %v3764 = vpack.c.b16 %v3443, %v3440
    %v3765 = vpack.c.b16 %v3444, %v3441
    %v3766 = vpack.c.b16 %v3448, %v3445
    %v3767 = vpack.c.b16 %v3449, %v3446
    %v3768 = vpack.c.b16 %v3450, %v3447
    %v3769 = vpack.c.b16 %v3454, %v3451
    %v3770 = vpack.c.b16 %v3455, %v3452
    %v3771 = vpack.c.b16 %v3456, %v3453
    %v3772 = vpack.c.b16 %v3460, %v3457
    %v3773 = vpack.c.b16 %v3461, %v3458
    %v3774 = vpack.c.b16 %v3462, %v3459
    %v3775 = vpack.c.b16 %v3466, %v3463
    %v3776 = vpack.c.b16 %v3467, %v3464
    %v3777 = vpack.c.b16 %v3468, %v3465
    %v3778 = vpack.c.b16 %v3472, %v3469
    %v3779 = vpack.c.b16 %v3473, %v3470
    %v3780 = vpack.c.b16 %v3474, %v3471
    %v3781 = vpack.c.b16 %v3478, %v3475
    %v3782 = vpack.c.b16 %v3479, %v3476
    %v3783 = vpack.c.b16 %v3480, %v3477
    %v3784 = vpack.c.b16 %v3484, %v3481
    %v3785 = vpack.c.b16 %v3485, %v3482
    %v3786 = vpack.c.b16 %v3486, %v3483
    %v3787 = vpack.c.b16 %v3490, %v3487
    %v3788 = vpack.c.b16 %v3491, %v3488
    %v3789 = vpack.c.b16 %v3492, %v3489
    %v3790 = vpack.c.b16 %v3496, %v3493
    %v3791 = vpack.c.b16 %v3497, %v3494
    %v3792 = vpack.c.b16 %v3498, %v3495
    %v3793 = vpack.c.b16 %v3502, %v3499
    %v3794 = vpack.c.b16 %v3503, %v3500
    %v3795 = vpack.c.b16 %v3504, %v3501
    %v3796 = vpack.c.b16 %v3508, %v3505
    %v3797 = vpack.c.b16 %v3509, %v3506
    %v3798 = vpack.c.b16 %v3510, %v3507
    %v3799 = vpack.c.b16 %v3514, %v3511
    %v3800 = vpack.c.b16 %v3515, %v3512
    %v3801 = vpack.c.b16 %v3516, %v3513
    %v3802 = vpack.c.b16 %v3520, %v3517
    %v3803 = vpack.c.b16 %v3521, %v3518
    %v3804 = vpack.c.b16 %v3522, %v3519
    %v3805 = vpack.c.b16 %v3526, %v3523
    %v3806 = vpack.c.b16 %v3527, %v3524
    %v3807 = vpack.c.b16 %v3528, %v3525
    %v3808 = vpack.c.b16 %v3532, %v3529
    %v3809 = vpack.c.b16 %v3533, %v3530
    %v3810 = vpack.c.b16 %v3534, %v3531
    %v3811 = vpack.c.b16 %v3538, %v3535
    %v3812 = vpack.c.b16 %v3539, %v3536
    %v3813 = vpack.c.b16 %v3540, %v3537
    %v3814 = vpack.c.b16 %v3544, %v3541
    %v3815 = vpack.c.b16 %v3545, %v3542
    %v3816 = vpack.c.b16 %v3546, %v3543
    %v3817 = vpack.c.b16 %v3550, %v3547
    %v3818 = vpack.c.b16 %v3551, %v3548
    %v3819 = vpack.c.b16 %v3552, %v3549
    %v3820 = vpack.c.b16 %v3556, %v3553
    %v3821 = vpack.c.b16 %v3557, %v3554
    %v3822 = vpack.c.b16 %v3558, %v3555
    %v3823 = vpack.c.b16 %v3562, %v3559
    %v3824 = vpack.c.b16 %v3563, %v3560
    %v3825 = vpack.c.b16 %v3564, %v3561
    %v3826 = vpack.c.b16 %v3568, %v3565
    %v3827 = vpack.c.b16 %v3569, %v3566
    %v3828 = vpack.c.b16 %v3570, %v3567
    %v3829 = vpack.c.b16 %v3574, %v3571
    %v3830 = vpack.c.b16 %v3575, %v3572
    %v3831 = vpack.c.b16 %v3576, %v3573
    %v3832 = vpack.c.b16 %v3580, %v3577
    %v3833 = vpack.c.b16 %v3581, %v3578
    %v3834 = vpack.c.b16 %v3582, %v3579
    %v3835 = vpack.c.b16 %v3586, %v3583
    %v3836 = vpack.c.b16 %v3587, %v3584
    %v3837 = vpack.c.b16 %v3588, %v3585
    %v3838 = vpack.c.b16 %v3592, %v3589
    %v3839 = vpack.c.b16 %v3593, %v3590
    %v3840 = vpack.c.b16 %v3594, %v3591
    %v3841 = vpack.c.b16 %v3598, %v3595
    %v3842 = vpack.c.b16 %v3599, %v3596
    %v3843 = vpack.c.b16 %v3600, %v3597
    %v3844 = vpack.c.b16 %v3604, %v3601
    %v3845 = vpack.c.b16 %v3605, %v3602
    %v3846 = vpack.c.b16 %v3606, %v3603
    %v3847 = vpack.c.b16 %v3610, %v3607
    %v3848 = vpack.c.b16 %v3611, %v3608
    %v3849 = vpack.c.b16 %v3612, %v3609
    %v3850 = vpack.c.b16 %v3616, %v3613
    %v3851 = vpack.c.b16 %v3617, %v3614
    %v3852 = vpack.c.b16 %v3618, %v3615
    %v3853 = vpack.c.b16 %v3622, %v3619
    %v3854 = vpack.c.b16 %v3623, %v3620
    %v3855 = vpack.c.b16 %v3624, %v3621
    %v3856 = vpack.c.b16 %v3628, %v3625
    %v3857 = vpack.c.b16 %v3629, %v3626
    %v3858 = vpack.c.b16 %v3630, %v3627
    %v3859 = vpack.c.b16 %v3634, %v3631
    %v3860 = vpack.c.b16 %v3635, %v3632
    %v3861 = vpack.c.b16 %v3636, %v3633
    %v3862 = vpack.c.b16 %v3640, %v3637
    %v3863 = vpack.c.b16 %v3641, %v3638
    %v3864 = vpack.c.b16 %v3642, %v3639
    %v3865 = vpack.c.b16 %v3646, %v3643
    %v3866 = vpack.c.b16 %v3647, %v3644
    %v3867 = vpack.c.b16 %v3648, %v3645
    %v3868 = vpack.c.b16 %v3652, %v3649
    %v3869 = vpack.c.b16 %v3653, %v3650
    %v3870 = vpack.c.b16 %v3654, %v3651
    %v3871 = vpack.c.b16 %v3658, %v3655
    %v3872 = vpack.c.b16 %v3659, %v3656
    %v3873 = vpack.c.b16 %v3660, %v3657
    %v3874 = vpack.c.b16 %v3664, %v3661
    %v3875 = vpack.c.b16 %v3665, %v3662
    %v3876 = vpack.c.b16 %v3666, %v3663
    %v3877 = vpack.c.b16 %v3670, %v3667
    %v3878 = vpack.c.b16 %v3671, %v3668
    %v3879 = vpack.c.b16 %v3672, %v3669
    %v3880 = vpack.c.b16 %v3676, %v3673
    %v3881 = vpack.c.b16 %v3677, %v3674
    %v3882 = vpack.c.b16 %v3678, %v3675
    %v3883 = vpack.c.b16 %v3682, %v3679
    %v3884 = vpack.c.b16 %v3683, %v3680
    %v3885 = vpack.c.b16 %v3684, %v3681
    %v3886 = vpack.c.b16 %v3688, %v3685
    %v3887 = vpack.c.b16 %v3689, %v3686
    %v3888 = vpack.c.b16 %v3690, %v3687
    %v3889 = vpack.c.b16 %v3694, %v3691
    %v3890 = vpack.c.b16 %v3695, %v3692
    %v3891 = vpack.c.b16 %v3696, %v3693
    %v3892 = vpack.c.b16 %v3700, %v3697
    %v3893 = vpack.c.b16 %v3701, %v3698
    %v3894 = vpack.c.b16 %v3702, %v3699
    %4087 = vmatprep.subr.bf16.mxu0 %v3704
    %4088 = vmatpush1.bf16.msra.mxu0 %v3703
    %4089 = vmatprep.subr.bf16.mxu0 %v3707
    %4090 = vmatpush1.bf16.msra.mxu0 %v3706
    %4091 = vmatprep.subr.bf16.mxu0 %v3710
    %4092 = vmatpush1.bf16.msra.mxu0 %v3709
    %4093 = vmatprep.subr.bf16.mxu0 %v3713
    %4094 = vmatpush1.bf16.msra.mxu0 %v3712
    %4095 = vmatprep.subr.bf16.mxu0 %v3716
    %4096 = vmatpush1.bf16.msra.mxu0 %v3715
    %4097 = vmatprep.subr.bf16.mxu0 %v3719
    %4098 = vmatpush1.bf16.msra.mxu0 %v3718
    %4099 = vmatprep.subr.bf16.mxu0 %v3722
    %4100 = vmatpush1.bf16.msra.mxu0 %v3721
    %4101 = vmatprep.subr.bf16.mxu0 %v3725
    %4102 = vmatpush1.bf16.msra.mxu0 %v3724
    %4103 = vmatprep.subr.bf16.mxu0 %v3728
    %4104 = vmatpush1.bf16.msra.mxu0 %v3727
    %4105 = vmatprep.subr.bf16.mxu0 %v3731
    %4106 = vmatpush1.bf16.msra.mxu0 %v3730
    %4107 = vmatprep.subr.bf16.mxu0 %v3734
    %4108 = vmatpush1.bf16.msra.mxu0 %v3733
    %4109 = vmatprep.subr.bf16.mxu0 %v3737
    %4110 = vmatpush1.bf16.msra.mxu0 %v3736
    %4111 = vmatprep.subr.bf16.mxu0 %v3740
    %4112 = vmatpush1.bf16.msra.mxu0 %v3739
    %4113 = vmatprep.subr.bf16.mxu0 %v3743
    %4114 = vmatpush1.bf16.msra.mxu0 %v3742
    %4115 = vmatprep.subr.bf16.mxu0 %v3746
    %4116 = vmatpush1.bf16.msra.mxu0 %v3745
    %4117 = vmatprep.subr.bf16.mxu0 %v3749
    %4118 = vmatpush1.bf16.msra.mxu0 %v3748
    %4119 = vmatprep.mubr.bf16.mxu0 %v2783
    %4120 = vmatmul.mubr.bf16.gmra.mrb[0].mxu0 %v2782
    %v4121 = vpop.f32.mrb[0].mxu0
    %v4122 = vadd.f32 %v3051, %v4121
    %v4123 = vpop.f32.mrb[0].mxu0
    %v4124 = vadd.f32 %v3055, %v4123
    %v4125 = vpop.f32.mrb[0].mxu0
    %v4126 = vpop.f32.mrb[0].mxu0
    %4127 = vdwg.mxu0
    %4128 = vmatprep.subr.bf16.mxu0 %v3752
    %4129 = vmatpush1.bf16.msra.mxu0 %v3751
    %4130 = vmatprep.subr.bf16.mxu0 %v3755
    %4131 = vmatpush1.bf16.msra.mxu0 %v3754
    %4132 = vmatprep.subr.bf16.mxu0 %v3758
    %4133 = vmatpush1.bf16.msra.mxu0 %v3757
    %4134 = vmatprep.subr.bf16.mxu0 %v3761
    %4135 = vmatpush1.bf16.msra.mxu0 %v3760
    %4136 = vmatprep.subr.bf16.mxu0 %v3764
    %4137 = vmatpush1.bf16.msra.mxu0 %v3763
    %4138 = vmatprep.subr.bf16.mxu0 %v3767
    %4139 = vmatpush1.bf16.msra.mxu0 %v3766
    %4140 = vmatprep.subr.bf16.mxu0 %v3770
    %4141 = vmatpush1.bf16.msra.mxu0 %v3769
    %4142 = vmatprep.subr.bf16.mxu0 %v3773
    %4143 = vmatpush1.bf16.msra.mxu0 %v3772
    %4144 = vmatprep.subr.bf16.mxu0 %v3776
    %4145 = vmatpush1.bf16.msra.mxu0 %v3775
    %4146 = vmatprep.subr.bf16.mxu0 %v3779
    %4147 = vmatpush1.bf16.msra.mxu0 %v3778
    %4148 = vmatprep.subr.bf16.mxu0 %v3782
    %4149 = vmatpush1.bf16.msra.mxu0 %v3781
    %4150 = vmatprep.subr.bf16.mxu0 %v3785
    %4151 = vmatpush1.bf16.msra.mxu0 %v3784
    %4152 = vmatprep.subr.bf16.mxu0 %v3788
    %4153 = vmatpush1.bf16.msra.mxu0 %v3787
    %4154 = vmatprep.subr.bf16.mxu0 %v3791
    %4155 = vmatpush1.bf16.msra.mxu0 %v3790
    %4156 = vmatprep.subr.bf16.mxu0 %v3794
    %4157 = vmatpush1.bf16.msra.mxu0 %v3793
    %4158 = vmatprep.subr.bf16.mxu0 %v3797
    %4159 = vmatpush1.bf16.msra.mxu0 %v3796
    %4160 = vmatprep.mubr.bf16.mxu0 %v2785
    %4161 = vmatmul.mubr.bf16.gmra.mrb[0].mxu0 %v2784
    %v4162 = vpop.f32.mrb[0].mxu0
    %v4163 = vadd.f32 %v4122, %v4162
    %v4164 = vpop.f32.mrb[0].mxu0
    %v4165 = vadd.f32 %v4124, %v4164
    %v4166 = vpop.f32.mrb[0].mxu0
    %v4167 = vpop.f32.mrb[0].mxu0
    %4168 = vdwg.mxu0
    %4169 = vmatprep.subr.bf16.mxu0 %v3800
    %4170 = vmatpush1.bf16.msra.mxu0 %v3799
    %4171 = vmatprep.subr.bf16.mxu0 %v3803
    %4172 = vmatpush1.bf16.msra.mxu0 %v3802
    %4173 = vmatprep.subr.bf16.mxu0 %v3806
    %4174 = vmatpush1.bf16.msra.mxu0 %v3805
    %4175 = vmatprep.subr.bf16.mxu0 %v3809
    %4176 = vmatpush1.bf16.msra.mxu0 %v3808
    %4177 = vmatprep.subr.bf16.mxu0 %v3812
    %4178 = vmatpush1.bf16.msra.mxu0 %v3811
    %4179 = vmatprep.subr.bf16.mxu0 %v3815
    %4180 = vmatpush1.bf16.msra.mxu0 %v3814
    %4181 = vmatprep.subr.bf16.mxu0 %v3818
    %4182 = vmatpush1.bf16.msra.mxu0 %v3817
    %4183 = vmatprep.subr.bf16.mxu0 %v3821
    %4184 = vmatpush1.bf16.msra.mxu0 %v3820
    %4185 = vmatprep.subr.bf16.mxu0 %v3824
    %4186 = vmatpush1.bf16.msra.mxu0 %v3823
    %4187 = vmatprep.subr.bf16.mxu0 %v3827
    %4188 = vmatpush1.bf16.msra.mxu0 %v3826
    %4189 = vmatprep.subr.bf16.mxu0 %v3830
    %4190 = vmatpush1.bf16.msra.mxu0 %v3829
    %4191 = vmatprep.subr.bf16.mxu0 %v3833
    %4192 = vmatpush1.bf16.msra.mxu0 %v3832
    %4193 = vmatprep.subr.bf16.mxu0 %v3836
    %4194 = vmatpush1.bf16.msra.mxu0 %v3835
    %4195 = vmatprep.subr.bf16.mxu0 %v3839
    %4196 = vmatpush1.bf16.msra.mxu0 %v3838
    %4197 = vmatprep.subr.bf16.mxu0 %v3842
    %4198 = vmatpush1.bf16.msra.mxu0 %v3841
    %4199 = vmatprep.subr.bf16.mxu0 %v3845
    %4200 = vmatpush1.bf16.msra.mxu0 %v3844
    %4201 = vmatprep.mubr.bf16.mxu0 %v2787
    %4202 = vmatmul.mubr.bf16.gmra.mrb[0].mxu0 %v2786
    %v4203 = vpop.f32.mrb[0].mxu0
    %v4204 = vadd.f32 %v4163, %v4203
    %v4205 = vpop.f32.mrb[0].mxu0
    %v4206 = vadd.f32 %v4165, %v4205
    %v4207 = vpop.f32.mrb[0].mxu0
    %v4208 = vpop.f32.mrb[0].mxu0
    %4209 = vdwg.mxu0
    %4210 = vmatprep.subr.bf16.mxu0 %v3848
    %4211 = vmatpush1.bf16.msra.mxu0 %v3847
    %4212 = vmatprep.subr.bf16.mxu0 %v3851
    %4213 = vmatpush1.bf16.msra.mxu0 %v3850
    %4214 = vmatprep.subr.bf16.mxu0 %v3854
    %4215 = vmatpush1.bf16.msra.mxu0 %v3853
    %4216 = vmatprep.subr.bf16.mxu0 %v3857
    %4217 = vmatpush1.bf16.msra.mxu0 %v3856
    %4218 = vmatprep.subr.bf16.mxu0 %v3860
    %4219 = vmatpush1.bf16.msra.mxu0 %v3859
    %4220 = vmatprep.subr.bf16.mxu0 %v3863
    %4221 = vmatpush1.bf16.msra.mxu0 %v3862
    %4222 = vmatprep.subr.bf16.mxu0 %v3866
    %4223 = vmatpush1.bf16.msra.mxu0 %v3865
    %4224 = vmatprep.subr.bf16.mxu0 %v3869
    %4225 = vmatpush1.bf16.msra.mxu0 %v3868
    %4226 = vmatprep.subr.bf16.mxu0 %v3872
    %4227 = vmatpush1.bf16.msra.mxu0 %v3871
    %4228 = vmatprep.subr.bf16.mxu0 %v3875
    %4229 = vmatpush1.bf16.msra.mxu0 %v3874
    %4230 = vmatprep.subr.bf16.mxu0 %v3878
    %4231 = vmatpush1.bf16.msra.mxu0 %v3877
    %4232 = vmatprep.subr.bf16.mxu0 %v3881
    %4233 = vmatpush1.bf16.msra.mxu0 %v3880
    %4234 = vmatprep.subr.bf16.mxu0 %v3884
    %4235 = vmatpush1.bf16.msra.mxu0 %v3883
    %4236 = vmatprep.subr.bf16.mxu0 %v3887
    %4237 = vmatpush1.bf16.msra.mxu0 %v3886
    %4238 = vmatprep.subr.bf16.mxu0 %v3890
    %4239 = vmatpush1.bf16.msra.mxu0 %v3889
    %4240 = vmatprep.subr.bf16.mxu0 %v3893
    %4241 = vmatpush1.bf16.msra.mxu0 %v3892
    %4242 = vmatprep.mubr.bf16.mxu0 %v2789
    %4243 = vmatmul.mubr.bf16.gmra.mrb[0].mxu0 %v2788
    %v4244 = vpop.f32.mrb[0].mxu0
    %v4245 = vadd.f32 %v4204, %v4244
    %v4246 = vpop.f32.mrb[0].mxu0
    %v4247 = vadd.f32 %v4206, %v4246
    %v4248 = vpop.f32.mrb[0].mxu0
    %v4249 = vpop.f32.mrb[0].mxu0
    %4250 = vdwg.mxu0
    %4251 = vmatprep.subr.bf16.mxu0 0
    %4252 = vmatpush1.bf16.msra.mxu0 %v3705
    %4253 = vmatprep.subr.bf16.mxu0 0
    %4254 = vmatpush1.bf16.msra.mxu0 %v3708
    %4255 = vmatprep.subr.bf16.mxu0 0
    %4256 = vmatpush1.bf16.msra.mxu0 %v3711
    %4257 = vmatprep.subr.bf16.mxu0 0
    %4258 = vmatpush1.bf16.msra.mxu0 %v3714
    %4259 = vmatprep.subr.bf16.mxu0 0
    %4260 = vmatpush1.bf16.msra.mxu0 %v3717
    %4261 = vmatprep.subr.bf16.mxu0 0
    %4262 = vmatpush1.bf16.msra.mxu0 %v3720
    %4263 = vmatprep.subr.bf16.mxu0 0
    %4264 = vmatpush1.bf16.msra.mxu0 %v3723
    %4265 = vmatprep.subr.bf16.mxu0 0
    %4266 = vmatpush1.bf16.msra.mxu0 %v3726
    %4267 = vmatprep.subr.bf16.mxu0 0
    %4268 = vmatpush1.bf16.msra.mxu0 %v3729
    %4269 = vmatprep.subr.bf16.mxu0 0
    %4270 = vmatpush1.bf16.msra.mxu0 %v3732
    %4271 = vmatprep.subr.bf16.mxu0 0
    %4272 = vmatpush1.bf16.msra.mxu0 %v3735
    %4273 = vmatprep.subr.bf16.mxu0 0
    %4274 = vmatpush1.bf16.msra.mxu0 %v3738
    %4275 = vmatprep.subr.bf16.mxu0 0
    %4276 = vmatpush1.bf16.msra.mxu0 %v3741
    %4277 = vmatprep.subr.bf16.mxu0 0
    %4278 = vmatpush1.bf16.msra.mxu0 %v3744
    %4279 = vmatprep.subr.bf16.mxu0 0
    %4280 = vmatpush1.bf16.msra.mxu0 %v3747
    %4281 = vmatprep.subr.bf16.mxu0 0
    %4282 = vmatpush1.bf16.msra.mxu0 %v3750
    %4283 = vmatprep.mubr.bf16.mxu0 %v2783
    %4284 = vmatmul.mubr.bf16.gmra.mrb[0].mxu0 %v2782
    %v4285 = vpop.f32.mrb[0].mxu0
    %v4286 = vadd.f32 %v3059, %v4285
    %v4287 = vpop.f32.mrb[0].mxu0
    %v4288 = vpop.f32.mrb[0].mxu0
    %v4289 = vpop.f32.mrb[0].mxu0
    %4290 = vdwg.mxu0
    %4291 = vmatprep.subr.bf16.mxu0 0
    %4292 = vmatpush1.bf16.msra.mxu0 %v3753
    %4293 = vmatprep.subr.bf16.mxu0 0
    %4294 = vmatpush1.bf16.msra.mxu0 %v3756
    %4295 = vmatprep.subr.bf16.mxu0 0
    %4296 = vmatpush1.bf16.msra.mxu0 %v3759
    %4297 = vmatprep.subr.bf16.mxu0 0
    %4298 = vmatpush1.bf16.msra.mxu0 %v3762
    %4299 = vmatprep.subr.bf16.mxu0 0
    %4300 = vmatpush1.bf16.msra.mxu0 %v3765
    %4301 = vmatprep.subr.bf16.mxu0 0
    %4302 = vmatpush1.bf16.msra.mxu0 %v3768
    %4303 = vmatprep.subr.bf16.mxu0 0
    %4304 = vmatpush1.bf16.msra.mxu0 %v3771
    %4305 = vmatprep.subr.bf16.mxu0 0
    %4306 = vmatpush1.bf16.msra.mxu0 %v3774
    %4307 = vmatprep.subr.bf16.mxu0 0
    %4308 = vmatpush1.bf16.msra.mxu0 %v3777
    %4309 = vmatprep.subr.bf16.mxu0 0
    %4310 = vmatpush1.bf16.msra.mxu0 %v3780
    %4311 = vmatprep.subr.bf16.mxu0 0
    %4312 = vmatpush1.bf16.msra.mxu0 %v3783
    %4313 = vmatprep.subr.bf16.mxu0 0
    %4314 = vmatpush1.bf16.msra.mxu0 %v3786
    %4315 = vmatprep.subr.bf16.mxu0 0
    %4316 = vmatpush1.bf16.msra.mxu0 %v3789
    %4317 = vmatprep.subr.bf16.mxu0 0
    %4318 = vmatpush1.bf16.msra.mxu0 %v3792
    %4319 = vmatprep.subr.bf16.mxu0 0
    %4320 = vmatpush1.bf16.msra.mxu0 %v3795
    %4321 = vmatprep.subr.bf16.mxu0 0
    %4322 = vmatpush1.bf16.msra.mxu0 %v3798
    %4323 = vmatprep.mubr.bf16.mxu0 %v2785
    %4324 = vmatmul.mubr.bf16.gmra.mrb[0].mxu0 %v2784
    %v4325 = vpop.f32.mrb[0].mxu0
    %v4326 = vadd.f32 %v4286, %v4325
    %v4327 = vpop.f32.mrb[0].mxu0
    %v4328 = vpop.f32.mrb[0].mxu0
    %v4329 = vpop.f32.mrb[0].mxu0
    %4330 = vdwg.mxu0
    %4331 = vmatprep.subr.bf16.mxu0 0
    %4332 = vmatpush1.bf16.msra.mxu0 %v3801
    %4333 = vmatprep.subr.bf16.mxu0 0
    %4334 = vmatpush1.bf16.msra.mxu0 %v3804
    %4335 = vmatprep.subr.bf16.mxu0 0
    %4336 = vmatpush1.bf16.msra.mxu0 %v3807
    %4337 = vmatprep.subr.bf16.mxu0 0
    %4338 = vmatpush1.bf16.msra.mxu0 %v3810
    %4339 = vmatprep.subr.bf16.mxu0 0
    %4340 = vmatpush1.bf16.msra.mxu0 %v3813
    %4341 = vmatprep.subr.bf16.mxu0 0
    %4342 = vmatpush1.bf16.msra.mxu0 %v3816
    %4343 = vmatprep.subr.bf16.mxu0 0
    %4344 = vmatpush1.bf16.msra.mxu0 %v3819
    %4345 = vmatprep.subr.bf16.mxu0 0
    %4346 = vmatpush1.bf16.msra.mxu0 %v3822
    %4347 = vmatprep.subr.bf16.mxu0 0
    %4348 = vmatpush1.bf16.msra.mxu0 %v3825
    %4349 = vmatprep.subr.bf16.mxu0 0
    %4350 = vmatpush1.bf16.msra.mxu0 %v3828
    %4351 = vmatprep.subr.bf16.mxu0 0
    %4352 = vmatpush1.bf16.msra.mxu0 %v3831
    %4353 = vmatprep.subr.bf16.mxu0 0
    %4354 = vmatpush1.bf16.msra.mxu0 %v3834
    %4355 = vmatprep.subr.bf16.mxu0 0
    %4356 = vmatpush1.bf16.msra.mxu0 %v3837
    %4357 = vmatprep.subr.bf16.mxu0 0
    %4358 = vmatpush1.bf16.msra.mxu0 %v3840
    %4359 = vmatprep.subr.bf16.mxu0 0
    %4360 = vmatpush1.bf16.msra.mxu0 %v3843
    %4361 = vmatprep.subr.bf16.mxu0 0
    %4362 = vmatpush1.bf16.msra.mxu0 %v3846
    %4363 = vmatprep.mubr.bf16.mxu0 %v2787
    %4364 = vmatmul.mubr.bf16.gmra.mrb[0].mxu0 %v2786
    %v4365 = vpop.f32.mrb[0].mxu0
    %v4366 = vadd.f32 %v4326, %v4365
    %v4367 = vpop.f32.mrb[0].mxu0
    %v4368 = vpop.f32.mrb[0].mxu0
    %v4369 = vpop.f32.mrb[0].mxu0
    %4370 = vdwg.mxu0
    %4371 = vmatprep.subr.bf16.mxu0 0
    %4372 = vmatpush1.bf16.msra.mxu0 %v3849
    %4373 = vmatprep.subr.bf16.mxu0 0
    %4374 = vmatpush1.bf16.msra.mxu0 %v3852
    %4375 = vmatprep.subr.bf16.mxu0 0
    %4376 = vmatpush1.bf16.msra.mxu0 %v3855
    %4377 = vmatprep.subr.bf16.mxu0 0
    %4378 = vmatpush1.bf16.msra.mxu0 %v3858
    %4379 = vmatprep.subr.bf16.mxu0 0
    %4380 = vmatpush1.bf16.msra.mxu0 %v3861
    %4381 = vmatprep.subr.bf16.mxu0 0
    %4382 = vmatpush1.bf16.msra.mxu0 %v3864
    %4383 = vmatprep.subr.bf16.mxu0 0
    %4384 = vmatpush1.bf16.msra.mxu0 %v3867
    %4385 = vmatprep.subr.bf16.mxu0 0
    %4386 = vmatpush1.bf16.msra.mxu0 %v3870
    %4387 = vmatprep.subr.bf16.mxu0 0
    %4388 = vmatpush1.bf16.msra.mxu0 %v3873
    %4389 = vmatprep.subr.bf16.mxu0 0
    %4390 = vmatpush1.bf16.msra.mxu0 %v3876
    %4391 = vmatprep.subr.bf16.mxu0 0
    %4392 = vmatpush1.bf16.msra.mxu0 %v3879
    %4393 = vmatprep.subr.bf16.mxu0 0
    %4394 = vmatpush1.bf16.msra.mxu0 %v3882
    %4395 = vmatprep.subr.bf16.mxu0 0
    %4396 = vmatpush1.bf16.msra.mxu0 %v3885
    %4397 = vmatprep.subr.bf16.mxu0 0
    %4398 = vmatpush1.bf16.msra.mxu0 %v3888
    %4399 = vmatprep.subr.bf16.mxu0 0
    %4400 = vmatpush1.bf16.msra.mxu0 %v3891
    %4401 = vmatprep.subr.bf16.mxu0 0
    %4402 = vmatpush1.bf16.msra.mxu0 %v3894
    %4403 = vmatprep.mubr.bf16.mxu0 %v2789
    %4404 = vmatmul.mubr.bf16.gmra.mrb[0].mxu0 %v2788
    %v4405 = vpop.f32.mrb[0].mxu0
    %v4406 = vadd.f32 %v4366, %v4405
    %v4407 = vpop.f32.mrb[0].mxu0
    %v4408 = vpop.f32.mrb[0].mxu0
    %v4409 = vpop.f32.mrb[0].mxu0
    %4410 = vdwg.mxu0
    %v4411 = vtanh.pop %v4245
    %v4412 = vtanh.pop %v4247
    %v4413 = vtanh.pop %v4406
    %4414 = vst [vmem:[#allocation11] sm:$0xff] %v4411
    %4415 = vst [vmem:[#allocation11 + $0x8] sm:$0xff] %v4412
    %4416 = vst [vmem:[#allocation11 + $0x10] sm:$0xff] %v4413
    // Predicated region
    $region50: #{tpu_custom_call.1} parent=1 // pred_check
      _
    $region51: #{tpu_custom_call.1} parent=1 // pred_check_branch
      %4418 = sbr.rel (0) target = $region53
    $region52: #{tpu_custom_call.1} parent=1 // pred_region
      %s4420 = ssub.s32 384, 384
      %4421 = vsyncadd [#allocation5], %s4420
      %s4423 = sshll.u32 [#allocation11], 4
      %s4424 = int_to_ptr.vmem [resolvable:$true] %s4423
      %4426 = dma.vmem_to_hbm [thread:$0]  %s4424, 384, %s8, [#allocation5]
    $region53: #{tpu_custom_call.1} parent=1 // pred_fallthru
      _
    // Predicated region
    $region54: #{tpu_custom_call.1} parent=1 // pred_check
      _
    $region55: #{tpu_custom_call.1} parent=1 // pred_check_branch
      %4428 = sbr.rel (0) target = $region57
    $region56: #{tpu_custom_call.1} parent=1 // pred_region
      %4429 = dma.done [#allocation5], 384
    $region57: #{tpu_custom_call.1} parent=1 // pred_fallthru
      _
    %4430 = vsyncpa [#allocation4], 1
    %4431 = vsyncpa [#allocation7], 1
    %4432 = vsyncpa [#allocation10], 1
    %4433 = vsyncpa [#allocation5], 1

</llo_original>
